<compile_context>
chip_gen: v5e
topology: v5e:2x2
jax: 0.10.0
libtpu: 0.0.40
codegen_flags: <defaults>
</compile_context>

<pallas_src>
import math
from functools import partial

import jax
import jax.numpy as jnp
from jax import lax
from jax.experimental import pallas as pl
from jax.experimental.pallas import tpu as pltpu

_MXU = jnp.bfloat16  # matmul operand dtype (accumulation stays f32)

# Parameters passed to (and used inside) the Pallas kernel, in order.
KERNEL_PARAM_NAMES = (
    "pre_w", "pre_b",
    "qkv_w", "qkv_b", "ow", "ob",
    "ln0_g", "ln0_b",
    "ffn1_w", "ffn1_b", "ffn2_w", "ffn2_b",
    "ln1_g", "ln1_b",
    "proj_w", "proj_b",
)


def _shifted_rows(x, off):
    """y[t] = x[t + off], zero-filled outside [0, T).  `off` is a static int."""
    if off == 0:
        return x
    T, C = x.shape
    zeros = jnp.zeros((abs(off), C), x.dtype)
    if off < 0:
        return jnp.concatenate([zeros, x[:T + off]], axis=0)
    return jnp.concatenate([x[off:], zeros], axis=0)


def _conv1d_taps(x, w, b, *, causal):
    """1-D conv as K accumulated per-tap matmuls (no im2col buffers).

    x: (T, Cin) f32, w: (K, Cin, Cout) bf16 (tap-major), b: (1, Cout) f32.
    'same' (odd K) or causal (left) padding, matching nn.Conv1d semantics.
    """
    K = w.shape[0]
    if causal:
        offsets = [k - (K - 1) for k in range(K)]
    else:
        offsets = [k - (K - 1) // 2 for k in range(K)]
    acc = None
    for k, off in enumerate(offsets):
        xt = _shifted_rows(x, off).astype(_MXU)
        part = jnp.dot(xt, w[k], preferred_element_type=jnp.float32)
        acc = part if acc is None else acc + part
    return acc + b


def _layer_norm(x, gamma, beta, eps=1e-5):
    mu = jnp.mean(x, axis=-1, keepdims=True)
    var = jnp.mean((x - mu) ** 2, axis=-1, keepdims=True)
    return (x - mu) * lax.rsqrt(var + eps) * gamma + beta


def _f0_decoder_kernel(h0_ref, mask_ref, mask_t_ref, *rest, n_layers, n_heads):
    param_refs = rest[:len(KERNEL_PARAM_NAMES)]
    out_ref = rest[len(KERNEL_PARAM_NAMES)]
    (pre_w_ref, pre_b_ref, qkv_w_ref, qkv_b_ref, ow_ref, ob_ref,
     ln0_g_ref, ln0_b_ref, ffn1_w_ref, ffn1_b_ref, ffn2_w_ref, ffn2_b_ref,
     ln1_g_ref, ln1_b_ref, proj_w_ref, proj_b_ref) = param_refs

    h0 = h0_ref[0]          # (T, H)  = x + cond(spk_emb) + f0_prenet(norm_f0)
    mask = mask_ref[0]      # (T, 1)
    mask_t = mask_t_ref[0]  # (1, T)
    T, H = h0.shape
    d = H // n_heads
    fc = ffn1_b_ref.shape[-1]

    # Hoisted broadcasts / masks (JAX does not CSE broadcast_in_dim).
    mask_h = jnp.broadcast_to(mask, (T, H))
    mask_fc = jnp.broadcast_to(mask, (T, fc))
    row = lax.broadcasted_iota(jnp.int32, (T, T), 0)
    col = lax.broadcasted_iota(jnp.int32, (T, T), 1)
    causal = col <= row     # subsequent_mask

    # x = prenet(x) * x_mask; the decoder's leading x*x_mask is idempotent for
    # a 0/1 mask, so a single multiply suffices.
    h = _conv1d_taps(h0, pre_w_ref[...], pre_b_ref[...], causal=False) * mask_h

    for l in range(n_layers):
        # ---- multi-head self-attention (fused q/k/v projection) ----
        # qkv_w columns: [q heads | k heads | v heads]; 1/sqrt(d) is pre-folded
        # into the q columns (weight and bias) in prepare_params.
        qkv = jnp.dot(h.astype(_MXU), qkv_w_ref[l],
                      preferred_element_type=jnp.float32) + qkv_b_ref[l]
        ow_l = ow_ref[l]                       # (n_heads, d, H)
        y = None
        for hd in range(n_heads):
            q_h = qkv[:, hd * d:(hd + 1) * d].astype(_MXU)
            k_h = qkv[:, H + hd * d:H + (hd + 1) * d].astype(_MXU)
            v_h = qkv[:, 2 * H + hd * d:2 * H + (hd + 1) * d].astype(_MXU)
            s = lax.dot_general(q_h, k_h, (((1,), (1,)), ((), ())),
                                preferred_element_type=jnp.float32)   # (T, T)
            # Only the causal mask is applied (as in so-vits attentions.FFT).
            s = jnp.where(causal, s, -1e4)
            s = s - jnp.max(s, axis=-1, keepdims=True)
            e = jnp.exp(s)
            attn = e / jnp.sum(e, axis=-1, keepdims=True)   # exact softmax
            ctx = jnp.dot(attn.astype(_MXU), v_h,
                          preferred_element_type=jnp.float32)         # (T, d)
            part = jnp.dot(ctx.astype(_MXU), ow_l[hd],
                           preferred_element_type=jnp.float32)        # (T, H)
            y = part if y is None else y + part
        y = y + ob_ref[l]
        # dropout is identity at inference
        h = _layer_norm(h + y, ln0_g_ref[l], ln0_b_ref[l])

        # ---- causal FFN ----
        y = _conv1d_taps(h * mask_h, ffn1_w_ref[l], ffn1_b_ref[l], causal=True)
        y = jnp.maximum(y, 0.0)                 # activation=None -> relu
        y = _conv1d_taps(y * mask_fc, ffn2_w_ref[l], ffn2_b_ref[l],
                         causal=True) * mask_h
        h = _layer_norm(h + y, ln1_g_ref[l], ln1_b_ref[l])

    h = h * mask_h
    # proj (1x1 conv), emitted channels-major (O, T): T on the lane axis.
    out = jnp.einsum("oh,th->ot", proj_w_ref[...], h.astype(_MXU),
                     preferred_element_type=jnp.float32)
    out_ref[0] = ((out + proj_b_ref[...]) * mask_t).astype(out_ref.dtype)


def prepare_params(natural, *, n_heads):
    """Re-layout 'natural' (in, out)-ordered parameters for the kernel.

    - q/k/v 1x1-conv weights fused to (L, H, 3H) bf16 with the 1/sqrt(k_ch)
      softmax scale folded into the q columns (and q bias).
    - conv weights kept per-tap (K, Cin, Cout) bf16 for tap-accumulated matmuls.
    - output projection transposed to (O, H) bf16, bias to (O, 1).
    - cond / f0_prenet weights stay f32 (used only on the XLA wrapper side).
    Biases / layernorm parameters stay f32.
    """
    bf = _MXU
    L, H, _ = natural["qw"].shape
    k_ch = H // n_heads
    scale = 1.0 / math.sqrt(k_ch)

    qkv_w = jnp.concatenate(
        [natural["qw"] * scale, natural["kw"], natural["vw"]], axis=2)
    qkv_b = jnp.concatenate(
        [natural["qb"] * scale, natural["kb"], natural["vb"]], axis=2)

    return {
        # wrapper-side (f32) prologue parameters
        "cond_w": natural["cond_w"], "cond_b": natural["cond_b"],
        "f0_w": natural["f0_w"], "f0_b": natural["f0_b"],
        # kernel-side parameters
        "pre_w": natural["pre_w"].astype(bf), "pre_b": natural["pre_b"],
        "qkv_w": qkv_w.astype(bf), "qkv_b": qkv_b,
        "ow": natural["ow"].reshape(L, n_heads, k_ch, H).astype(bf),
        "ob": natural["ob"],
        "ln0_g": natural["ln0_g"], "ln0_b": natural["ln0_b"],
        "ffn1_w": natural["ffn1_w"].astype(bf), "ffn1_b": natural["ffn1_b"],
        "ffn2_w": natural["ffn2_w"].astype(bf), "ffn2_b": natural["ffn2_b"],
        "ln1_g": natural["ln1_g"], "ln1_b": natural["ln1_b"],
        "proj_w": jnp.transpose(natural["proj_w"]).astype(bf),   # (O, H)
        "proj_b": jnp.transpose(natural["proj_b"]),              # (O, 1)
    }


def f0_decoder_forward(x_ncl, norm_f0_ncl, x_mask_ncl, spk_emb_ncl, params, *,
                       n_layers, n_heads, out_channels):
    # PyTorch NCL -> channels-last for the kernel body.
    x = jnp.transpose(x_ncl, (0, 2, 1))            # (B, T, H)
    f0 = jnp.transpose(norm_f0_ncl, (0, 2, 1))     # (B, T, 1)
    mask = jnp.transpose(x_mask_ncl, (0, 2, 1))    # (B, T, 1)
    mask_t = x_mask_ncl                            # (B, 1, T) lane-major mask
    spk = jnp.transpose(spk_emb_ncl, (0, 2, 1))    # (B, 1, S)
    B, T, H = x.shape

    # Batch-parallel prologue in XLA (all f32): x + cond(spk) + f0_prenet(f0).
    cond = jnp.einsum("bis,sh->bih", spk, params["cond_w"]) + params["cond_b"]
    K = params["f0_w"].shape[0]
    pad = (K - 1) // 2
    f0p = jnp.pad(f0, ((0, 0), (pad, pad), (0, 0)))
    f0_out = params["f0_b"]
    for k in range(K):
        f0_out = f0_out + f0p[:, k:k + T, :] * params["f0_w"][k]
    h0 = x + cond + f0_out                         # (B, T, H)

    def data_spec(shape):
        return pl.BlockSpec((1,) + tuple(shape[1:]), lambda b: (b, 0, 0))

    def full_spec(shape):
        nd = len(shape)
        return pl.BlockSpec(tuple(shape), lambda b, _nd=nd: (0,) * _nd)

    param_list = [params[n] for n in KERNEL_PARAM_NAMES]
    in_specs = ([data_spec(h0.shape), data_spec(mask.shape),
                 data_spec(mask_t.shape)]
                + [full_spec(p.shape) for p in param_list])
    # Output written directly in NCL layout (T on the lane axis).  At T=64 the
    # store is still masked (<128 lanes); pad T for real workloads.
    out_specs = pl.BlockSpec((1, out_channels, T), lambda b: (b, 0, 0))

    kernel = partial(_f0_decoder_kernel, n_layers=n_layers, n_heads=n_heads)
    return pl.pallas_call(
        kernel,
        out_shape=jax.ShapeDtypeStruct((B, out_channels, T), jnp.float32),
        grid=(B,),
        in_specs=in_specs,
        out_specs=out_specs,
        compiler_params=pltpu.CompilerParams(
            dimension_semantics=("parallel",),
            # Tiny working set; keep well under v7x's 64 MiB physical VMEM.
            vmem_limit_bytes=32 * 1024 * 1024),
    )(h0, mask, mask_t, *param_list)


def _reference_forward(natural, x_ncl, norm_f0_ncl, x_mask_ncl, spk_emb_ncl, *,
                       n_layers, n_heads):
    """Independent pure-JAX re-implementation of the PyTorch forward.

    Mirrors models.F0Decoder / attentions.FFT directly (padded convs, separate
    q/k/v projections, per-head attention, jax.nn.softmax).  Matmul operands
    are rounded to the kernel's bf16 policy so the comparison isolates
    translation/lowering bugs rather than dtype policy.
    """
    bf = _MXU
    x = jnp.transpose(x_ncl, (0, 2, 1))
    f0 = jnp.transpose(norm_f0_ncl, (0, 2, 1))
    mask = jnp.transpose(x_mask_ncl, (0, 2, 1))
    spk = jnp.transpose(spk_emb_ncl, (0, 2, 1))
    B, T, H = x.shape
    d = H // n_heads
    scale = 1.0 / math.sqrt(d)

    def conv1d(xb, w, b, causal):
        K = w.shape[0]
        pl_, pr_ = (K - 1, 0) if causal else ((K - 1) // 2, (K - 1) // 2)
        xp = jnp.pad(xb, ((pl_, pr_), (0, 0)))
        out = b
        for k in range(K):
            out = out + jnp.dot(xp[k:k + T].astype(bf), w[k].astype(bf),
                                preferred_element_type=jnp.float32)
        return out

    def layer_norm(xb, g, bt):
        mu = jnp.mean(xb, axis=-1, keepdims=True)
        var = jnp.mean((xb - mu) ** 2, axis=-1, keepdims=True)
        return (xb - mu) / jnp.sqrt(var + 1e-5) * g + bt

    causal_mask = jnp.arange(T)[None, :] <= jnp.arange(T)[:, None]

    outs = []
    for bi in range(B):
        xb = x[bi]
        m = mask[bi]                                       # (T, 1)
        xb = xb + (spk[bi] @ natural["cond_w"] + natural["cond_b"])
        f0p = jnp.pad(f0[bi], ((1, 1), (0, 0)))
        fo = natural["f0_b"]
        for k in range(3):
            fo = fo + f0p[k:k + T] * natural["f0_w"][k]
        xb = xb + fo
        xb = conv1d(xb, natural["pre_w"], natural["pre_b"], False) * m
        xb = xb * m
        for l in range(n_layers):
            q = jnp.dot(xb.astype(bf), natural["qw"][l].astype(bf),
                        preferred_element_type=jnp.float32) + natural["qb"][l]
            kk = jnp.dot(xb.astype(bf), natural["kw"][l].astype(bf),
                         preferred_element_type=jnp.float32) + natural["kb"][l]
            vv = jnp.dot(xb.astype(bf), natural["vw"][l].astype(bf),
                         preferred_element_type=jnp.float32) + natural["vb"][l]
            heads = []
            for hd in range(n_heads):
                qh = q[:, hd * d:(hd + 1) * d] * scale
                kh = kk[:, hd * d:(hd + 1) * d]
                vh = vv[:, hd * d:(hd + 1) * d]
                s = jnp.dot(qh.astype(bf), kh.astype(bf).T,
                            preferred_element_type=jnp.float32)
                s = jnp.where(causal_mask, s, -1e4)
                a = jax.nn.softmax(s, axis=-1)
                heads.append(jnp.dot(a.astype(bf), vh.astype(bf),
                                     preferred_element_type=jnp.float32))
            ctx = jnp.concatenate(heads, axis=1)           # (T, H)
            y = jnp.dot(ctx.astype(bf), natural["ow"][l].astype(bf),
                        preferred_element_type=jnp.float32) + natural["ob"][l]
            xb = layer_norm(xb + y, natural["ln0_g"][l], natural["ln0_b"][l])
            y = conv1d(xb * m, natural["ffn1_w"][l], natural["ffn1_b"][l], True)
            y = jnp.maximum(y, 0.0)
            y = conv1d(y * m, natural["ffn2_w"][l], natural["ffn2_b"][l],
                       True) * m
            xb = layer_norm(xb + y, natural["ln1_g"][l], natural["ln1_b"][l])
        xb = xb * m
        ob = jnp.dot(xb.astype(bf), natural["proj_w"].astype(bf),
                     preferred_element_type=jnp.float32) + natural["proj_b"]
        outs.append(jnp.transpose(ob * m))                 # (O, T)
    return jnp.stack(outs, axis=0)


if __name__ == "__main__":
    # Small config: out_channels=1, hidden=32, filter=64, n_heads=2,
    # n_layers=2, kernel_size=3, dropout (inference -> identity), spk=16.
    B, T = 2, 64
    H, FC, O = 32, 64, 1
    N_HEADS, N_LAYERS, KSZ = 2, 2, 3
    S = 16

    keys = iter(jax.random.split(jax.random.PRNGKey(0), 64))

    def nrm(shape, scale=0.1):
        return (jax.random.normal(next(keys), shape) * scale).astype(jnp.float32)

    natural = {
        "cond_w": nrm((S, H)), "cond_b": nrm((1, H)),
        "f0_w": nrm((KSZ, 1, H)), "f0_b": nrm((1, H)),
        "pre_w": nrm((KSZ, H, H)), "pre_b": nrm((1, H)),
        "qw": nrm((N_LAYERS, H, H)), "qb": nrm((N_LAYERS, 1, H)),
        "vw": nrm((N_LAYERS, H, H)), "vb": nrm((N_LAYERS, 1, H)),
        "ow": nrm((N_LAYERS, H, H)), "ob": nrm((N_LAYERS, 1, H)),
        "ln0_g": jnp.ones((N_LAYERS, 1, H), jnp.float32),
        "ln0_b": jnp.zeros((N_LAYERS, 1, H), jnp.float32),
        "ffn1_w": nrm((N_LAYERS, KSZ, H, FC)), "ffn1_b": nrm((N_LAYERS, 1, FC)),
        "ffn2_w": nrm((N_LAYERS, KSZ, FC, H)), "ffn2_b": nrm((N_LAYERS, 1, H)),
        "ln1_g": jnp.ones((N_LAYERS, 1, H), jnp.float32),
        "ln1_b": jnp.zeros((N_LAYERS, 1, H), jnp.float32),
        "proj_w": nrm((H, O)), "proj_b": nrm((1, O)),
    }
    # proximal_init=True in attentions.FFT: conv_k initialized from conv_q.
    natural["kw"] = natural["qw"]
    natural["kb"] = natural["qb"]

    params = prepare_params(natural, n_heads=N_HEADS)

    # Inputs in PyTorch NCL convention.
    x_ncl = nrm((B, H, T), scale=1.0)             # (B, hidden, T)
    norm_f0_ncl = nrm((B, 1, T), scale=1.0)       # (B, 1, T)
    lengths = jnp.array([T, (3 * T) // 5])
    x_mask_ncl = (jnp.arange(T)[None, :] < lengths[:, None]).astype(
        jnp.float32).reshape(B, 1, T)             # (B, 1, T)
    spk_emb_ncl = nrm((B, S, 1), scale=1.0)       # (B, spk_channels, 1)

    out = f0_decoder_forward(
        x_ncl, norm_f0_ncl, x_mask_ncl, spk_emb_ncl, params,
        n_layers=N_LAYERS, n_heads=N_HEADS, out_channels=O)
    out = jax.block_until_ready(out)
    assert out.shape == (B, O, T), out.shape

    ref = _reference_forward(
        natural, x_ncl, norm_f0_ncl, x_mask_ncl, spk_emb_ncl,
        n_layers=N_LAYERS, n_heads=N_HEADS)
    ref = jax.block_until_ready(ref)
    # bf16 parameter/operand rounding (and the softmax scale folded into the
    # q weights in the kernel) give ~1e-3-level differences; 1e-2 is margin.
    assert jnp.allclose(out, ref, rtol=1e-2, atol=1e-2), (
        float(jnp.max(jnp.abs(out - ref))))

    print("KERNEL_OK")
</pallas_src>

<mosaic_0001>
module attributes {stable_mosaic.version = 11 : i64} {
  func.func @_f0_decoder_kernel(%arg0: i32, %arg1: memref<1x64x32xf32, #tpu.memory_space<vmem>>, %arg2: memref<1x64x1xf32, #tpu.memory_space<vmem>>, %arg3: memref<1x1x64xf32, #tpu.memory_space<vmem>>, %arg4: memref<3x32x32xbf16, #tpu.memory_space<vmem>>, %arg5: memref<1x32xf32, #tpu.memory_space<vmem>>, %arg6: memref<2x32x96xbf16, #tpu.memory_space<vmem>>, %arg7: memref<2x1x96xf32, #tpu.memory_space<vmem>>, %arg8: memref<2x2x16x32xbf16, #tpu.memory_space<vmem>>, %arg9: memref<2x1x32xf32, #tpu.memory_space<vmem>>, %arg10: memref<2x1x32xf32, #tpu.memory_space<vmem>>, %arg11: memref<2x1x32xf32, #tpu.memory_space<vmem>>, %arg12: memref<2x3x32x64xbf16, #tpu.memory_space<vmem>>, %arg13: memref<2x1x64xf32, #tpu.memory_space<vmem>>, %arg14: memref<2x3x64x32xbf16, #tpu.memory_space<vmem>>, %arg15: memref<2x1x32xf32, #tpu.memory_space<vmem>>, %arg16: memref<2x1x32xf32, #tpu.memory_space<vmem>>, %arg17: memref<2x1x32xf32, #tpu.memory_space<vmem>>, %arg18: memref<1x32xbf16, #tpu.memory_space<vmem>>, %arg19: memref<1x1xf32, #tpu.memory_space<vmem>>, %arg20: memref<1x1x64xf32, #tpu.memory_space<vmem>>) attributes {dimension_semantics = [#tpu.dimension_semantics<parallel>], iteration_bounds = array<i64: 2>, scalar_prefetch = 0 : i64, scratch_operands = 0 : i64, tpu.core_type = #tpu.core_type<tc>, window_params = [{transform_indices = @transform_0, window_bounds = array<i64: 1, 64, 32>}, {transform_indices = @transform_1, window_bounds = array<i64: 1, 64, 1>}, {transform_indices = @transform_2, window_bounds = array<i64: 1, 1, 64>}, {pipeline_mode = #tpu.pipeline_mode<synchronous>, transform_indices = @transform_3, window_bounds = array<i64: 3, 32, 32>}, {pipeline_mode = #tpu.pipeline_mode<synchronous>, transform_indices = @transform_4, window_bounds = array<i64: 1, 32>}, {pipeline_mode = #tpu.pipeline_mode<synchronous>, transform_indices = @transform_5, window_bounds = array<i64: 2, 32, 96>}, {pipeline_mode = #tpu.pipeline_mode<synchronous>, transform_indices = @transform_6, window_bounds = array<i64: 2, 1, 96>}, {pipeline_mode = #tpu.pipeline_mode<synchronous>, transform_indices = @transform_7, window_bounds = array<i64: 2, 2, 16, 32>}, {pipeline_mode = #tpu.pipeline_mode<synchronous>, transform_indices = @transform_8, window_bounds = array<i64: 2, 1, 32>}, {pipeline_mode = #tpu.pipeline_mode<synchronous>, transform_indices = @transform_9, window_bounds = array<i64: 2, 1, 32>}, {pipeline_mode = #tpu.pipeline_mode<synchronous>, transform_indices = @transform_10, window_bounds = array<i64: 2, 1, 32>}, {pipeline_mode = #tpu.pipeline_mode<synchronous>, transform_indices = @transform_11, window_bounds = array<i64: 2, 3, 32, 64>}, {pipeline_mode = #tpu.pipeline_mode<synchronous>, transform_indices = @transform_12, window_bounds = array<i64: 2, 1, 64>}, {pipeline_mode = #tpu.pipeline_mode<synchronous>, transform_indices = @transform_13, window_bounds = array<i64: 2, 3, 64, 32>}, {pipeline_mode = #tpu.pipeline_mode<synchronous>, transform_indices = @transform_14, window_bounds = array<i64: 2, 1, 32>}, {pipeline_mode = #tpu.pipeline_mode<synchronous>, transform_indices = @transform_15, window_bounds = array<i64: 2, 1, 32>}, {pipeline_mode = #tpu.pipeline_mode<synchronous>, transform_indices = @transform_16, window_bounds = array<i64: 2, 1, 32>}, {pipeline_mode = #tpu.pipeline_mode<synchronous>, transform_indices = @transform_17, window_bounds = array<i64: 1, 32>}, {pipeline_mode = #tpu.pipeline_mode<synchronous>, transform_indices = @transform_18, window_bounds = array<i64: 1, 1>}, {transform_indices = @transform_19, window_bounds = array<i64: 1, 1, 64>}]} {
    %c0 = arith.constant 0 : index
    %c0_0 = arith.constant 0 : index
    %c0_1 = arith.constant 0 : index
    %0 = vector.load %arg1[%c0, %c0_0, %c0_1] : memref<1x64x32xf32, #tpu.memory_space<vmem>>, vector<1x64x32xf32>
    %1 = vector.shape_cast %0 : vector<1x64x32xf32> to vector<64x32xf32>
    %c0_2 = arith.constant 0 : index
    %c0_3 = arith.constant 0 : index
    %c0_4 = arith.constant 0 : index
    %2 = vector.load %arg2[%c0_2, %c0_3, %c0_4] : memref<1x64x1xf32, #tpu.memory_space<vmem>>, vector<1x64x1xf32>
    %3 = vector.shape_cast %2 : vector<1x64x1xf32> to vector<64x1xf32>
    %c0_5 = arith.constant 0 : index
    %c0_6 = arith.constant 0 : index
    %c0_7 = arith.constant 0 : index
    %4 = vector.load %arg3[%c0_5, %c0_6, %c0_7] : memref<1x1x64xf32, #tpu.memory_space<vmem>>, vector<1x1x64xf32>
    %5 = vector.shape_cast %4 : vector<1x1x64xf32> to vector<1x64xf32>
    %6 = vector.shape_cast %3 : vector<64x1xf32> to vector<64x1xf32>
    %7 = vector.broadcast %6 : vector<64x1xf32> to vector<64x32xf32>
    %8 = vector.shape_cast %3 : vector<64x1xf32> to vector<64x1xf32>
    %9 = vector.broadcast %8 : vector<64x1xf32> to vector<64x64xf32>
    %10 = tpu.iota {dimensions = array<i32: 0>} : vector<64x64xi32>
    %11 = tpu.iota {dimensions = array<i32: 1>} : vector<64x64xi32>
    %12 = arith.cmpi sle, %11, %10 : vector<64x64xi32>
    %c0_8 = arith.constant 0 : index
    %c0_9 = arith.constant 0 : index
    %c0_10 = arith.constant 0 : index
    %13 = vector.load %arg4[%c0_8, %c0_9, %c0_10] : memref<3x32x32xbf16, #tpu.memory_space<vmem>>, vector<3x32x32xbf16>
    %c0_11 = arith.constant 0 : index
    %c0_12 = arith.constant 0 : index
    %14 = vector.load %arg5[%c0_11, %c0_12] : memref<1x32xf32, #tpu.memory_space<vmem>>, vector<1x32xf32>
    %cst = arith.constant 0.000000e+00 : f32
    %15 = vector.broadcast %cst : f32 to vector<1x32xf32>
    %16 = vector.extract_strided_slice %1 {offsets = [0, 0], sizes = [63, 32], strides = [1, 1]} : vector<64x32xf32> to vector<63x32xf32>
    %17 = tpu.concatenate %15, %16 in 0 : vector<1x32xf32>, vector<63x32xf32> -> vector<64x32xf32>
    %18 = arith.truncf %17 : vector<64x32xf32> to vector<64x32xbf16>
    %19 = vector.extract_strided_slice %13 {offsets = [0, 0, 0], sizes = [1, 32, 32], strides = [1, 1, 1]} : vector<3x32x32xbf16> to vector<1x32x32xbf16>
    %20 = vector.shape_cast %19 : vector<1x32x32xbf16> to vector<32x32xbf16>
    %cst_13 = arith.constant dense<0.000000e+00> : vector<64x32xf32>
    %21 = tpu.matmul %18, %20, %cst_13 {dimension_numbers = #tpu.dot_dimension_numbers<[1], [0], [0], [1], [0, 0, 1, 1], [], []>} : vector<64x32xbf16>, vector<32x32xbf16>, vector<64x32xf32> -> vector<64x32xf32>
    %22 = arith.truncf %1 : vector<64x32xf32> to vector<64x32xbf16>
    %23 = vector.extract_strided_slice %13 {offsets = [1, 0, 0], sizes = [1, 32, 32], strides = [1, 1, 1]} : vector<3x32x32xbf16> to vector<1x32x32xbf16>
    %24 = vector.shape_cast %23 : vector<1x32x32xbf16> to vector<32x32xbf16>
    %cst_14 = arith.constant dense<0.000000e+00> : vector<64x32xf32>
    %25 = tpu.matmul %22, %24, %cst_14 {dimension_numbers = #tpu.dot_dimension_numbers<[1], [0], [0], [1], [0, 0, 1, 1], [], []>} : vector<64x32xbf16>, vector<32x32xbf16>, vector<64x32xf32> -> vector<64x32xf32>
    %26 = arith.addf %21, %25 : vector<64x32xf32>
    %cst_15 = arith.constant 0.000000e+00 : f32
    %27 = vector.broadcast %cst_15 : f32 to vector<1x32xf32>
    %28 = vector.extract_strided_slice %1 {offsets = [1, 0], sizes = [63, 32], strides = [1, 1]} : vector<64x32xf32> to vector<63x32xf32>
    %29 = tpu.concatenate %28, %27 in 0 : vector<63x32xf32>, vector<1x32xf32> -> vector<64x32xf32>
    %30 = arith.truncf %29 : vector<64x32xf32> to vector<64x32xbf16>
    %31 = vector.extract_strided_slice %13 {offsets = [2, 0, 0], sizes = [1, 32, 32], strides = [1, 1, 1]} : vector<3x32x32xbf16> to vector<1x32x32xbf16>
    %32 = vector.shape_cast %31 : vector<1x32x32xbf16> to vector<32x32xbf16>
    %cst_16 = arith.constant dense<0.000000e+00> : vector<64x32xf32>
    %33 = tpu.matmul %30, %32, %cst_16 {dimension_numbers = #tpu.dot_dimension_numbers<[1], [0], [0], [1], [0, 0, 1, 1], [], []>} : vector<64x32xbf16>, vector<32x32xbf16>, vector<64x32xf32> -> vector<64x32xf32>
    %34 = arith.addf %26, %33 : vector<64x32xf32>
    %35 = vector.broadcast %14 : vector<1x32xf32> to vector<64x32xf32>
    %36 = arith.addf %34, %35 : vector<64x32xf32>
    %37 = arith.mulf %36, %7 : vector<64x32xf32>
    %38 = arith.truncf %37 : vector<64x32xf32> to vector<64x32xbf16>
    %c0_17 = arith.constant 0 : index
    %c0_18 = arith.constant 0 : index
    %c0_19 = arith.constant 0 : index
    %39 = vector.load %arg6[%c0_17, %c0_18, %c0_19] : memref<2x32x96xbf16, #tpu.memory_space<vmem>>, vector<1x32x96xbf16>
    %40 = vector.shape_cast %39 : vector<1x32x96xbf16> to vector<32x96xbf16>
    %cst_20 = arith.constant dense<0.000000e+00> : vector<64x96xf32>
    %41 = tpu.matmul %38, %40, %cst_20 {dimension_numbers = #tpu.dot_dimension_numbers<[1], [0], [0], [1], [0, 0, 1, 1], [], []>} : vector<64x32xbf16>, vector<32x96xbf16>, vector<64x96xf32> -> vector<64x96xf32>
    %c0_21 = arith.constant 0 : index
    %c0_22 = arith.constant 0 : index
    %c0_23 = arith.constant 0 : index
    %42 = vector.load %arg7[%c0_21, %c0_22, %c0_23] : memref<2x1x96xf32, #tpu.memory_space<vmem>>, vector<1x1x96xf32>
    %43 = vector.shape_cast %42 : vector<1x1x96xf32> to vector<1x96xf32>
    %44 = vector.broadcast %43 : vector<1x96xf32> to vector<64x96xf32>
    %45 = arith.addf %41, %44 : vector<64x96xf32>
    %c0_24 = arith.constant 0 : index
    %c0_25 = arith.constant 0 : index
    %c0_26 = arith.constant 0 : index
    %c0_27 = arith.constant 0 : index
    %46 = vector.load %arg8[%c0_24, %c0_25, %c0_26, %c0_27] : memref<2x2x16x32xbf16, #tpu.memory_space<vmem>>, vector<1x2x16x32xbf16>
    %47 = vector.shape_cast %46 : vector<1x2x16x32xbf16> to vector<2x16x32xbf16>
    %48 = vector.extract_strided_slice %45 {offsets = [0, 0], sizes = [64, 16], strides = [1, 1]} : vector<64x96xf32> to vector<64x16xf32>
    %49 = arith.truncf %48 : vector<64x16xf32> to vector<64x16xbf16>
    %50 = vector.extract_strided_slice %45 {offsets = [0, 32], sizes = [64, 16], strides = [1, 1]} : vector<64x96xf32> to vector<64x16xf32>
    %51 = arith.truncf %50 : vector<64x16xf32> to vector<64x16xbf16>
    %52 = vector.extract_strided_slice %45 {offsets = [0, 64], sizes = [64, 16], strides = [1, 1]} : vector<64x96xf32> to vector<64x16xf32>
    %53 = arith.truncf %52 : vector<64x16xf32> to vector<64x16xbf16>
    %cst_28 = arith.constant dense<0.000000e+00> : vector<64x64xf32>
    %54 = tpu.matmul %49, %51, %cst_28 {dimension_numbers = #tpu.dot_dimension_numbers<[1], [1], [0], [0], [0, 0, 1, 0], [], []>} : vector<64x16xbf16>, vector<64x16xbf16>, vector<64x64xf32> -> vector<64x64xf32>
    %cst_29 = arith.constant -1.000000e+04 : f32
    %55 = vector.broadcast %cst_29 : f32 to vector<64x64xf32>
    %56 = arith.select %12, %54, %55 : vector<64x64xi1>, vector<64x64xf32>
    %cst_30 = arith.constant dense<0xFF800000> : vector<64xf32>
    %57 = vector.multi_reduction <maximumf>, %56, %cst_30 [1] : vector<64x64xf32> to vector<64xf32>
    %58 = vector.shape_cast %57 : vector<64xf32> to vector<64x1xf32>
    %59 = vector.broadcast %58 : vector<64x1xf32> to vector<64x64xf32>
    %60 = arith.subf %56, %59 : vector<64x64xf32>
    %61 = math.exp %60 : vector<64x64xf32>
    %cst_31 = arith.constant dense<0.000000e+00> : vector<64xf32>
    %62 = vector.multi_reduction <add>, %61, %cst_31 [1] : vector<64x64xf32> to vector<64xf32>
    %63 = vector.shape_cast %62 : vector<64xf32> to vector<64x1xf32>
    %64 = vector.broadcast %63 : vector<64x1xf32> to vector<64x64xf32>
    %65 = arith.divf %61, %64 : vector<64x64xf32>
    %66 = arith.truncf %65 : vector<64x64xf32> to vector<64x64xbf16>
    %cst_32 = arith.constant dense<0.000000e+00> : vector<64x16xf32>
    %67 = tpu.matmul %66, %53, %cst_32 {dimension_numbers = #tpu.dot_dimension_numbers<[1], [0], [0], [1], [0, 0, 1, 1], [], []>} : vector<64x64xbf16>, vector<64x16xbf16>, vector<64x16xf32> -> vector<64x16xf32>
    %68 = arith.truncf %67 : vector<64x16xf32> to vector<64x16xbf16>
    %69 = vector.extract_strided_slice %47 {offsets = [0, 0, 0], sizes = [1, 16, 32], strides = [1, 1, 1]} : vector<2x16x32xbf16> to vector<1x16x32xbf16>
    %70 = vector.shape_cast %69 : vector<1x16x32xbf16> to vector<16x32xbf16>
    %cst_33 = arith.constant dense<0.000000e+00> : vector<64x32xf32>
    %71 = tpu.matmul %68, %70, %cst_33 {dimension_numbers = #tpu.dot_dimension_numbers<[1], [0], [0], [1], [0, 0, 1, 1], [], []>} : vector<64x16xbf16>, vector<16x32xbf16>, vector<64x32xf32> -> vector<64x32xf32>
    %72 = vector.extract_strided_slice %45 {offsets = [0, 16], sizes = [64, 16], strides = [1, 1]} : vector<64x96xf32> to vector<64x16xf32>
    %73 = arith.truncf %72 : vector<64x16xf32> to vector<64x16xbf16>
    %74 = vector.extract_strided_slice %45 {offsets = [0, 48], sizes = [64, 16], strides = [1, 1]} : vector<64x96xf32> to vector<64x16xf32>
    %75 = arith.truncf %74 : vector<64x16xf32> to vector<64x16xbf16>
    %76 = vector.extract_strided_slice %45 {offsets = [0, 80], sizes = [64, 16], strides = [1, 1]} : vector<64x96xf32> to vector<64x16xf32>
    %77 = arith.truncf %76 : vector<64x16xf32> to vector<64x16xbf16>
    %cst_34 = arith.constant dense<0.000000e+00> : vector<64x64xf32>
    %78 = tpu.matmul %73, %75, %cst_34 {dimension_numbers = #tpu.dot_dimension_numbers<[1], [1], [0], [0], [0, 0, 1, 0], [], []>} : vector<64x16xbf16>, vector<64x16xbf16>, vector<64x64xf32> -> vector<64x64xf32>
    %cst_35 = arith.constant -1.000000e+04 : f32
    %79 = vector.broadcast %cst_35 : f32 to vector<64x64xf32>
    %80 = arith.select %12, %78, %79 : vector<64x64xi1>, vector<64x64xf32>
    %cst_36 = arith.constant dense<0xFF800000> : vector<64xf32>
    %81 = vector.multi_reduction <maximumf>, %80, %cst_36 [1] : vector<64x64xf32> to vector<64xf32>
    %82 = vector.shape_cast %81 : vector<64xf32> to vector<64x1xf32>
    %83 = vector.broadcast %82 : vector<64x1xf32> to vector<64x64xf32>
    %84 = arith.subf %80, %83 : vector<64x64xf32>
    %85 = math.exp %84 : vector<64x64xf32>
    %cst_37 = arith.constant dense<0.000000e+00> : vector<64xf32>
    %86 = vector.multi_reduction <add>, %85, %cst_37 [1] : vector<64x64xf32> to vector<64xf32>
    %87 = vector.shape_cast %86 : vector<64xf32> to vector<64x1xf32>
    %88 = vector.broadcast %87 : vector<64x1xf32> to vector<64x64xf32>
    %89 = arith.divf %85, %88 : vector<64x64xf32>
    %90 = arith.truncf %89 : vector<64x64xf32> to vector<64x64xbf16>
    %cst_38 = arith.constant dense<0.000000e+00> : vector<64x16xf32>
    %91 = tpu.matmul %90, %77, %cst_38 {dimension_numbers = #tpu.dot_dimension_numbers<[1], [0], [0], [1], [0, 0, 1, 1], [], []>} : vector<64x64xbf16>, vector<64x16xbf16>, vector<64x16xf32> -> vector<64x16xf32>
    %92 = arith.truncf %91 : vector<64x16xf32> to vector<64x16xbf16>
    %93 = vector.extract_strided_slice %47 {offsets = [1, 0, 0], sizes = [1, 16, 32], strides = [1, 1, 1]} : vector<2x16x32xbf16> to vector<1x16x32xbf16>
    %94 = vector.shape_cast %93 : vector<1x16x32xbf16> to vector<16x32xbf16>
    %cst_39 = arith.constant dense<0.000000e+00> : vector<64x32xf32>
    %95 = tpu.matmul %92, %94, %cst_39 {dimension_numbers = #tpu.dot_dimension_numbers<[1], [0], [0], [1], [0, 0, 1, 1], [], []>} : vector<64x16xbf16>, vector<16x32xbf16>, vector<64x32xf32> -> vector<64x32xf32>
    %96 = arith.addf %71, %95 : vector<64x32xf32>
    %c0_40 = arith.constant 0 : index
    %c0_41 = arith.constant 0 : index
    %c0_42 = arith.constant 0 : index
    %97 = vector.load %arg9[%c0_40, %c0_41, %c0_42] : memref<2x1x32xf32, #tpu.memory_space<vmem>>, vector<1x1x32xf32>
    %98 = vector.shape_cast %97 : vector<1x1x32xf32> to vector<1x32xf32>
    %99 = vector.broadcast %98 : vector<1x32xf32> to vector<64x32xf32>
    %100 = arith.addf %96, %99 : vector<64x32xf32>
    %101 = arith.addf %37, %100 : vector<64x32xf32>
    %c0_43 = arith.constant 0 : index
    %c0_44 = arith.constant 0 : index
    %c0_45 = arith.constant 0 : index
    %102 = vector.load %arg10[%c0_43, %c0_44, %c0_45] : memref<2x1x32xf32, #tpu.memory_space<vmem>>, vector<1x1x32xf32>
    %103 = vector.shape_cast %102 : vector<1x1x32xf32> to vector<1x32xf32>
    %c0_46 = arith.constant 0 : index
    %c0_47 = arith.constant 0 : index
    %c0_48 = arith.constant 0 : index
    %104 = vector.load %arg11[%c0_46, %c0_47, %c0_48] : memref<2x1x32xf32, #tpu.memory_space<vmem>>, vector<1x1x32xf32>
    %105 = vector.shape_cast %104 : vector<1x1x32xf32> to vector<1x32xf32>
    %cst_49 = arith.constant dense<0.000000e+00> : vector<64xf32>
    %106 = vector.multi_reduction <add>, %101, %cst_49 [1] : vector<64x32xf32> to vector<64xf32>
    %107 = vector.shape_cast %106 : vector<64xf32> to vector<64x1xf32>
    %cst_50 = arith.constant 3.200000e+01 : f32
    %108 = vector.broadcast %cst_50 : f32 to vector<64x1xf32>
    %109 = arith.divf %107, %108 : vector<64x1xf32>
    %110 = vector.broadcast %109 : vector<64x1xf32> to vector<64x32xf32>
    %111 = arith.subf %101, %110 : vector<64x32xf32>
    %112 = arith.mulf %111, %111 : vector<64x32xf32>
    %cst_51 = arith.constant dense<0.000000e+00> : vector<64xf32>
    %113 = vector.multi_reduction <add>, %112, %cst_51 [1] : vector<64x32xf32> to vector<64xf32>
    %114 = vector.shape_cast %113 : vector<64xf32> to vector<64x1xf32>
    %cst_52 = arith.constant 3.200000e+01 : f32
    %115 = vector.broadcast %cst_52 : f32 to vector<64x1xf32>
    %116 = arith.divf %114, %115 : vector<64x1xf32>
    %117 = vector.broadcast %109 : vector<64x1xf32> to vector<64x32xf32>
    %118 = arith.subf %101, %117 : vector<64x32xf32>
    %cst_53 = arith.constant 9.99999974E-6 : f32
    %119 = vector.broadcast %cst_53 : f32 to vector<64x1xf32>
    %120 = arith.addf %116, %119 : vector<64x1xf32>
    %121 = math.rsqrt %120 : vector<64x1xf32>
    %122 = vector.broadcast %121 : vector<64x1xf32> to vector<64x32xf32>
    %123 = arith.mulf %118, %122 : vector<64x32xf32>
    %124 = vector.broadcast %103 : vector<1x32xf32> to vector<64x32xf32>
    %125 = arith.mulf %123, %124 : vector<64x32xf32>
    %126 = vector.broadcast %105 : vector<1x32xf32> to vector<64x32xf32>
    %127 = arith.addf %125, %126 : vector<64x32xf32>
    %128 = arith.mulf %127, %7 : vector<64x32xf32>
    %c0_54 = arith.constant 0 : index
    %c0_55 = arith.constant 0 : index
    %c0_56 = arith.constant 0 : index
    %c0_57 = arith.constant 0 : index
    %129 = vector.load %arg12[%c0_54, %c0_55, %c0_56, %c0_57] : memref<2x3x32x64xbf16, #tpu.memory_space<vmem>>, vector<1x3x32x64xbf16>
    %130 = vector.shape_cast %129 : vector<1x3x32x64xbf16> to vector<3x32x64xbf16>
    %c0_58 = arith.constant 0 : index
    %c0_59 = arith.constant 0 : index
    %c0_60 = arith.constant 0 : index
    %131 = vector.load %arg13[%c0_58, %c0_59, %c0_60] : memref<2x1x64xf32, #tpu.memory_space<vmem>>, vector<1x1x64xf32>
    %132 = vector.shape_cast %131 : vector<1x1x64xf32> to vector<1x64xf32>
    %cst_61 = arith.constant 0.000000e+00 : f32
    %133 = vector.broadcast %cst_61 : f32 to vector<2x32xf32>
    %134 = vector.extract_strided_slice %128 {offsets = [0, 0], sizes = [62, 32], strides = [1, 1]} : vector<64x32xf32> to vector<62x32xf32>
    %135 = tpu.concatenate %133, %134 in 0 : vector<2x32xf32>, vector<62x32xf32> -> vector<64x32xf32>
    %136 = arith.truncf %135 : vector<64x32xf32> to vector<64x32xbf16>
    %137 = vector.extract_strided_slice %130 {offsets = [0, 0, 0], sizes = [1, 32, 64], strides = [1, 1, 1]} : vector<3x32x64xbf16> to vector<1x32x64xbf16>
    %138 = vector.shape_cast %137 : vector<1x32x64xbf16> to vector<32x64xbf16>
    %cst_62 = arith.constant dense<0.000000e+00> : vector<64x64xf32>
    %139 = tpu.matmul %136, %138, %cst_62 {dimension_numbers = #tpu.dot_dimension_numbers<[1], [0], [0], [1], [0, 0, 1, 1], [], []>} : vector<64x32xbf16>, vector<32x64xbf16>, vector<64x64xf32> -> vector<64x64xf32>
    %cst_63 = arith.constant 0.000000e+00 : f32
    %140 = vector.broadcast %cst_63 : f32 to vector<1x32xf32>
    %141 = vector.extract_strided_slice %128 {offsets = [0, 0], sizes = [63, 32], strides = [1, 1]} : vector<64x32xf32> to vector<63x32xf32>
    %142 = tpu.concatenate %140, %141 in 0 : vector<1x32xf32>, vector<63x32xf32> -> vector<64x32xf32>
    %143 = arith.truncf %142 : vector<64x32xf32> to vector<64x32xbf16>
    %144 = vector.extract_strided_slice %130 {offsets = [1, 0, 0], sizes = [1, 32, 64], strides = [1, 1, 1]} : vector<3x32x64xbf16> to vector<1x32x64xbf16>
    %145 = vector.shape_cast %144 : vector<1x32x64xbf16> to vector<32x64xbf16>
    %cst_64 = arith.constant dense<0.000000e+00> : vector<64x64xf32>
    %146 = tpu.matmul %143, %145, %cst_64 {dimension_numbers = #tpu.dot_dimension_numbers<[1], [0], [0], [1], [0, 0, 1, 1], [], []>} : vector<64x32xbf16>, vector<32x64xbf16>, vector<64x64xf32> -> vector<64x64xf32>
    %147 = arith.addf %139, %146 : vector<64x64xf32>
    %148 = arith.truncf %128 : vector<64x32xf32> to vector<64x32xbf16>
    %149 = vector.extract_strided_slice %130 {offsets = [2, 0, 0], sizes = [1, 32, 64], strides = [1, 1, 1]} : vector<3x32x64xbf16> to vector<1x32x64xbf16>
    %150 = vector.shape_cast %149 : vector<1x32x64xbf16> to vector<32x64xbf16>
    %cst_65 = arith.constant dense<0.000000e+00> : vector<64x64xf32>
    %151 = tpu.matmul %148, %150, %cst_65 {dimension_numbers = #tpu.dot_dimension_numbers<[1], [0], [0], [1], [0, 0, 1, 1], [], []>} : vector<64x32xbf16>, vector<32x64xbf16>, vector<64x64xf32> -> vector<64x64xf32>
    %152 = arith.addf %147, %151 : vector<64x64xf32>
    %153 = vector.broadcast %132 : vector<1x64xf32> to vector<64x64xf32>
    %154 = arith.addf %152, %153 : vector<64x64xf32>
    %cst_66 = arith.constant 0.000000e+00 : f32
    %155 = vector.broadcast %cst_66 : f32 to vector<64x64xf32>
    %156 = arith.maximumf %154, %155 : vector<64x64xf32>
    %157 = arith.mulf %156, %9 : vector<64x64xf32>
    %c0_67 = arith.constant 0 : index
    %c0_68 = arith.constant 0 : index
    %c0_69 = arith.constant 0 : index
    %c0_70 = arith.constant 0 : index
    %158 = vector.load %arg14[%c0_67, %c0_68, %c0_69, %c0_70] : memref<2x3x64x32xbf16, #tpu.memory_space<vmem>>, vector<1x3x64x32xbf16>
    %159 = vector.shape_cast %158 : vector<1x3x64x32xbf16> to vector<3x64x32xbf16>
    %c0_71 = arith.constant 0 : index
    %c0_72 = arith.constant 0 : index
    %c0_73 = arith.constant 0 : index
    %160 = vector.load %arg15[%c0_71, %c0_72, %c0_73] : memref<2x1x32xf32, #tpu.memory_space<vmem>>, vector<1x1x32xf32>
    %161 = vector.shape_cast %160 : vector<1x1x32xf32> to vector<1x32xf32>
    %cst_74 = arith.constant 0.000000e+00 : f32
    %162 = vector.broadcast %cst_74 : f32 to vector<2x64xf32>
    %163 = vector.extract_strided_slice %157 {offsets = [0, 0], sizes = [62, 64], strides = [1, 1]} : vector<64x64xf32> to vector<62x64xf32>
    %164 = tpu.concatenate %162, %163 in 0 : vector<2x64xf32>, vector<62x64xf32> -> vector<64x64xf32>
    %165 = arith.truncf %164 : vector<64x64xf32> to vector<64x64xbf16>
    %166 = vector.extract_strided_slice %159 {offsets = [0, 0, 0], sizes = [1, 64, 32], strides = [1, 1, 1]} : vector<3x64x32xbf16> to vector<1x64x32xbf16>
    %167 = vector.shape_cast %166 : vector<1x64x32xbf16> to vector<64x32xbf16>
    %cst_75 = arith.constant dense<0.000000e+00> : vector<64x32xf32>
    %168 = tpu.matmul %165, %167, %cst_75 {dimension_numbers = #tpu.dot_dimension_numbers<[1], [0], [0], [1], [0, 0, 1, 1], [], []>} : vector<64x64xbf16>, vector<64x32xbf16>, vector<64x32xf32> -> vector<64x32xf32>
    %cst_76 = arith.constant 0.000000e+00 : f32
    %169 = vector.broadcast %cst_76 : f32 to vector<1x64xf32>
    %170 = vector.extract_strided_slice %157 {offsets = [0, 0], sizes = [63, 64], strides = [1, 1]} : vector<64x64xf32> to vector<63x64xf32>
    %171 = tpu.concatenate %169, %170 in 0 : vector<1x64xf32>, vector<63x64xf32> -> vector<64x64xf32>
    %172 = arith.truncf %171 : vector<64x64xf32> to vector<64x64xbf16>
    %173 = vector.extract_strided_slice %159 {offsets = [1, 0, 0], sizes = [1, 64, 32], strides = [1, 1, 1]} : vector<3x64x32xbf16> to vector<1x64x32xbf16>
    %174 = vector.shape_cast %173 : vector<1x64x32xbf16> to vector<64x32xbf16>
    %cst_77 = arith.constant dense<0.000000e+00> : vector<64x32xf32>
    %175 = tpu.matmul %172, %174, %cst_77 {dimension_numbers = #tpu.dot_dimension_numbers<[1], [0], [0], [1], [0, 0, 1, 1], [], []>} : vector<64x64xbf16>, vector<64x32xbf16>, vector<64x32xf32> -> vector<64x32xf32>
    %176 = arith.addf %168, %175 : vector<64x32xf32>
    %177 = arith.truncf %157 : vector<64x64xf32> to vector<64x64xbf16>
    %178 = vector.extract_strided_slice %159 {offsets = [2, 0, 0], sizes = [1, 64, 32], strides = [1, 1, 1]} : vector<3x64x32xbf16> to vector<1x64x32xbf16>
    %179 = vector.shape_cast %178 : vector<1x64x32xbf16> to vector<64x32xbf16>
    %cst_78 = arith.constant dense<0.000000e+00> : vector<64x32xf32>
    %180 = tpu.matmul %177, %179, %cst_78 {dimension_numbers = #tpu.dot_dimension_numbers<[1], [0], [0], [1], [0, 0, 1, 1], [], []>} : vector<64x64xbf16>, vector<64x32xbf16>, vector<64x32xf32> -> vector<64x32xf32>
    %181 = arith.addf %176, %180 : vector<64x32xf32>
    %182 = vector.broadcast %161 : vector<1x32xf32> to vector<64x32xf32>
    %183 = arith.addf %181, %182 : vector<64x32xf32>
    %184 = arith.mulf %183, %7 : vector<64x32xf32>
    %185 = arith.addf %127, %184 : vector<64x32xf32>
    %c0_79 = arith.constant 0 : index
    %c0_80 = arith.constant 0 : index
    %c0_81 = arith.constant 0 : index
    %186 = vector.load %arg16[%c0_79, %c0_80, %c0_81] : memref<2x1x32xf32, #tpu.memory_space<vmem>>, vector<1x1x32xf32>
    %187 = vector.shape_cast %186 : vector<1x1x32xf32> to vector<1x32xf32>
    %c0_82 = arith.constant 0 : index
    %c0_83 = arith.constant 0 : index
    %c0_84 = arith.constant 0 : index
    %188 = vector.load %arg17[%c0_82, %c0_83, %c0_84] : memref<2x1x32xf32, #tpu.memory_space<vmem>>, vector<1x1x32xf32>
    %189 = vector.shape_cast %188 : vector<1x1x32xf32> to vector<1x32xf32>
    %cst_85 = arith.constant dense<0.000000e+00> : vector<64xf32>
    %190 = vector.multi_reduction <add>, %185, %cst_85 [1] : vector<64x32xf32> to vector<64xf32>
    %191 = vector.shape_cast %190 : vector<64xf32> to vector<64x1xf32>
    %cst_86 = arith.constant 3.200000e+01 : f32
    %192 = vector.broadcast %cst_86 : f32 to vector<64x1xf32>
    %193 = arith.divf %191, %192 : vector<64x1xf32>
    %194 = vector.broadcast %193 : vector<64x1xf32> to vector<64x32xf32>
    %195 = arith.subf %185, %194 : vector<64x32xf32>
    %196 = arith.mulf %195, %195 : vector<64x32xf32>
    %cst_87 = arith.constant dense<0.000000e+00> : vector<64xf32>
    %197 = vector.multi_reduction <add>, %196, %cst_87 [1] : vector<64x32xf32> to vector<64xf32>
    %198 = vector.shape_cast %197 : vector<64xf32> to vector<64x1xf32>
    %cst_88 = arith.constant 3.200000e+01 : f32
    %199 = vector.broadcast %cst_88 : f32 to vector<64x1xf32>
    %200 = arith.divf %198, %199 : vector<64x1xf32>
    %201 = vector.broadcast %193 : vector<64x1xf32> to vector<64x32xf32>
    %202 = arith.subf %185, %201 : vector<64x32xf32>
    %cst_89 = arith.constant 9.99999974E-6 : f32
    %203 = vector.broadcast %cst_89 : f32 to vector<64x1xf32>
    %204 = arith.addf %200, %203 : vector<64x1xf32>
    %205 = math.rsqrt %204 : vector<64x1xf32>
    %206 = vector.broadcast %205 : vector<64x1xf32> to vector<64x32xf32>
    %207 = arith.mulf %202, %206 : vector<64x32xf32>
    %208 = vector.broadcast %187 : vector<1x32xf32> to vector<64x32xf32>
    %209 = arith.mulf %207, %208 : vector<64x32xf32>
    %210 = vector.broadcast %189 : vector<1x32xf32> to vector<64x32xf32>
    %211 = arith.addf %209, %210 : vector<64x32xf32>
    %212 = arith.truncf %211 : vector<64x32xf32> to vector<64x32xbf16>
    %c1 = arith.constant 1 : index
    %c0_90 = arith.constant 0 : index
    %c0_91 = arith.constant 0 : index
    %213 = vector.load %arg6[%c1, %c0_90, %c0_91] : memref<2x32x96xbf16, #tpu.memory_space<vmem>>, vector<1x32x96xbf16>
    %214 = vector.shape_cast %213 : vector<1x32x96xbf16> to vector<32x96xbf16>
    %cst_92 = arith.constant dense<0.000000e+00> : vector<64x96xf32>
    %215 = tpu.matmul %212, %214, %cst_92 {dimension_numbers = #tpu.dot_dimension_numbers<[1], [0], [0], [1], [0, 0, 1, 1], [], []>} : vector<64x32xbf16>, vector<32x96xbf16>, vector<64x96xf32> -> vector<64x96xf32>
    %c1_93 = arith.constant 1 : index
    %c0_94 = arith.constant 0 : index
    %c0_95 = arith.constant 0 : index
    %216 = vector.load %arg7[%c1_93, %c0_94, %c0_95] : memref<2x1x96xf32, #tpu.memory_space<vmem>>, vector<1x1x96xf32>
    %217 = vector.shape_cast %216 : vector<1x1x96xf32> to vector<1x96xf32>
    %218 = vector.broadcast %217 : vector<1x96xf32> to vector<64x96xf32>
    %219 = arith.addf %215, %218 : vector<64x96xf32>
    %c1_96 = arith.constant 1 : index
    %c0_97 = arith.constant 0 : index
    %c0_98 = arith.constant 0 : index
    %c0_99 = arith.constant 0 : index
    %220 = vector.load %arg8[%c1_96, %c0_97, %c0_98, %c0_99] : memref<2x2x16x32xbf16, #tpu.memory_space<vmem>>, vector<1x2x16x32xbf16>
    %221 = vector.shape_cast %220 : vector<1x2x16x32xbf16> to vector<2x16x32xbf16>
    %222 = vector.extract_strided_slice %219 {offsets = [0, 0], sizes = [64, 16], strides = [1, 1]} : vector<64x96xf32> to vector<64x16xf32>
    %223 = arith.truncf %222 : vector<64x16xf32> to vector<64x16xbf16>
    %224 = vector.extract_strided_slice %219 {offsets = [0, 32], sizes = [64, 16], strides = [1, 1]} : vector<64x96xf32> to vector<64x16xf32>
    %225 = arith.truncf %224 : vector<64x16xf32> to vector<64x16xbf16>
    %226 = vector.extract_strided_slice %219 {offsets = [0, 64], sizes = [64, 16], strides = [1, 1]} : vector<64x96xf32> to vector<64x16xf32>
    %227 = arith.truncf %226 : vector<64x16xf32> to vector<64x16xbf16>
    %cst_100 = arith.constant dense<0.000000e+00> : vector<64x64xf32>
    %228 = tpu.matmul %223, %225, %cst_100 {dimension_numbers = #tpu.dot_dimension_numbers<[1], [1], [0], [0], [0, 0, 1, 0], [], []>} : vector<64x16xbf16>, vector<64x16xbf16>, vector<64x64xf32> -> vector<64x64xf32>
    %cst_101 = arith.constant -1.000000e+04 : f32
    %229 = vector.broadcast %cst_101 : f32 to vector<64x64xf32>
    %230 = arith.select %12, %228, %229 : vector<64x64xi1>, vector<64x64xf32>
    %cst_102 = arith.constant dense<0xFF800000> : vector<64xf32>
    %231 = vector.multi_reduction <maximumf>, %230, %cst_102 [1] : vector<64x64xf32> to vector<64xf32>
    %232 = vector.shape_cast %231 : vector<64xf32> to vector<64x1xf32>
    %233 = vector.broadcast %232 : vector<64x1xf32> to vector<64x64xf32>
    %234 = arith.subf %230, %233 : vector<64x64xf32>
    %235 = math.exp %234 : vector<64x64xf32>
    %cst_103 = arith.constant dense<0.000000e+00> : vector<64xf32>
    %236 = vector.multi_reduction <add>, %235, %cst_103 [1] : vector<64x64xf32> to vector<64xf32>
    %237 = vector.shape_cast %236 : vector<64xf32> to vector<64x1xf32>
    %238 = vector.broadcast %237 : vector<64x1xf32> to vector<64x64xf32>
    %239 = arith.divf %235, %238 : vector<64x64xf32>
    %240 = arith.truncf %239 : vector<64x64xf32> to vector<64x64xbf16>
    %cst_104 = arith.constant dense<0.000000e+00> : vector<64x16xf32>
    %241 = tpu.matmul %240, %227, %cst_104 {dimension_numbers = #tpu.dot_dimension_numbers<[1], [0], [0], [1], [0, 0, 1, 1], [], []>} : vector<64x64xbf16>, vector<64x16xbf16>, vector<64x16xf32> -> vector<64x16xf32>
    %242 = arith.truncf %241 : vector<64x16xf32> to vector<64x16xbf16>
    %243 = vector.extract_strided_slice %221 {offsets = [0, 0, 0], sizes = [1, 16, 32], strides = [1, 1, 1]} : vector<2x16x32xbf16> to vector<1x16x32xbf16>
    %244 = vector.shape_cast %243 : vector<1x16x32xbf16> to vector<16x32xbf16>
    %cst_105 = arith.constant dense<0.000000e+00> : vector<64x32xf32>
    %245 = tpu.matmul %242, %244, %cst_105 {dimension_numbers = #tpu.dot_dimension_numbers<[1], [0], [0], [1], [0, 0, 1, 1], [], []>} : vector<64x16xbf16>, vector<16x32xbf16>, vector<64x32xf32> -> vector<64x32xf32>
    %246 = vector.extract_strided_slice %219 {offsets = [0, 16], sizes = [64, 16], strides = [1, 1]} : vector<64x96xf32> to vector<64x16xf32>
    %247 = arith.truncf %246 : vector<64x16xf32> to vector<64x16xbf16>
    %248 = vector.extract_strided_slice %219 {offsets = [0, 48], sizes = [64, 16], strides = [1, 1]} : vector<64x96xf32> to vector<64x16xf32>
    %249 = arith.truncf %248 : vector<64x16xf32> to vector<64x16xbf16>
    %250 = vector.extract_strided_slice %219 {offsets = [0, 80], sizes = [64, 16], strides = [1, 1]} : vector<64x96xf32> to vector<64x16xf32>
    %251 = arith.truncf %250 : vector<64x16xf32> to vector<64x16xbf16>
    %cst_106 = arith.constant dense<0.000000e+00> : vector<64x64xf32>
    %252 = tpu.matmul %247, %249, %cst_106 {dimension_numbers = #tpu.dot_dimension_numbers<[1], [1], [0], [0], [0, 0, 1, 0], [], []>} : vector<64x16xbf16>, vector<64x16xbf16>, vector<64x64xf32> -> vector<64x64xf32>
    %cst_107 = arith.constant -1.000000e+04 : f32
    %253 = vector.broadcast %cst_107 : f32 to vector<64x64xf32>
    %254 = arith.select %12, %252, %253 : vector<64x64xi1>, vector<64x64xf32>
    %cst_108 = arith.constant dense<0xFF800000> : vector<64xf32>
    %255 = vector.multi_reduction <maximumf>, %254, %cst_108 [1] : vector<64x64xf32> to vector<64xf32>
    %256 = vector.shape_cast %255 : vector<64xf32> to vector<64x1xf32>
    %257 = vector.broadcast %256 : vector<64x1xf32> to vector<64x64xf32>
    %258 = arith.subf %254, %257 : vector<64x64xf32>
    %259 = math.exp %258 : vector<64x64xf32>
    %cst_109 = arith.constant dense<0.000000e+00> : vector<64xf32>
    %260 = vector.multi_reduction <add>, %259, %cst_109 [1] : vector<64x64xf32> to vector<64xf32>
    %261 = vector.shape_cast %260 : vector<64xf32> to vector<64x1xf32>
    %262 = vector.broadcast %261 : vector<64x1xf32> to vector<64x64xf32>
    %263 = arith.divf %259, %262 : vector<64x64xf32>
    %264 = arith.truncf %263 : vector<64x64xf32> to vector<64x64xbf16>
    %cst_110 = arith.constant dense<0.000000e+00> : vector<64x16xf32>
    %265 = tpu.matmul %264, %251, %cst_110 {dimension_numbers = #tpu.dot_dimension_numbers<[1], [0], [0], [1], [0, 0, 1, 1], [], []>} : vector<64x64xbf16>, vector<64x16xbf16>, vector<64x16xf32> -> vector<64x16xf32>
    %266 = arith.truncf %265 : vector<64x16xf32> to vector<64x16xbf16>
    %267 = vector.extract_strided_slice %221 {offsets = [1, 0, 0], sizes = [1, 16, 32], strides = [1, 1, 1]} : vector<2x16x32xbf16> to vector<1x16x32xbf16>
    %268 = vector.shape_cast %267 : vector<1x16x32xbf16> to vector<16x32xbf16>
    %cst_111 = arith.constant dense<0.000000e+00> : vector<64x32xf32>
    %269 = tpu.matmul %266, %268, %cst_111 {dimension_numbers = #tpu.dot_dimension_numbers<[1], [0], [0], [1], [0, 0, 1, 1], [], []>} : vector<64x16xbf16>, vector<16x32xbf16>, vector<64x32xf32> -> vector<64x32xf32>
    %270 = arith.addf %245, %269 : vector<64x32xf32>
    %c1_112 = arith.constant 1 : index
    %c0_113 = arith.constant 0 : index
    %c0_114 = arith.constant 0 : index
    %271 = vector.load %arg9[%c1_112, %c0_113, %c0_114] : memref<2x1x32xf32, #tpu.memory_space<vmem>>, vector<1x1x32xf32>
    %272 = vector.shape_cast %271 : vector<1x1x32xf32> to vector<1x32xf32>
    %273 = vector.broadcast %272 : vector<1x32xf32> to vector<64x32xf32>
    %274 = arith.addf %270, %273 : vector<64x32xf32>
    %275 = arith.addf %211, %274 : vector<64x32xf32>
    %c1_115 = arith.constant 1 : index
    %c0_116 = arith.constant 0 : index
    %c0_117 = arith.constant 0 : index
    %276 = vector.load %arg10[%c1_115, %c0_116, %c0_117] : memref<2x1x32xf32, #tpu.memory_space<vmem>>, vector<1x1x32xf32>
    %277 = vector.shape_cast %276 : vector<1x1x32xf32> to vector<1x32xf32>
    %c1_118 = arith.constant 1 : index
    %c0_119 = arith.constant 0 : index
    %c0_120 = arith.constant 0 : index
    %278 = vector.load %arg11[%c1_118, %c0_119, %c0_120] : memref<2x1x32xf32, #tpu.memory_space<vmem>>, vector<1x1x32xf32>
    %279 = vector.shape_cast %278 : vector<1x1x32xf32> to vector<1x32xf32>
    %cst_121 = arith.constant dense<0.000000e+00> : vector<64xf32>
    %280 = vector.multi_reduction <add>, %275, %cst_121 [1] : vector<64x32xf32> to vector<64xf32>
    %281 = vector.shape_cast %280 : vector<64xf32> to vector<64x1xf32>
    %cst_122 = arith.constant 3.200000e+01 : f32
    %282 = vector.broadcast %cst_122 : f32 to vector<64x1xf32>
    %283 = arith.divf %281, %282 : vector<64x1xf32>
    %284 = vector.broadcast %283 : vector<64x1xf32> to vector<64x32xf32>
    %285 = arith.subf %275, %284 : vector<64x32xf32>
    %286 = arith.mulf %285, %285 : vector<64x32xf32>
    %cst_123 = arith.constant dense<0.000000e+00> : vector<64xf32>
    %287 = vector.multi_reduction <add>, %286, %cst_123 [1] : vector<64x32xf32> to vector<64xf32>
    %288 = vector.shape_cast %287 : vector<64xf32> to vector<64x1xf32>
    %cst_124 = arith.constant 3.200000e+01 : f32
    %289 = vector.broadcast %cst_124 : f32 to vector<64x1xf32>
    %290 = arith.divf %288, %289 : vector<64x1xf32>
    %291 = vector.broadcast %283 : vector<64x1xf32> to vector<64x32xf32>
    %292 = arith.subf %275, %291 : vector<64x32xf32>
    %cst_125 = arith.constant 9.99999974E-6 : f32
    %293 = vector.broadcast %cst_125 : f32 to vector<64x1xf32>
    %294 = arith.addf %290, %293 : vector<64x1xf32>
    %295 = math.rsqrt %294 : vector<64x1xf32>
    %296 = vector.broadcast %295 : vector<64x1xf32> to vector<64x32xf32>
    %297 = arith.mulf %292, %296 : vector<64x32xf32>
    %298 = vector.broadcast %277 : vector<1x32xf32> to vector<64x32xf32>
    %299 = arith.mulf %297, %298 : vector<64x32xf32>
    %300 = vector.broadcast %279 : vector<1x32xf32> to vector<64x32xf32>
    %301 = arith.addf %299, %300 : vector<64x32xf32>
    %302 = arith.mulf %301, %7 : vector<64x32xf32>
    %c1_126 = arith.constant 1 : index
    %c0_127 = arith.constant 0 : index
    %c0_128 = arith.constant 0 : index
    %c0_129 = arith.constant 0 : index
    %303 = vector.load %arg12[%c1_126, %c0_127, %c0_128, %c0_129] : memref<2x3x32x64xbf16, #tpu.memory_space<vmem>>, vector<1x3x32x64xbf16>
    %304 = vector.shape_cast %303 : vector<1x3x32x64xbf16> to vector<3x32x64xbf16>
    %c1_130 = arith.constant 1 : index
    %c0_131 = arith.constant 0 : index
    %c0_132 = arith.constant 0 : index
    %305 = vector.load %arg13[%c1_130, %c0_131, %c0_132] : memref<2x1x64xf32, #tpu.memory_space<vmem>>, vector<1x1x64xf32>
    %306 = vector.shape_cast %305 : vector<1x1x64xf32> to vector<1x64xf32>
    %cst_133 = arith.constant 0.000000e+00 : f32
    %307 = vector.broadcast %cst_133 : f32 to vector<2x32xf32>
    %308 = vector.extract_strided_slice %302 {offsets = [0, 0], sizes = [62, 32], strides = [1, 1]} : vector<64x32xf32> to vector<62x32xf32>
    %309 = tpu.concatenate %307, %308 in 0 : vector<2x32xf32>, vector<62x32xf32> -> vector<64x32xf32>
    %310 = arith.truncf %309 : vector<64x32xf32> to vector<64x32xbf16>
    %311 = vector.extract_strided_slice %304 {offsets = [0, 0, 0], sizes = [1, 32, 64], strides = [1, 1, 1]} : vector<3x32x64xbf16> to vector<1x32x64xbf16>
    %312 = vector.shape_cast %311 : vector<1x32x64xbf16> to vector<32x64xbf16>
    %cst_134 = arith.constant dense<0.000000e+00> : vector<64x64xf32>
    %313 = tpu.matmul %310, %312, %cst_134 {dimension_numbers = #tpu.dot_dimension_numbers<[1], [0], [0], [1], [0, 0, 1, 1], [], []>} : vector<64x32xbf16>, vector<32x64xbf16>, vector<64x64xf32> -> vector<64x64xf32>
    %cst_135 = arith.constant 0.000000e+00 : f32
    %314 = vector.broadcast %cst_135 : f32 to vector<1x32xf32>
    %315 = vector.extract_strided_slice %302 {offsets = [0, 0], sizes = [63, 32], strides = [1, 1]} : vector<64x32xf32> to vector<63x32xf32>
    %316 = tpu.concatenate %314, %315 in 0 : vector<1x32xf32>, vector<63x32xf32> -> vector<64x32xf32>
    %317 = arith.truncf %316 : vector<64x32xf32> to vector<64x32xbf16>
    %318 = vector.extract_strided_slice %304 {offsets = [1, 0, 0], sizes = [1, 32, 64], strides = [1, 1, 1]} : vector<3x32x64xbf16> to vector<1x32x64xbf16>
    %319 = vector.shape_cast %318 : vector<1x32x64xbf16> to vector<32x64xbf16>
    %cst_136 = arith.constant dense<0.000000e+00> : vector<64x64xf32>
    %320 = tpu.matmul %317, %319, %cst_136 {dimension_numbers = #tpu.dot_dimension_numbers<[1], [0], [0], [1], [0, 0, 1, 1], [], []>} : vector<64x32xbf16>, vector<32x64xbf16>, vector<64x64xf32> -> vector<64x64xf32>
    %321 = arith.addf %313, %320 : vector<64x64xf32>
    %322 = arith.truncf %302 : vector<64x32xf32> to vector<64x32xbf16>
    %323 = vector.extract_strided_slice %304 {offsets = [2, 0, 0], sizes = [1, 32, 64], strides = [1, 1, 1]} : vector<3x32x64xbf16> to vector<1x32x64xbf16>
    %324 = vector.shape_cast %323 : vector<1x32x64xbf16> to vector<32x64xbf16>
    %cst_137 = arith.constant dense<0.000000e+00> : vector<64x64xf32>
    %325 = tpu.matmul %322, %324, %cst_137 {dimension_numbers = #tpu.dot_dimension_numbers<[1], [0], [0], [1], [0, 0, 1, 1], [], []>} : vector<64x32xbf16>, vector<32x64xbf16>, vector<64x64xf32> -> vector<64x64xf32>
    %326 = arith.addf %321, %325 : vector<64x64xf32>
    %327 = vector.broadcast %306 : vector<1x64xf32> to vector<64x64xf32>
    %328 = arith.addf %326, %327 : vector<64x64xf32>
    %cst_138 = arith.constant 0.000000e+00 : f32
    %329 = vector.broadcast %cst_138 : f32 to vector<64x64xf32>
    %330 = arith.maximumf %328, %329 : vector<64x64xf32>
    %331 = arith.mulf %330, %9 : vector<64x64xf32>
    %c1_139 = arith.constant 1 : index
    %c0_140 = arith.constant 0 : index
    %c0_141 = arith.constant 0 : index
    %c0_142 = arith.constant 0 : index
    %332 = vector.load %arg14[%c1_139, %c0_140, %c0_141, %c0_142] : memref<2x3x64x32xbf16, #tpu.memory_space<vmem>>, vector<1x3x64x32xbf16>
    %333 = vector.shape_cast %332 : vector<1x3x64x32xbf16> to vector<3x64x32xbf16>
    %c1_143 = arith.constant 1 : index
    %c0_144 = arith.constant 0 : index
    %c0_145 = arith.constant 0 : index
    %334 = vector.load %arg15[%c1_143, %c0_144, %c0_145] : memref<2x1x32xf32, #tpu.memory_space<vmem>>, vector<1x1x32xf32>
    %335 = vector.shape_cast %334 : vector<1x1x32xf32> to vector<1x32xf32>
    %cst_146 = arith.constant 0.000000e+00 : f32
    %336 = vector.broadcast %cst_146 : f32 to vector<2x64xf32>
    %337 = vector.extract_strided_slice %331 {offsets = [0, 0], sizes = [62, 64], strides = [1, 1]} : vector<64x64xf32> to vector<62x64xf32>
    %338 = tpu.concatenate %336, %337 in 0 : vector<2x64xf32>, vector<62x64xf32> -> vector<64x64xf32>
    %339 = arith.truncf %338 : vector<64x64xf32> to vector<64x64xbf16>
    %340 = vector.extract_strided_slice %333 {offsets = [0, 0, 0], sizes = [1, 64, 32], strides = [1, 1, 1]} : vector<3x64x32xbf16> to vector<1x64x32xbf16>
    %341 = vector.shape_cast %340 : vector<1x64x32xbf16> to vector<64x32xbf16>
    %cst_147 = arith.constant dense<0.000000e+00> : vector<64x32xf32>
    %342 = tpu.matmul %339, %341, %cst_147 {dimension_numbers = #tpu.dot_dimension_numbers<[1], [0], [0], [1], [0, 0, 1, 1], [], []>} : vector<64x64xbf16>, vector<64x32xbf16>, vector<64x32xf32> -> vector<64x32xf32>
    %cst_148 = arith.constant 0.000000e+00 : f32
    %343 = vector.broadcast %cst_148 : f32 to vector<1x64xf32>
    %344 = vector.extract_strided_slice %331 {offsets = [0, 0], sizes = [63, 64], strides = [1, 1]} : vector<64x64xf32> to vector<63x64xf32>
    %345 = tpu.concatenate %343, %344 in 0 : vector<1x64xf32>, vector<63x64xf32> -> vector<64x64xf32>
    %346 = arith.truncf %345 : vector<64x64xf32> to vector<64x64xbf16>
    %347 = vector.extract_strided_slice %333 {offsets = [1, 0, 0], sizes = [1, 64, 32], strides = [1, 1, 1]} : vector<3x64x32xbf16> to vector<1x64x32xbf16>
    %348 = vector.shape_cast %347 : vector<1x64x32xbf16> to vector<64x32xbf16>
    %cst_149 = arith.constant dense<0.000000e+00> : vector<64x32xf32>
    %349 = tpu.matmul %346, %348, %cst_149 {dimension_numbers = #tpu.dot_dimension_numbers<[1], [0], [0], [1], [0, 0, 1, 1], [], []>} : vector<64x64xbf16>, vector<64x32xbf16>, vector<64x32xf32> -> vector<64x32xf32>
    %350 = arith.addf %342, %349 : vector<64x32xf32>
    %351 = arith.truncf %331 : vector<64x64xf32> to vector<64x64xbf16>
    %352 = vector.extract_strided_slice %333 {offsets = [2, 0, 0], sizes = [1, 64, 32], strides = [1, 1, 1]} : vector<3x64x32xbf16> to vector<1x64x32xbf16>
    %353 = vector.shape_cast %352 : vector<1x64x32xbf16> to vector<64x32xbf16>
    %cst_150 = arith.constant dense<0.000000e+00> : vector<64x32xf32>
    %354 = tpu.matmul %351, %353, %cst_150 {dimension_numbers = #tpu.dot_dimension_numbers<[1], [0], [0], [1], [0, 0, 1, 1], [], []>} : vector<64x64xbf16>, vector<64x32xbf16>, vector<64x32xf32> -> vector<64x32xf32>
    %355 = arith.addf %350, %354 : vector<64x32xf32>
    %356 = vector.broadcast %335 : vector<1x32xf32> to vector<64x32xf32>
    %357 = arith.addf %355, %356 : vector<64x32xf32>
    %358 = arith.mulf %357, %7 : vector<64x32xf32>
    %359 = arith.addf %301, %358 : vector<64x32xf32>
    %c1_151 = arith.constant 1 : index
    %c0_152 = arith.constant 0 : index
    %c0_153 = arith.constant 0 : index
    %360 = vector.load %arg16[%c1_151, %c0_152, %c0_153] : memref<2x1x32xf32, #tpu.memory_space<vmem>>, vector<1x1x32xf32>
    %361 = vector.shape_cast %360 : vector<1x1x32xf32> to vector<1x32xf32>
    %c1_154 = arith.constant 1 : index
    %c0_155 = arith.constant 0 : index
    %c0_156 = arith.constant 0 : index
    %362 = vector.load %arg17[%c1_154, %c0_155, %c0_156] : memref<2x1x32xf32, #tpu.memory_space<vmem>>, vector<1x1x32xf32>
    %363 = vector.shape_cast %362 : vector<1x1x32xf32> to vector<1x32xf32>
    %cst_157 = arith.constant dense<0.000000e+00> : vector<64xf32>
    %364 = vector.multi_reduction <add>, %359, %cst_157 [1] : vector<64x32xf32> to vector<64xf32>
    %365 = vector.shape_cast %364 : vector<64xf32> to vector<64x1xf32>
    %cst_158 = arith.constant 3.200000e+01 : f32
    %366 = vector.broadcast %cst_158 : f32 to vector<64x1xf32>
    %367 = arith.divf %365, %366 : vector<64x1xf32>
    %368 = vector.broadcast %367 : vector<64x1xf32> to vector<64x32xf32>
    %369 = arith.subf %359, %368 : vector<64x32xf32>
    %370 = arith.mulf %369, %369 : vector<64x32xf32>
    %cst_159 = arith.constant dense<0.000000e+00> : vector<64xf32>
    %371 = vector.multi_reduction <add>, %370, %cst_159 [1] : vector<64x32xf32> to vector<64xf32>
    %372 = vector.shape_cast %371 : vector<64xf32> to vector<64x1xf32>
    %cst_160 = arith.constant 3.200000e+01 : f32
    %373 = vector.broadcast %cst_160 : f32 to vector<64x1xf32>
    %374 = arith.divf %372, %373 : vector<64x1xf32>
    %375 = vector.broadcast %367 : vector<64x1xf32> to vector<64x32xf32>
    %376 = arith.subf %359, %375 : vector<64x32xf32>
    %cst_161 = arith.constant 9.99999974E-6 : f32
    %377 = vector.broadcast %cst_161 : f32 to vector<64x1xf32>
    %378 = arith.addf %374, %377 : vector<64x1xf32>
    %379 = math.rsqrt %378 : vector<64x1xf32>
    %380 = vector.broadcast %379 : vector<64x1xf32> to vector<64x32xf32>
    %381 = arith.mulf %376, %380 : vector<64x32xf32>
    %382 = vector.broadcast %361 : vector<1x32xf32> to vector<64x32xf32>
    %383 = arith.mulf %381, %382 : vector<64x32xf32>
    %384 = vector.broadcast %363 : vector<1x32xf32> to vector<64x32xf32>
    %385 = arith.addf %383, %384 : vector<64x32xf32>
    %386 = arith.mulf %385, %7 : vector<64x32xf32>
    %c0_162 = arith.constant 0 : index
    %c0_163 = arith.constant 0 : index
    %387 = vector.load %arg18[%c0_162, %c0_163] : memref<1x32xbf16, #tpu.memory_space<vmem>>, vector<1x32xbf16>
    %388 = arith.truncf %386 : vector<64x32xf32> to vector<64x32xbf16>
    "tpu.trace_start"() <{level = 10 : i32, message = "oh,th->ot"}> : () -> ()
    %cst_164 = arith.constant dense<0.000000e+00> : vector<1x64xf32>
    %389 = tpu.matmul %387, %388, %cst_164 {dimension_numbers = #tpu.dot_dimension_numbers<[1], [1], [0], [0], [0, 0, 1, 0], [], []>} : vector<1x32xbf16>, vector<64x32xbf16>, vector<1x64xf32> -> vector<1x64xf32>
    "tpu.trace_stop"() : () -> ()
    %c0_165 = arith.constant 0 : index
    %c0_166 = arith.constant 0 : index
    %390 = vector.load %arg19[%c0_165, %c0_166] : memref<1x1xf32, #tpu.memory_space<vmem>>, vector<1x1xf32>
    %391 = vector.broadcast %390 : vector<1x1xf32> to vector<1x64xf32>
    %392 = arith.addf %389, %391 : vector<1x64xf32>
    %393 = arith.mulf %392, %5 : vector<1x64xf32>
    %c0_167 = arith.constant 0 : index
    %c0_168 = arith.constant 0 : index
    %c0_169 = arith.constant 0 : index
    %394 = vector.load %arg20[%c0_167, %c0_168, %c0_169] : memref<1x1x64xf32, #tpu.memory_space<vmem>>, vector<1x1x64xf32>
    %395 = vector.shape_cast %394 : vector<1x1x64xf32> to vector<1x64xf32>
    %396 = vector.shape_cast %393 : vector<1x64xf32> to vector<1x1x64xf32>
    tpu.vector_store %arg20[%c0_167, %c0_168, %c0_169], %396 {strides = array<i32>} : memref<1x1x64xf32, #tpu.memory_space<vmem>>, vector<1x1x64xf32>,
    return
  }
  func.func @transform_0(%arg0: i32) -> (i32, i32, i32) {
    %c0_i32 = arith.constant 0 : i32
    %c0_i32_0 = arith.constant 0 : i32
    %c0_i32_1 = arith.constant 0 : i32
    return %arg0, %c0_i32, %c0_i32_0 : i32, i32, i32
  }
  func.func @transform_1(%arg0: i32) -> (i32, i32, i32) {
    %c0_i32 = arith.constant 0 : i32
    %c0_i32_0 = arith.constant 0 : i32
    %c0_i32_1 = arith.constant 0 : i32
    return %arg0, %c0_i32, %c0_i32_0 : i32, i32, i32
  }
  func.func @transform_2(%arg0: i32) -> (i32, i32, i32) {
    %c0_i32 = arith.constant 0 : i32
    %c0_i32_0 = arith.constant 0 : i32
    %c0_i32_1 = arith.constant 0 : i32
    return %arg0, %c0_i32, %c0_i32_0 : i32, i32, i32
  }
  func.func @transform_3(%arg0: i32) -> (i32, i32, i32) {
    %c0_i32 = arith.constant 0 : i32
    %c0_i32_0 = arith.constant 0 : i32
    %c0_i32_1 = arith.constant 0 : i32
    %c0_i32_2 = arith.constant 0 : i32
    return %c0_i32, %c0_i32_0, %c0_i32_1 : i32, i32, i32
  }
  func.func @transform_4(%arg0: i32) -> (i32, i32) {
    %c0_i32 = arith.constant 0 : i32
    %c0_i32_0 = arith.constant 0 : i32
    %c0_i32_1 = arith.constant 0 : i32
    return %c0_i32, %c0_i32_0 : i32, i32
  }
  func.func @transform_5(%arg0: i32) -> (i32, i32, i32) {
    %c0_i32 = arith.constant 0 : i32
    %c0_i32_0 = arith.constant 0 : i32
    %c0_i32_1 = arith.constant 0 : i32
    %c0_i32_2 = arith.constant 0 : i32
    return %c0_i32, %c0_i32_0, %c0_i32_1 : i32, i32, i32
  }
  func.func @transform_6(%arg0: i32) -> (i32, i32, i32) {
    %c0_i32 = arith.constant 0 : i32
    %c0_i32_0 = arith.constant 0 : i32
    %c0_i32_1 = arith.constant 0 : i32
    %c0_i32_2 = arith.constant 0 : i32
    return %c0_i32, %c0_i32_0, %c0_i32_1 : i32, i32, i32
  }
  func.func @transform_7(%arg0: i32) -> (i32, i32, i32, i32) {
    %c0_i32 = arith.constant 0 : i32
    %c0_i32_0 = arith.constant 0 : i32
    %c0_i32_1 = arith.constant 0 : i32
    %c0_i32_2 = arith.constant 0 : i32
    %c0_i32_3 = arith.constant 0 : i32
    return %c0_i32, %c0_i32_0, %c0_i32_1, %c0_i32_2 : i32, i32, i32, i32
  }
  func.func @transform_8(%arg0: i32) -> (i32, i32, i32) {
    %c0_i32 = arith.constant 0 : i32
    %c0_i32_0 = arith.constant 0 : i32
    %c0_i32_1 = arith.constant 0 : i32
    %c0_i32_2 = arith.constant 0 : i32
    return %c0_i32, %c0_i32_0, %c0_i32_1 : i32, i32, i32
  }
  func.func @transform_9(%arg0: i32) -> (i32, i32, i32) {
    %c0_i32 = arith.constant 0 : i32
    %c0_i32_0 = arith.constant 0 : i32
    %c0_i32_1 = arith.constant 0 : i32
    %c0_i32_2 = arith.constant 0 : i32
    return %c0_i32, %c0_i32_0, %c0_i32_1 : i32, i32, i32
  }
  func.func @transform_10(%arg0: i32) -> (i32, i32, i32) {
    %c0_i32 = arith.constant 0 : i32
    %c0_i32_0 = arith.constant 0 : i32
    %c0_i32_1 = arith.constant 0 : i32
    %c0_i32_2 = arith.constant 0 : i32
    return %c0_i32, %c0_i32_0, %c0_i32_1 : i32, i32, i32
  }
  func.func @transform_11(%arg0: i32) -> (i32, i32, i32, i32) {
    %c0_i32 = arith.constant 0 : i32
    %c0_i32_0 = arith.constant 0 : i32
    %c0_i32_1 = arith.constant 0 : i32
    %c0_i32_2 = arith.constant 0 : i32
    %c0_i32_3 = arith.constant 0 : i32
    return %c0_i32, %c0_i32_0, %c0_i32_1, %c0_i32_2 : i32, i32, i32, i32
  }
  func.func @transform_12(%arg0: i32) -> (i32, i32, i32) {
    %c0_i32 = arith.constant 0 : i32
    %c0_i32_0 = arith.constant 0 : i32
    %c0_i32_1 = arith.constant 0 : i32
    %c0_i32_2 = arith.constant 0 : i32
    return %c0_i32, %c0_i32_0, %c0_i32_1 : i32, i32, i32
  }
  func.func @transform_13(%arg0: i32) -> (i32, i32, i32, i32) {
    %c0_i32 = arith.constant 0 : i32
    %c0_i32_0 = arith.constant 0 : i32
    %c0_i32_1 = arith.constant 0 : i32
    %c0_i32_2 = arith.constant 0 : i32
    %c0_i32_3 = arith.constant 0 : i32
    return %c0_i32, %c0_i32_0, %c0_i32_1, %c0_i32_2 : i32, i32, i32, i32
  }
  func.func @transform_14(%arg0: i32) -> (i32, i32, i32) {
    %c0_i32 = arith.constant 0 : i32
    %c0_i32_0 = arith.constant 0 : i32
    %c0_i32_1 = arith.constant 0 : i32
    %c0_i32_2 = arith.constant 0 : i32
    return %c0_i32, %c0_i32_0, %c0_i32_1 : i32, i32, i32
  }
  func.func @transform_15(%arg0: i32) -> (i32, i32, i32) {
    %c0_i32 = arith.constant 0 : i32
    %c0_i32_0 = arith.constant 0 : i32
    %c0_i32_1 = arith.constant 0 : i32
    %c0_i32_2 = arith.constant 0 : i32
    return %c0_i32, %c0_i32_0, %c0_i32_1 : i32, i32, i32
  }
  func.func @transform_16(%arg0: i32) -> (i32, i32, i32) {
    %c0_i32 = arith.constant 0 : i32
    %c0_i32_0 = arith.constant 0 : i32
    %c0_i32_1 = arith.constant 0 : i32
    %c0_i32_2 = arith.constant 0 : i32
    return %c0_i32, %c0_i32_0, %c0_i32_1 : i32, i32, i32
  }
  func.func @transform_17(%arg0: i32) -> (i32, i32) {
    %c0_i32 = arith.constant 0 : i32
    %c0_i32_0 = arith.constant 0 : i32
    %c0_i32_1 = arith.constant 0 : i32
    return %c0_i32, %c0_i32_0 : i32, i32
  }
  func.func @transform_18(%arg0: i32) -> (i32, i32) {
    %c0_i32 = arith.constant 0 : i32
    %c0_i32_0 = arith.constant 0 : i32
    %c0_i32_1 = arith.constant 0 : i32
    return %c0_i32, %c0_i32_0 : i32, i32
  }
  func.func @transform_19(%arg0: i32) -> (i32, i32, i32) {
    %c0_i32 = arith.constant 0 : i32
    %c0_i32_0 = arith.constant 0 : i32
    %c0_i32_1 = arith.constant 0 : i32
    return %arg0, %c0_i32, %c0_i32_0 : i32, i32, i32
  }
}

</mosaic_0001>

<llo_original>
// kernel: tpu_custom_call.1
$region0: #{tpu_custom_call.1}
  #allocation0 [shape = 'u32[]', space=smem, size = 0x4, offset = 0x4, fixed_abs, tag = 'smem constant byte address 0x4 - core index']
  #allocation1 [shape = 'u32[72,128]{1,0:T(1,128)}', space=vmem, size = 0x9000, scoped, tag = 'internal scratch']
  #allocation2 [shape = 'f32[1,1]{1,0:T(1,128)S(1)}', space=vmem, size = 0x200, scoped, tag = 'scoped memory for tpu_custom_call.1']
  %s0 = inlined_call_operand.vmem [shape: f32[2,64,32], index: 0, kind: input, shape index: {}]
  %s1 = inlined_call_operand.vmem [shape: f32[2,64,1], index: 1, kind: input, shape index: {}]
  %s2 = inlined_call_operand.vmem [shape: f32[2,1,64], index: 2, kind: input, shape index: {}]
  %s3 = inlined_call_operand.vmem [shape: bf16[3,32,32], index: 3, kind: input, shape index: {}]
  %s4 = inlined_call_operand.vmem [shape: f32[1,32], index: 4, kind: input, shape index: {}]
  %s5 = inlined_call_operand.vmem [shape: bf16[2,32,96], index: 5, kind: input, shape index: {}]
  %s6 = inlined_call_operand.vmem [shape: f32[2,1,96], index: 6, kind: input, shape index: {}]
  %s7 = inlined_call_operand.vmem [shape: bf16[2,2,16,32], index: 7, kind: input, shape index: {}]
  %s8 = inlined_call_operand.vmem [shape: f32[2,1,32], index: 8, kind: input, shape index: {}]
  %s9 = inlined_call_operand.vmem [shape: f32[2,1,32], index: 9, kind: input, shape index: {}]
  %s10 = inlined_call_operand.vmem [shape: f32[2,1,32], index: 10, kind: input, shape index: {}]
  %s11 = inlined_call_operand.vmem [shape: bf16[2,3,32,64], index: 11, kind: input, shape index: {}]
  %s12 = inlined_call_operand.vmem [shape: f32[2,1,64], index: 12, kind: input, shape index: {}]
  %s13 = inlined_call_operand.vmem [shape: bf16[2,3,64,32], index: 13, kind: input, shape index: {}]
  %s14 = inlined_call_operand.vmem [shape: f32[2,1,32], index: 14, kind: input, shape index: {}]
  %s15 = inlined_call_operand.vmem [shape: f32[2,1,32], index: 15, kind: input, shape index: {}]
  %s16 = inlined_call_operand.vmem [shape: f32[2,1,32], index: 16, kind: input, shape index: {}]
  %s17 = inlined_call_operand.vmem [shape: bf16[1,32], index: 17, kind: input, shape index: {}]
  %s18 = inlined_call_operand.<no memory space> [shape: f32[1,1], index: 18, kind: input, shape index: {}]
  %s19 = inlined_call_operand.hbm [shape: f32[2,1,64], index: 19, kind: output, shape index: {}]
  %s20 = sld [smem:[#allocation0]]
  $region109: #{tpu_custom_call.1} parent=0
    _
  %s22 = ssub.s32 1, %s20
  %s23 = scalar_select 0, %s22, %s20
  %v24 = vstv %s18
  %25 = vst [vmem:[#allocation2] sm:$0x1] %v24
  $region1: #{tpu_custom_call.1} parent=0
    #allocation3 [shape = 'u8[1024]{0}', space=vmem, size = 0x400, scoped, tag = 'output window, operand 0']
    #allocation4 [shape = 's32[2]{0}', space=sflag, size = 0x8, scoped, tag = 'scoped memory for tpu_custom_call.1']
    %26 = vsyncpa [#allocation4], 0
    %s27 = scalar_lea.sflag [#allocation4], 1
    %28 = vsyncpa %s27, 0
    loop: start=0, step=1, limit=4
    $region2: #{tpu_custom_call.1} parent=1 // loop_pre_header
      _
    $region3: #{tpu_custom_call.1} parent=1 // loop_header
      %s30 = sphi 0, %s34
      %p31 = scmp.ge.s32.totalorder %s30, 4
      %s40 = sphi 0, %s42
      %s43 = sphi 0, %s40
      %s44 = sphi 0, %s43
      %s60 = sphi 0, %s44
      %s66 = sphi 0, %s68
      %s69 = sphi 0, %s66
      %s70 = sphi 0, %s69
      %s86 = sphi 0, %s70
      %s92 = sphi 0, %s94
      %s95 = sphi 0, %s92
      %s96 = sphi 0, %s95
      %s112 = sphi 0, %s96
      %s116 = sphi 0, %s116
      %s118 = sphi 0, %s116
      %s119 = sphi 0, %s118
      %s133 = sphi 0, %s119
      %s137 = sphi 0, %s137
      %s139 = sphi 0, %s137
      %s140 = sphi 0, %s139
      %s154 = sphi 0, %s140
      %s158 = sphi 0, %s158
      %s160 = sphi 0, %s158
      %s161 = sphi 0, %s160
      %s175 = sphi 0, %s161
      %s179 = sphi 0, %s179
      %s181 = sphi 0, %s179
      %s182 = sphi 0, %s181
      %s196 = sphi 0, %s182
      %s200 = sphi 0, %s200
      %s202 = sphi 0, %s200
      %s203 = sphi 0, %s202
      %s217 = sphi 0, %s203
      %s221 = sphi 0, %s221
      %s223 = sphi 0, %s221
      %s224 = sphi 0, %s223
      %s238 = sphi 0, %s224
      %s242 = sphi 0, %s242
      %s244 = sphi 0, %s242
      %s245 = sphi 0, %s244
      %s259 = sphi 0, %s245
      %s263 = sphi 0, %s263
      %s265 = sphi 0, %s263
      %s266 = sphi 0, %s265
      %s280 = sphi 0, %s266
      %s284 = sphi 0, %s284
      %s286 = sphi 0, %s284
      %s287 = sphi 0, %s286
      %s301 = sphi 0, %s287
      %s305 = sphi 0, %s305
      %s307 = sphi 0, %s305
      %s308 = sphi 0, %s307
      %s322 = sphi 0, %s308
      %s326 = sphi 0, %s326
      %s328 = sphi 0, %s326
      %s329 = sphi 0, %s328
      %s343 = sphi 0, %s329
      %s347 = sphi 0, %s347
      %s349 = sphi 0, %s347
      %s350 = sphi 0, %s349
      %s364 = sphi 0, %s350
      %s368 = sphi 0, %s368
      %s370 = sphi 0, %s368
      %s371 = sphi 0, %s370
      %s385 = sphi 0, %s371
      %s389 = sphi 0, %s389
      %s391 = sphi 0, %s389
      %s392 = sphi 0, %s391
      %s406 = sphi 0, %s392
      %s410 = sphi 0, %s410
      %s412 = sphi 0, %s410
      %s413 = sphi 0, %s412
      %s427 = sphi 0, %s413
      %s431 = sphi 0, %s431
      %s433 = sphi 0, %s431
      %s434 = sphi 0, %s433
      %s448 = sphi 0, %s434
      %s454 = sphi 0, %s456
      %s457 = sphi 0, %s454
      %s458 = sphi 0, %s457
      %s474 = sphi 0, %s458
    $region4: #{tpu_custom_call.1} parent=1 // loop_header_branch
      %33 = sbr.rel (%p31) target = $region8
    $region5: #{tpu_custom_call.1} parent=1 // loop_body
      %s35 = ssub.s32 %s30, 1
      %s36 = ssub.s32 %s30, 2
      %s37 = sadd.s32 %s30, 1
      %s38 = ssub.s32 %s30, %s37
      %p39 = scmp.eq.s32.totalorder %s38, 0
      %s41 = sadd.s32 %s40, 1
      %s42 = scalar_select %p39, %s40, %s41
      %p45 = pneg %p39
      %p46 = scmp.eq.s32.totalorder %s30, 1
      %p47 = por %p45, %p46
      %p48 = scmp.ne.s32.totalorder %s40, %s43
      %p49 = scmp.eq.s32.totalorder %s30, 0
      %p50 = por %p48, %p49
      %p51 = scmp.ne.s32.totalorder %s40, %s43
      %p52 = scmp.eq.s32.totalorder %s35, 1
      %p53 = por %p51, %p52
      %p54 = scmp.ne.s32.totalorder %s43, %s44
      %p55 = scmp.eq.s32.totalorder %s35, 0
      %p56 = por %p54, %p55
      %p57 = scmp.ne.s32.totalorder %s43, %s44
      %p58 = scmp.eq.s32.totalorder %s36, 1
      %p59 = por %p57, %p58
      %p61 = scmp.ne.s32.totalorder %s44, %s60
      %p62 = scmp.eq.s32.totalorder %s36, 0
      %p63 = por %p61, %p62
      %s64 = ssub.s32 %s30, %s37
      %p65 = scmp.eq.s32.totalorder %s64, 0
      %s67 = sadd.s32 %s66, 1
      %s68 = scalar_select %p65, %s66, %s67
      %p71 = pneg %p65
      %p72 = scmp.eq.s32.totalorder %s30, 1
      %p73 = por %p71, %p72
      %p74 = scmp.ne.s32.totalorder %s66, %s69
      %p75 = scmp.eq.s32.totalorder %s30, 0
      %p76 = por %p74, %p75
      %p77 = scmp.ne.s32.totalorder %s66, %s69
      %p78 = scmp.eq.s32.totalorder %s35, 1
      %p79 = por %p77, %p78
      %p80 = scmp.ne.s32.totalorder %s69, %s70
      %p81 = scmp.eq.s32.totalorder %s35, 0
      %p82 = por %p80, %p81
      %p83 = scmp.ne.s32.totalorder %s69, %s70
      %p84 = scmp.eq.s32.totalorder %s36, 1
      %p85 = por %p83, %p84
      %p87 = scmp.ne.s32.totalorder %s70, %s86
      %p88 = scmp.eq.s32.totalorder %s36, 0
      %p89 = por %p87, %p88
      %s90 = ssub.s32 %s30, %s37
      %p91 = scmp.eq.s32.totalorder %s90, 0
      %s93 = sadd.s32 %s92, 1
      %s94 = scalar_select %p91, %s92, %s93
      %p97 = pneg %p91
      %p98 = scmp.eq.s32.totalorder %s30, 1
      %p99 = por %p97, %p98
      %p100 = scmp.ne.s32.totalorder %s92, %s95
      %p101 = scmp.eq.s32.totalorder %s30, 0
      %p102 = por %p100, %p101
      %p103 = scmp.ne.s32.totalorder %s92, %s95
      %p104 = scmp.eq.s32.totalorder %s35, 1
      %p105 = por %p103, %p104
      %p106 = scmp.ne.s32.totalorder %s95, %s96
      %p107 = scmp.eq.s32.totalorder %s35, 0
      %p108 = por %p106, %p107
      %p109 = scmp.ne.s32.totalorder %s95, %s96
      %p110 = scmp.eq.s32.totalorder %s36, 1
      %p111 = por %p109, %p110
      %p113 = scmp.ne.s32.totalorder %s96, %s112
      %p114 = scmp.eq.s32.totalorder %s36, 0
      %p115 = por %p113, %p114
      %s117 = sadd.s32 %s116, 1
      %p120 = scmp.eq.s32.totalorder %s30, 1
      %p121 = scmp.ne.s32.totalorder %s116, %s118
      %p122 = scmp.eq.s32.totalorder %s30, 0
      %p123 = por %p121, %p122
      %p124 = scmp.ne.s32.totalorder %s116, %s118
      %p125 = scmp.eq.s32.totalorder %s35, 1
      %p126 = por %p124, %p125
      %p127 = scmp.ne.s32.totalorder %s118, %s119
      %p128 = scmp.eq.s32.totalorder %s35, 0
      %p129 = por %p127, %p128
      %p130 = scmp.ne.s32.totalorder %s118, %s119
      %p131 = scmp.eq.s32.totalorder %s36, 1
      %p132 = por %p130, %p131
      %p134 = scmp.ne.s32.totalorder %s119, %s133
      %p135 = scmp.eq.s32.totalorder %s36, 0
      %p136 = por %p134, %p135
      %s138 = sadd.s32 %s137, 1
      %p141 = scmp.eq.s32.totalorder %s30, 1
      %p142 = scmp.ne.s32.totalorder %s137, %s139
      %p143 = scmp.eq.s32.totalorder %s30, 0
      %p144 = por %p142, %p143
      %p145 = scmp.ne.s32.totalorder %s137, %s139
      %p146 = scmp.eq.s32.totalorder %s35, 1
      %p147 = por %p145, %p146
      %p148 = scmp.ne.s32.totalorder %s139, %s140
      %p149 = scmp.eq.s32.totalorder %s35, 0
      %p150 = por %p148, %p149
      %p151 = scmp.ne.s32.totalorder %s139, %s140
      %p152 = scmp.eq.s32.totalorder %s36, 1
      %p153 = por %p151, %p152
      %p155 = scmp.ne.s32.totalorder %s140, %s154
      %p156 = scmp.eq.s32.totalorder %s36, 0
      %p157 = por %p155, %p156
      %s159 = sadd.s32 %s158, 1
      %p162 = scmp.eq.s32.totalorder %s30, 1
      %p163 = scmp.ne.s32.totalorder %s158, %s160
      %p164 = scmp.eq.s32.totalorder %s30, 0
      %p165 = por %p163, %p164
      %p166 = scmp.ne.s32.totalorder %s158, %s160
      %p167 = scmp.eq.s32.totalorder %s35, 1
      %p168 = por %p166, %p167
      %p169 = scmp.ne.s32.totalorder %s160, %s161
      %p170 = scmp.eq.s32.totalorder %s35, 0
      %p171 = por %p169, %p170
      %p172 = scmp.ne.s32.totalorder %s160, %s161
      %p173 = scmp.eq.s32.totalorder %s36, 1
      %p174 = por %p172, %p173
      %p176 = scmp.ne.s32.totalorder %s161, %s175
      %p177 = scmp.eq.s32.totalorder %s36, 0
      %p178 = por %p176, %p177
      %s180 = sadd.s32 %s179, 1
      %p183 = scmp.eq.s32.totalorder %s30, 1
      %p184 = scmp.ne.s32.totalorder %s179, %s181
      %p185 = scmp.eq.s32.totalorder %s30, 0
      %p186 = por %p184, %p185
      %p187 = scmp.ne.s32.totalorder %s179, %s181
      %p188 = scmp.eq.s32.totalorder %s35, 1
      %p189 = por %p187, %p188
      %p190 = scmp.ne.s32.totalorder %s181, %s182
      %p191 = scmp.eq.s32.totalorder %s35, 0
      %p192 = por %p190, %p191
      %p193 = scmp.ne.s32.totalorder %s181, %s182
      %p194 = scmp.eq.s32.totalorder %s36, 1
      %p195 = por %p193, %p194
      %p197 = scmp.ne.s32.totalorder %s182, %s196
      %p198 = scmp.eq.s32.totalorder %s36, 0
      %p199 = por %p197, %p198
      %s201 = sadd.s32 %s200, 1
      %p204 = scmp.eq.s32.totalorder %s30, 1
      %p205 = scmp.ne.s32.totalorder %s200, %s202
      %p206 = scmp.eq.s32.totalorder %s30, 0
      %p207 = por %p205, %p206
      %p208 = scmp.ne.s32.totalorder %s200, %s202
      %p209 = scmp.eq.s32.totalorder %s35, 1
      %p210 = por %p208, %p209
      %p211 = scmp.ne.s32.totalorder %s202, %s203
      %p212 = scmp.eq.s32.totalorder %s35, 0
      %p213 = por %p211, %p212
      %p214 = scmp.ne.s32.totalorder %s202, %s203
      %p215 = scmp.eq.s32.totalorder %s36, 1
      %p216 = por %p214, %p215
      %p218 = scmp.ne.s32.totalorder %s203, %s217
      %p219 = scmp.eq.s32.totalorder %s36, 0
      %p220 = por %p218, %p219
      %s222 = sadd.s32 %s221, 1
      %p225 = scmp.eq.s32.totalorder %s30, 1
      %p226 = scmp.ne.s32.totalorder %s221, %s223
      %p227 = scmp.eq.s32.totalorder %s30, 0
      %p228 = por %p226, %p227
      %p229 = scmp.ne.s32.totalorder %s221, %s223
      %p230 = scmp.eq.s32.totalorder %s35, 1
      %p231 = por %p229, %p230
      %p232 = scmp.ne.s32.totalorder %s223, %s224
      %p233 = scmp.eq.s32.totalorder %s35, 0
      %p234 = por %p232, %p233
      %p235 = scmp.ne.s32.totalorder %s223, %s224
      %p236 = scmp.eq.s32.totalorder %s36, 1
      %p237 = por %p235, %p236
      %p239 = scmp.ne.s32.totalorder %s224, %s238
      %p240 = scmp.eq.s32.totalorder %s36, 0
      %p241 = por %p239, %p240
      %s243 = sadd.s32 %s242, 1
      %p246 = scmp.eq.s32.totalorder %s30, 1
      %p247 = scmp.ne.s32.totalorder %s242, %s244
      %p248 = scmp.eq.s32.totalorder %s30, 0
      %p249 = por %p247, %p248
      %p250 = scmp.ne.s32.totalorder %s242, %s244
      %p251 = scmp.eq.s32.totalorder %s35, 1
      %p252 = por %p250, %p251
      %p253 = scmp.ne.s32.totalorder %s244, %s245
      %p254 = scmp.eq.s32.totalorder %s35, 0
      %p255 = por %p253, %p254
      %p256 = scmp.ne.s32.totalorder %s244, %s245
      %p257 = scmp.eq.s32.totalorder %s36, 1
      %p258 = por %p256, %p257
      %p260 = scmp.ne.s32.totalorder %s245, %s259
      %p261 = scmp.eq.s32.totalorder %s36, 0
      %p262 = por %p260, %p261
      %s264 = sadd.s32 %s263, 1
      %p267 = scmp.eq.s32.totalorder %s30, 1
      %p268 = scmp.ne.s32.totalorder %s263, %s265
      %p269 = scmp.eq.s32.totalorder %s30, 0
      %p270 = por %p268, %p269
      %p271 = scmp.ne.s32.totalorder %s263, %s265
      %p272 = scmp.eq.s32.totalorder %s35, 1
      %p273 = por %p271, %p272
      %p274 = scmp.ne.s32.totalorder %s265, %s266
      %p275 = scmp.eq.s32.totalorder %s35, 0
      %p276 = por %p274, %p275
      %p277 = scmp.ne.s32.totalorder %s265, %s266
      %p278 = scmp.eq.s32.totalorder %s36, 1
      %p279 = por %p277, %p278
      %p281 = scmp.ne.s32.totalorder %s266, %s280
      %p282 = scmp.eq.s32.totalorder %s36, 0
      %p283 = por %p281, %p282
      %s285 = sadd.s32 %s284, 1
      %p288 = scmp.eq.s32.totalorder %s30, 1
      %p289 = scmp.ne.s32.totalorder %s284, %s286
      %p290 = scmp.eq.s32.totalorder %s30, 0
      %p291 = por %p289, %p290
      %p292 = scmp.ne.s32.totalorder %s284, %s286
      %p293 = scmp.eq.s32.totalorder %s35, 1
      %p294 = por %p292, %p293
      %p295 = scmp.ne.s32.totalorder %s286, %s287
      %p296 = scmp.eq.s32.totalorder %s35, 0
      %p297 = por %p295, %p296
      %p298 = scmp.ne.s32.totalorder %s286, %s287
      %p299 = scmp.eq.s32.totalorder %s36, 1
      %p300 = por %p298, %p299
      %p302 = scmp.ne.s32.totalorder %s287, %s301
      %p303 = scmp.eq.s32.totalorder %s36, 0
      %p304 = por %p302, %p303
      %s306 = sadd.s32 %s305, 1
      %p309 = scmp.eq.s32.totalorder %s30, 1
      %p310 = scmp.ne.s32.totalorder %s305, %s307
      %p311 = scmp.eq.s32.totalorder %s30, 0
      %p312 = por %p310, %p311
      %p313 = scmp.ne.s32.totalorder %s305, %s307
      %p314 = scmp.eq.s32.totalorder %s35, 1
      %p315 = por %p313, %p314
      %p316 = scmp.ne.s32.totalorder %s307, %s308
      %p317 = scmp.eq.s32.totalorder %s35, 0
      %p318 = por %p316, %p317
      %p319 = scmp.ne.s32.totalorder %s307, %s308
      %p320 = scmp.eq.s32.totalorder %s36, 1
      %p321 = por %p319, %p320
      %p323 = scmp.ne.s32.totalorder %s308, %s322
      %p324 = scmp.eq.s32.totalorder %s36, 0
      %p325 = por %p323, %p324
      %s327 = sadd.s32 %s326, 1
      %p330 = scmp.eq.s32.totalorder %s30, 1
      %p331 = scmp.ne.s32.totalorder %s326, %s328
      %p332 = scmp.eq.s32.totalorder %s30, 0
      %p333 = por %p331, %p332
      %p334 = scmp.ne.s32.totalorder %s326, %s328
      %p335 = scmp.eq.s32.totalorder %s35, 1
      %p336 = por %p334, %p335
      %p337 = scmp.ne.s32.totalorder %s328, %s329
      %p338 = scmp.eq.s32.totalorder %s35, 0
      %p339 = por %p337, %p338
      %p340 = scmp.ne.s32.totalorder %s328, %s329
      %p341 = scmp.eq.s32.totalorder %s36, 1
      %p342 = por %p340, %p341
      %p344 = scmp.ne.s32.totalorder %s329, %s343
      %p345 = scmp.eq.s32.totalorder %s36, 0
      %p346 = por %p344, %p345
      %s348 = sadd.s32 %s347, 1
      %p351 = scmp.eq.s32.totalorder %s30, 1
      %p352 = scmp.ne.s32.totalorder %s347, %s349
      %p353 = scmp.eq.s32.totalorder %s30, 0
      %p354 = por %p352, %p353
      %p355 = scmp.ne.s32.totalorder %s347, %s349
      %p356 = scmp.eq.s32.totalorder %s35, 1
      %p357 = por %p355, %p356
      %p358 = scmp.ne.s32.totalorder %s349, %s350
      %p359 = scmp.eq.s32.totalorder %s35, 0
      %p360 = por %p358, %p359
      %p361 = scmp.ne.s32.totalorder %s349, %s350
      %p362 = scmp.eq.s32.totalorder %s36, 1
      %p363 = por %p361, %p362
      %p365 = scmp.ne.s32.totalorder %s350, %s364
      %p366 = scmp.eq.s32.totalorder %s36, 0
      %p367 = por %p365, %p366
      %s369 = sadd.s32 %s368, 1
      %p372 = scmp.eq.s32.totalorder %s30, 1
      %p373 = scmp.ne.s32.totalorder %s368, %s370
      %p374 = scmp.eq.s32.totalorder %s30, 0
      %p375 = por %p373, %p374
      %p376 = scmp.ne.s32.totalorder %s368, %s370
      %p377 = scmp.eq.s32.totalorder %s35, 1
      %p378 = por %p376, %p377
      %p379 = scmp.ne.s32.totalorder %s370, %s371
      %p380 = scmp.eq.s32.totalorder %s35, 0
      %p381 = por %p379, %p380
      %p382 = scmp.ne.s32.totalorder %s370, %s371
      %p383 = scmp.eq.s32.totalorder %s36, 1
      %p384 = por %p382, %p383
      %p386 = scmp.ne.s32.totalorder %s371, %s385
      %p387 = scmp.eq.s32.totalorder %s36, 0
      %p388 = por %p386, %p387
      %s390 = sadd.s32 %s389, 1
      %p393 = scmp.eq.s32.totalorder %s30, 1
      %p394 = scmp.ne.s32.totalorder %s389, %s391
      %p395 = scmp.eq.s32.totalorder %s30, 0
      %p396 = por %p394, %p395
      %p397 = scmp.ne.s32.totalorder %s389, %s391
      %p398 = scmp.eq.s32.totalorder %s35, 1
      %p399 = por %p397, %p398
      %p400 = scmp.ne.s32.totalorder %s391, %s392
      %p401 = scmp.eq.s32.totalorder %s35, 0
      %p402 = por %p400, %p401
      %p403 = scmp.ne.s32.totalorder %s391, %s392
      %p404 = scmp.eq.s32.totalorder %s36, 1
      %p405 = por %p403, %p404
      %p407 = scmp.ne.s32.totalorder %s392, %s406
      %p408 = scmp.eq.s32.totalorder %s36, 0
      %p409 = por %p407, %p408
      %s411 = sadd.s32 %s410, 1
      %p414 = scmp.eq.s32.totalorder %s30, 1
      %p415 = scmp.ne.s32.totalorder %s410, %s412
      %p416 = scmp.eq.s32.totalorder %s30, 0
      %p417 = por %p415, %p416
      %p418 = scmp.ne.s32.totalorder %s410, %s412
      %p419 = scmp.eq.s32.totalorder %s35, 1
      %p420 = por %p418, %p419
      %p421 = scmp.ne.s32.totalorder %s412, %s413
      %p422 = scmp.eq.s32.totalorder %s35, 0
      %p423 = por %p421, %p422
      %p424 = scmp.ne.s32.totalorder %s412, %s413
      %p425 = scmp.eq.s32.totalorder %s36, 1
      %p426 = por %p424, %p425
      %p428 = scmp.ne.s32.totalorder %s413, %s427
      %p429 = scmp.eq.s32.totalorder %s36, 0
      %p430 = por %p428, %p429
      %s432 = sadd.s32 %s431, 1
      %p435 = scmp.eq.s32.totalorder %s30, 1
      %p436 = scmp.ne.s32.totalorder %s431, %s433
      %p437 = scmp.eq.s32.totalorder %s30, 0
      %p438 = por %p436, %p437
      %p439 = scmp.ne.s32.totalorder %s431, %s433
      %p440 = scmp.eq.s32.totalorder %s35, 1
      %p441 = por %p439, %p440
      %p442 = scmp.ne.s32.totalorder %s433, %s434
      %p443 = scmp.eq.s32.totalorder %s35, 0
      %p444 = por %p442, %p443
      %p445 = scmp.ne.s32.totalorder %s433, %s434
      %p446 = scmp.eq.s32.totalorder %s36, 1
      %p447 = por %p445, %p446
      %p449 = scmp.ne.s32.totalorder %s434, %s448
      %p450 = scmp.eq.s32.totalorder %s36, 0
      %p451 = por %p449, %p450
      %s452 = ssub.s32 %s30, %s37
      %p453 = scmp.eq.s32.totalorder %s452, 0
      %s455 = sadd.s32 %s454, 1
      %s456 = scalar_select %p453, %s454, %s455
      %p459 = pneg %p453
      %p460 = scmp.eq.s32.totalorder %s30, 1
      %p461 = por %p459, %p460
      %p462 = scmp.ne.s32.totalorder %s454, %s457
      %p463 = scmp.eq.s32.totalorder %s30, 0
      %p464 = por %p462, %p463
      %p465 = scmp.ne.s32.totalorder %s454, %s457
      %p466 = scmp.eq.s32.totalorder %s35, 1
      %p467 = por %p465, %p466
      %p468 = scmp.ne.s32.totalorder %s457, %s458
      %p469 = scmp.eq.s32.totalorder %s35, 0
      %p470 = por %p468, %p469
      %p471 = scmp.ne.s32.totalorder %s457, %s458
      %p472 = scmp.eq.s32.totalorder %s36, 1
      %p473 = por %p471, %p472
      %p475 = scmp.ne.s32.totalorder %s458, %s474
      %p476 = scmp.eq.s32.totalorder %s36, 0
      %p477 = por %p475, %p476
      %p478 = scmp.le.s32.totalorder 1, %s30
      %p479 = scmp.lt.s32.totalorder %s30, 3
      %p480 = pnand %p478, %p479
      %p481 = pneg %p480
      // Predicated region
      $region9: #{tpu_custom_call.1} parent=5 // pred_check
        _
      $region10: #{tpu_custom_call.1} parent=5 // pred_check_branch
        %483 = sbr.rel (%p480) target = $region12
      $region11: #{tpu_custom_call.1} parent=5 // pred_region
        %s484 = ssub.s32 %s30, 1
        // Predicated region
        $region13: #{tpu_custom_call.1} parent=11 // pred_check
          %p485 = pneg %p129
        $region14: #{tpu_custom_call.1} parent=11 // pred_check_branch
          %487 = sbr.rel (%p485) target = $region16
        $region15: #{tpu_custom_call.1} parent=11 // pred_region
          _
        $region16: #{tpu_custom_call.1} parent=11 // pred_fallthru
          _
        // Predicated region
        $region17: #{tpu_custom_call.1} parent=11 // pred_check
          %p488 = pneg %p150
        $region18: #{tpu_custom_call.1} parent=11 // pred_check_branch
          %490 = sbr.rel (%p488) target = $region20
        $region19: #{tpu_custom_call.1} parent=11 // pred_region
          _
        $region20: #{tpu_custom_call.1} parent=11 // pred_fallthru
          _
        // Predicated region
        $region21: #{tpu_custom_call.1} parent=11 // pred_check
          %p491 = pneg %p171
        $region22: #{tpu_custom_call.1} parent=11 // pred_check_branch
          %493 = sbr.rel (%p491) target = $region24
        $region23: #{tpu_custom_call.1} parent=11 // pred_region
          _
        $region24: #{tpu_custom_call.1} parent=11 // pred_fallthru
          _
        // Predicated region
        $region25: #{tpu_custom_call.1} parent=11 // pred_check
          %p494 = pneg %p192
        $region26: #{tpu_custom_call.1} parent=11 // pred_check_branch
          %496 = sbr.rel (%p494) target = $region28
        $region27: #{tpu_custom_call.1} parent=11 // pred_region
          _
        $region28: #{tpu_custom_call.1} parent=11 // pred_fallthru
          _
        // Predicated region
        $region29: #{tpu_custom_call.1} parent=11 // pred_check
          %p497 = pneg %p213
        $region30: #{tpu_custom_call.1} parent=11 // pred_check_branch
          %499 = sbr.rel (%p497) target = $region32
        $region31: #{tpu_custom_call.1} parent=11 // pred_region
          _
        $region32: #{tpu_custom_call.1} parent=11 // pred_fallthru
          _
        // Predicated region
        $region33: #{tpu_custom_call.1} parent=11 // pred_check
          %p500 = pneg %p234
        $region34: #{tpu_custom_call.1} parent=11 // pred_check_branch
          %502 = sbr.rel (%p500) target = $region36
        $region35: #{tpu_custom_call.1} parent=11 // pred_region
          _
        $region36: #{tpu_custom_call.1} parent=11 // pred_fallthru
          _
        // Predicated region
        $region37: #{tpu_custom_call.1} parent=11 // pred_check
          %p503 = pneg %p255
        $region38: #{tpu_custom_call.1} parent=11 // pred_check_branch
          %505 = sbr.rel (%p503) target = $region40
        $region39: #{tpu_custom_call.1} parent=11 // pred_region
          _
        $region40: #{tpu_custom_call.1} parent=11 // pred_fallthru
          _
        // Predicated region
        $region41: #{tpu_custom_call.1} parent=11 // pred_check
          %p506 = pneg %p276
        $region42: #{tpu_custom_call.1} parent=11 // pred_check_branch
          %508 = sbr.rel (%p506) target = $region44
        $region43: #{tpu_custom_call.1} parent=11 // pred_region
          _
        $region44: #{tpu_custom_call.1} parent=11 // pred_fallthru
          _
        // Predicated region
        $region45: #{tpu_custom_call.1} parent=11 // pred_check
          %p509 = pneg %p297
        $region46: #{tpu_custom_call.1} parent=11 // pred_check_branch
          %511 = sbr.rel (%p509) target = $region48
        $region47: #{tpu_custom_call.1} parent=11 // pred_region
          _
        $region48: #{tpu_custom_call.1} parent=11 // pred_fallthru
          _
        // Predicated region
        $region49: #{tpu_custom_call.1} parent=11 // pred_check
          %p512 = pneg %p318
        $region50: #{tpu_custom_call.1} parent=11 // pred_check_branch
          %514 = sbr.rel (%p512) target = $region52
        $region51: #{tpu_custom_call.1} parent=11 // pred_region
          _
        $region52: #{tpu_custom_call.1} parent=11 // pred_fallthru
          _
        // Predicated region
        $region53: #{tpu_custom_call.1} parent=11 // pred_check
          %p515 = pneg %p339
        $region54: #{tpu_custom_call.1} parent=11 // pred_check_branch
          %517 = sbr.rel (%p515) target = $region56
        $region55: #{tpu_custom_call.1} parent=11 // pred_region
          _
        $region56: #{tpu_custom_call.1} parent=11 // pred_fallthru
          _
        // Predicated region
        $region57: #{tpu_custom_call.1} parent=11 // pred_check
          %p518 = pneg %p360
        $region58: #{tpu_custom_call.1} parent=11 // pred_check_branch
          %520 = sbr.rel (%p518) target = $region60
        $region59: #{tpu_custom_call.1} parent=11 // pred_region
          _
        $region60: #{tpu_custom_call.1} parent=11 // pred_fallthru
          _
        // Predicated region
        $region61: #{tpu_custom_call.1} parent=11 // pred_check
          %p521 = pneg %p381
        $region62: #{tpu_custom_call.1} parent=11 // pred_check_branch
          %523 = sbr.rel (%p521) target = $region64
        $region63: #{tpu_custom_call.1} parent=11 // pred_region
          _
        $region64: #{tpu_custom_call.1} parent=11 // pred_fallthru
          _
        // Predicated region
        $region65: #{tpu_custom_call.1} parent=11 // pred_check
          %p524 = pneg %p402
        $region66: #{tpu_custom_call.1} parent=11 // pred_check_branch
          %526 = sbr.rel (%p524) target = $region68
        $region67: #{tpu_custom_call.1} parent=11 // pred_region
          _
        $region68: #{tpu_custom_call.1} parent=11 // pred_fallthru
          _
        // Predicated region
        $region69: #{tpu_custom_call.1} parent=11 // pred_check
          %p527 = pneg %p423
        $region70: #{tpu_custom_call.1} parent=11 // pred_check_branch
          %529 = sbr.rel (%p527) target = $region72
        $region71: #{tpu_custom_call.1} parent=11 // pred_region
          _
        $region72: #{tpu_custom_call.1} parent=11 // pred_fallthru
          _
        // Predicated region
        $region73: #{tpu_custom_call.1} parent=11 // pred_check
          %p530 = pneg %p444
        $region74: #{tpu_custom_call.1} parent=11 // pred_check_branch
          %532 = sbr.rel (%p530) target = $region76
        $region75: #{tpu_custom_call.1} parent=11 // pred_region
          _
        $region76: #{tpu_custom_call.1} parent=11 // pred_fallthru
          _
      $region12: #{tpu_custom_call.1} parent=5 // pred_fallthru
        _
      %p533 = scmp.lt.s32.totalorder %s30, 2
      // Predicated region
      $region77: #{tpu_custom_call.1} parent=5 // pred_check
        %p534 = pneg %p533
      $region78: #{tpu_custom_call.1} parent=5 // pred_check_branch
        %536 = sbr.rel (%p534) target = $region80
      $region79: #{tpu_custom_call.1} parent=5 // pred_region
        // Predicated region
        $region81: #{tpu_custom_call.1} parent=79 // pred_check
          %p537 = pneg %p50
        $region82: #{tpu_custom_call.1} parent=79 // pred_check_branch
          %539 = sbr.rel (%p537) target = $region84
        $region83: #{tpu_custom_call.1} parent=79 // pred_region
          %p540 = scmp.lt.s32.totalorder %s30, 1
          %s541 = scalar_select %p540, %s30, 1
          %s542 = smul.addr %s541, 8
          %s543 = smul.addr %s542, 8
          %s544 = scalar_lea.vmem %s0, %s543
        $region84: #{tpu_custom_call.1} parent=79 // pred_fallthru
          _
        // Predicated region
        $region85: #{tpu_custom_call.1} parent=79 // pred_check
          %p545 = pneg %p76
        $region86: #{tpu_custom_call.1} parent=79 // pred_check_branch
          %547 = sbr.rel (%p545) target = $region88
        $region87: #{tpu_custom_call.1} parent=79 // pred_region
          %p548 = scmp.lt.s32.totalorder %s30, 1
          %s549 = scalar_select %p548, %s30, 1
          %s550 = smul.addr %s549, 8
          %s551 = smul.addr %s550, 8
          %s552 = scalar_lea.vmem %s1, %s551
        $region88: #{tpu_custom_call.1} parent=79 // pred_fallthru
          _
        // Predicated region
        $region89: #{tpu_custom_call.1} parent=79 // pred_check
          %p553 = pneg %p102
        $region90: #{tpu_custom_call.1} parent=79 // pred_check_branch
          %555 = sbr.rel (%p553) target = $region92
        $region91: #{tpu_custom_call.1} parent=79 // pred_region
          %p556 = scmp.lt.s32.totalorder %s30, 1
          %s557 = scalar_select %p556, %s30, 1
          %s558 = scalar_lea.vmem %s2, %s557
        $region92: #{tpu_custom_call.1} parent=79 // pred_fallthru
          _
      $region80: #{tpu_custom_call.1} parent=5 // pred_fallthru
        _
      %p559 = scmp.le.s32.totalorder 1, %s30
      %p560 = scmp.lt.s32.totalorder %s30, 3
      %p561 = pnand %p559, %p560
      %p562 = pneg %p561
      // Predicated region
      $region93: #{tpu_custom_call.1} parent=5 // pred_check
        _
      $region94: #{tpu_custom_call.1} parent=5 // pred_check_branch
        %564 = sbr.rel (%p561) target = $region96
      $region95: #{tpu_custom_call.1} parent=5 // pred_region
        %s565 = ssub.s32 %s30, 1
        %p566 = scmp.lt.s32.totalorder %s35, 1
        %s567 = scalar_select %p566, %s35, 1
        %s568 = smul.addr %s567, 8
        %s569 = smul.addr %s568, 8
        %s570 = scalar_lea.vmem %s0, %s569
        %p571 = pneg %p56
        %p572 = pneg %p53
        %p573 = scmp.lt.s32.totalorder %s35, 1
        %s574 = scalar_select %p573, %s35, 1
        %s575 = smul.addr %s574, 8
        %s576 = smul.addr %s575, 8
        %s577 = scalar_lea.vmem %s1, %s576
        %p578 = pneg %p82
        %p579 = pneg %p79
        %p580 = scmp.lt.s32.totalorder %s35, 1
        %s581 = scalar_select %p580, %s35, 1
        %s582 = scalar_lea.vmem %s2, %s581
        %p583 = pneg %p108
        %p584 = pneg %p105
        %p585 = pneg %p129
        %p586 = pneg %p126
        %p587 = pneg %p150
        %p588 = pneg %p147
        %p589 = pneg %p171
        %p590 = pneg %p168
        %p591 = pneg %p192
        %p592 = pneg %p189
        %p593 = pneg %p213
        %p594 = pneg %p210
        %p595 = pneg %p234
        %p596 = pneg %p231
        %p597 = pneg %p255
        %p598 = pneg %p252
        %p599 = pneg %p276
        %p600 = pneg %p273
        %p601 = pneg %p297
        %p602 = pneg %p294
        %p603 = pneg %p318
        %p604 = pneg %p315
        %p605 = pneg %p339
        %p606 = pneg %p336
        %p607 = pneg %p360
        %p608 = pneg %p357
        %p609 = pneg %p381
        %p610 = pneg %p378
        %p611 = pneg %p402
        %p612 = pneg %p399
        %p613 = pneg %p423
        %p614 = pneg %p420
        %p615 = pneg %p444
        %p616 = pneg %p441
        %p617 = pneg %p470
        %p618 = pneg %p467
        %s619 = sand.u32 %s457, 1
        %s620 = scalar_lea.sflag [#allocation4], %s619
        %s621 = sand.u32 %s457, 1
        %s622 = scalar_lea.vmem [#allocation3], %s621
        %p623 = scmp.lt.s32.totalorder %s35, 1
        %s624 = scalar_select %p623, %s35, 1
        %s625 = smul.addr %s624, 8
        %s626 = smul.addr %s625, 8
        %s627 = scalar_lea.vmem %s0, %s626
        %p628 = scmp.lt.s32.totalorder %s35, 1
        %s629 = scalar_select %p628, %s35, 1
        %s630 = smul.addr %s629, 8
        %s631 = smul.addr %s630, 8
        %s632 = scalar_lea.vmem %s1, %s631
        %p633 = scmp.lt.s32.totalorder %s35, 1
        %s634 = scalar_select %p633, %s35, 1
        %s635 = scalar_lea.vmem %s2, %s634
        %v637 = vld [vmem:[%s627] sm:$0xff]
        %v638 = vld [vmem:[%s627 + $0x8] sm:$0xff]
        %v639 = vld [vmem:[%s627 + $0x10] sm:$0xff]
        %v640 = vld [vmem:[%s627 + $0x18] sm:$0xff]
        %v641 = vld [vmem:[%s627 + $0x20] sm:$0xff]
        %v642 = vld [vmem:[%s627 + $0x28] sm:$0xff]
        %v643 = vld [vmem:[%s627 + $0x30] sm:$0xff]
        %v644 = vld [vmem:[%s627 + $0x38] sm:$0xff]
        %v645 = vld [vmem:[%s632] sm:$0xff]
        %v646 = vld [vmem:[%s632 + $0x8] sm:$0xff]
        %v647 = vld [vmem:[%s632 + $0x10] sm:$0xff]
        %v648 = vld [vmem:[%s632 + $0x18] sm:$0xff]
        %v649 = vld [vmem:[%s632 + $0x20] sm:$0xff]
        %v650 = vld [vmem:[%s632 + $0x28] sm:$0xff]
        %v651 = vld [vmem:[%s632 + $0x30] sm:$0xff]
        %v652 = vld [vmem:[%s632 + $0x38] sm:$0xff]
        %v653 = vld [vmem:[%s635] sm:$0x1]
        %655 = vset.pattern.permute.xlu0 0
        %656 = vperm.xlu0 %655, %v645
        %v657 = vpop.permute.xlu0 %656
        %660 = vset.pattern.permute.xlu0 0
        %661 = vperm.xlu0 %660, %v646
        %v662 = vpop.permute.xlu0 %661
        %665 = vset.pattern.permute.xlu0 0
        %666 = vperm.xlu0 %665, %v647
        %v667 = vpop.permute.xlu0 %666
        %670 = vset.pattern.permute.xlu0 0
        %671 = vperm.xlu0 %670, %v648
        %v672 = vpop.permute.xlu0 %671
        %675 = vset.pattern.permute.xlu0 0
        %676 = vperm.xlu0 %675, %v649
        %v677 = vpop.permute.xlu0 %676
        %680 = vset.pattern.permute.xlu0 0
        %681 = vperm.xlu0 %680, %v650
        %v682 = vpop.permute.xlu0 %681
        %685 = vset.pattern.permute.xlu0 0
        %686 = vperm.xlu0 %685, %v651
        %v687 = vpop.permute.xlu0 %686
        %690 = vset.pattern.permute.xlu0 0
        %691 = vperm.xlu0 %690, %v652
        %v692 = vpop.permute.xlu0 %691
        %v694 = vlaneseq
        %v695 = vshrl.u32 %v694, 7
        %v696 = vadd.s32 %v695, 8
        %v697 = vadd.s32 %v695, 16
        %v698 = vadd.s32 %v695, 24
        %v699 = vadd.s32 %v695, 32
        %v700 = vadd.s32 %v695, 40
        %v701 = vadd.s32 %v695, 48
        %v702 = vadd.s32 %v695, 56
        %v703 = vlaneseq
        %v704 = vand.u32 %v703, 127
        %vm705 = vcmp.le.s32.totalorder %v704, %v695
        %vm706 = vcmp.le.s32.totalorder %v704, %v696
        %vm707 = vcmp.le.s32.totalorder %v704, %v697
        %vm708 = vcmp.le.s32.totalorder %v704, %v698
        %vm709 = vcmp.le.s32.totalorder %v704, %v699
        %vm710 = vcmp.le.s32.totalorder %v704, %v700
        %vm711 = vcmp.le.s32.totalorder %v704, %v701
        %vm712 = vcmp.le.s32.totalorder %v704, %v702
        %v713 = vld [vmem:[%s3] sm:$0xf]
        %v714 = vld [vmem:[%s3 + $0x4] sm:$0xf]
        %v715 = vld [vmem:[%s3 + $0x8] sm:$0xf]
        %v716 = vld [vmem:[%s3 + $0xc] sm:$0xf]
        %v717 = vld [vmem:[%s3 + $0x10] sm:$0xf]
        %v718 = vld [vmem:[%s3 + $0x14] sm:$0xf]
        %v719 = vld [vmem:[%s3 + $0x18] sm:$0xf]
        %v720 = vld [vmem:[%s3 + $0x1c] sm:$0xf]
        %v721 = vld [vmem:[%s3 + $0x20] sm:$0xf]
        %v722 = vld [vmem:[%s3 + $0x24] sm:$0xf]
        %v723 = vld [vmem:[%s3 + $0x28] sm:$0xf]
        %v724 = vld [vmem:[%s3 + $0x2c] sm:$0xf]
        %v725 = vld [vmem:[%s4] sm:$0x1]
        %vm734 = vcmask 1040384
        %v735 = vrot.slane %v637, 7
        %v736 = vrot.slane %v638, 7
        %v737 = vsel %vm734, %v735, %v736
        %v738 = vrot.slane %v639, 7
        %v739 = vsel %vm734, %v736, %v738
        %v740 = vrot.slane %v640, 7
        %v741 = vsel %vm734, %v738, %v740
        %v742 = vrot.slane %v641, 7
        %v743 = vsel %vm734, %v740, %v742
        %v744 = vrot.slane %v642, 7
        %v745 = vsel %vm734, %v742, %v744
        %v746 = vrot.slane %v643, 7
        %v747 = vsel %vm734, %v744, %v746
        %v748 = vrot.slane %v644, 7
        %v749 = vsel %vm734, %v746, %v748
        %v758 = vsel %vm734, 0.0, %v735
        %v759 = vpack.c.bf16 %v737, %v758
        %v760 = vpack.c.bf16 %v741, %v739
        %v761 = vpack.c.bf16 %v745, %v743
        %v762 = vpack.c.bf16 %v749, %v747
        %v763 = vpack.c.bf16 %v638, %v637
        %v764 = vpack.c.bf16 %v640, %v639
        %v765 = vpack.c.bf16 %v642, %v641
        %v766 = vpack.c.bf16 %v644, %v643
        %v771 = vunpack.c.l.b16 %v717
        %v772 = vunpack.c.l.b16 %v718
        %v773 = vunpack.c.l.b16 %v719
        %v774 = vunpack.c.l.b16 %v720
        %v775 = vpack.c.b16 %v772, %v771
        %v776 = vpack.c.b16 %v774, %v773
        %vm779 = vcmask 261120
        %v781 = vsel %vm779, %v763, 0
        %v784 = vsel %vm779, %v764, 0
        %v787 = vsel %vm779, %v765, 0
        %v790 = vsel %vm779, %v766, 0
        %792 = vmatpush.bf16.msra.mxu0 0
        %793 = vmatpush.bf16.msra.mxu0 0
        %794 = vmatpush.bf16.msra.mxu0 0
        %795 = vmatpush.bf16.msra.mxu0 0
        %796 = vmatpush.bf16.msra.mxu0 0
        %797 = vmatpush.bf16.msra.mxu0 0
        %798 = vmatpush.bf16.msra.mxu0 %v776
        %799 = vmatpush.bf16.msra.mxu0 %v775
        %800 = vmatmul.bf16.gmra.mxu0 %v781
        %v801 = vpop.f32.mrf.mxu0
        %v802 = vadd.f32 0.0, %v801
        %v803 = vpop.f32.mrf.mxu0
        %v804 = vadd.f32 0.0, %v803
        %805 = vmatmul.bf16.gmra.mxu0 %v784
        %v806 = vpop.f32.mrf.mxu0
        %v807 = vadd.f32 0.0, %v806
        %v808 = vpop.f32.mrf.mxu0
        %v809 = vadd.f32 0.0, %v808
        %810 = vmatmul.bf16.gmra.mxu0 %v787
        %v811 = vpop.f32.mrf.mxu0
        %v812 = vadd.f32 0.0, %v811
        %v813 = vpop.f32.mrf.mxu0
        %v814 = vadd.f32 0.0, %v813
        %815 = vmatmul.bf16.gmra.mxu0 %v790
        %v816 = vpop.f32.mrf.mxu0
        %v817 = vadd.f32 0.0, %v816
        %v818 = vpop.f32.mrf.mxu0
        %v819 = vadd.f32 0.0, %v818
        %820 = vdwg.mxu0
        %v825 = vunpack.c.l.b16 %v713
        %v826 = vunpack.c.l.b16 %v714
        %v827 = vunpack.c.l.b16 %v715
        %v828 = vunpack.c.l.b16 %v716
        %v829 = vpack.c.b16 %v826, %v825
        %v830 = vpack.c.b16 %v828, %v827
        %v834 = vsel %vm779, %v759, 0
        %v837 = vsel %vm779, %v760, 0
        %v840 = vsel %vm779, %v761, 0
        %v843 = vsel %vm779, %v762, 0
        %845 = vmatpush.bf16.msra.mxu0 0
        %846 = vmatpush.bf16.msra.mxu0 0
        %847 = vmatpush.bf16.msra.mxu0 0
        %848 = vmatpush.bf16.msra.mxu0 0
        %849 = vmatpush.bf16.msra.mxu0 0
        %850 = vmatpush.bf16.msra.mxu0 0
        %851 = vmatpush.bf16.msra.mxu0 %v830
        %852 = vmatpush.bf16.msra.mxu0 %v829
        %853 = vmatmul.bf16.gmra.mxu0 %v834
        %v854 = vpop.f32.mrf.mxu0
        %v855 = vadd.f32 %v802, %v854
        %v856 = vpop.f32.mrf.mxu0
        %v857 = vadd.f32 %v804, %v856
        %858 = vmatmul.bf16.gmra.mxu0 %v837
        %v859 = vpop.f32.mrf.mxu0
        %v860 = vadd.f32 %v807, %v859
        %v861 = vpop.f32.mrf.mxu0
        %v862 = vadd.f32 %v809, %v861
        %863 = vmatmul.bf16.gmra.mxu0 %v840
        %v864 = vpop.f32.mrf.mxu0
        %v865 = vadd.f32 %v812, %v864
        %v866 = vpop.f32.mrf.mxu0
        %v867 = vadd.f32 %v814, %v866
        %868 = vmatmul.bf16.gmra.mxu0 %v843
        %v869 = vpop.f32.mrf.mxu0
        %v870 = vadd.f32 %v817, %v869
        %v871 = vpop.f32.mrf.mxu0
        %v872 = vadd.f32 %v819, %v871
        %873 = vdwg.mxu0
        %vm874 = vcmask 1046528
        %v875 = vrot.slane %v637, 1
        %v876 = vrot.slane %v638, 1
        %v877 = vsel %vm874, %v875, %v876
        %v878 = vrot.slane %v639, 1
        %v879 = vsel %vm874, %v876, %v878
        %v880 = vrot.slane %v640, 1
        %v881 = vsel %vm874, %v878, %v880
        %v882 = vrot.slane %v641, 1
        %v883 = vsel %vm874, %v880, %v882
        %v884 = vrot.slane %v642, 1
        %v885 = vsel %vm874, %v882, %v884
        %v886 = vrot.slane %v643, 1
        %v887 = vsel %vm874, %v884, %v886
        %v888 = vrot.slane %v644, 1
        %v889 = vsel %vm874, %v886, %v888
        %v898 = vsel %vm874, %v888, 0.0
        %v899 = vpack.c.bf16 %v879, %v877
        %v900 = vpack.c.bf16 %v883, %v881
        %v901 = vpack.c.bf16 %v887, %v885
        %v902 = vpack.c.bf16 %v898, %v889
        %v907 = vunpack.c.l.b16 %v721
        %v908 = vunpack.c.l.b16 %v722
        %v909 = vunpack.c.l.b16 %v723
        %v910 = vunpack.c.l.b16 %v724
        %v911 = vpack.c.b16 %v908, %v907
        %v912 = vpack.c.b16 %v910, %v909
        %v916 = vsel %vm779, %v899, 0
        %v919 = vsel %vm779, %v900, 0
        %v922 = vsel %vm779, %v901, 0
        %v925 = vsel %vm779, %v902, 0
        %927 = vmatpush.bf16.msra.mxu0 0
        %928 = vmatpush.bf16.msra.mxu0 0
        %929 = vmatpush.bf16.msra.mxu0 0
        %930 = vmatpush.bf16.msra.mxu0 0
        %931 = vmatpush.bf16.msra.mxu0 0
        %932 = vmatpush.bf16.msra.mxu0 0
        %933 = vmatpush.bf16.msra.mxu0 %v912
        %934 = vmatpush.bf16.msra.mxu0 %v911
        %935 = vmatmul.bf16.gmra.mxu0 %v916
        %v936 = vpop.f32.mrf.mxu0
        %v937 = vadd.f32 0.0, %v936
        %v938 = vpop.f32.mrf.mxu0
        %v939 = vadd.f32 0.0, %v938
        %940 = vmatmul.bf16.gmra.mxu0 %v919
        %v941 = vpop.f32.mrf.mxu0
        %v942 = vadd.f32 0.0, %v941
        %v943 = vpop.f32.mrf.mxu0
        %v944 = vadd.f32 0.0, %v943
        %945 = vmatmul.bf16.gmra.mxu0 %v922
        %v946 = vpop.f32.mrf.mxu0
        %v947 = vadd.f32 0.0, %v946
        %v948 = vpop.f32.mrf.mxu0
        %v949 = vadd.f32 0.0, %v948
        %950 = vmatmul.bf16.gmra.mxu0 %v925
        %v951 = vpop.f32.mrf.mxu0
        %v952 = vadd.f32 0.0, %v951
        %v953 = vpop.f32.mrf.mxu0
        %v954 = vadd.f32 0.0, %v953
        %955 = vdwg.mxu0
        %v956 = vadd.f32 %v855, %v937
        %v957 = vadd.f32 %v857, %v939
        %v958 = vadd.f32 %v860, %v942
        %v959 = vadd.f32 %v862, %v944
        %v960 = vadd.f32 %v865, %v947
        %v961 = vadd.f32 %v867, %v949
        %v962 = vadd.f32 %v870, %v952
        %v963 = vadd.f32 %v872, %v954
        %v965 = vperm.slane %v725, 0
        %v967 = vadd.f32 %v956, %v965
        %v968 = vadd.f32 %v957, %v965
        %v969 = vadd.f32 %v958, %v965
        %v970 = vadd.f32 %v959, %v965
        %v971 = vadd.f32 %v960, %v965
        %v972 = vadd.f32 %v961, %v965
        %v973 = vadd.f32 %v962, %v965
        %v974 = vadd.f32 %v963, %v965
        %v975 = vmul.f32 %v967, %v657
        %v976 = vmul.f32 %v968, %v662
        %v977 = vmul.f32 %v969, %v667
        %v978 = vmul.f32 %v970, %v672
        %v979 = vmul.f32 %v971, %v677
        %v980 = vmul.f32 %v972, %v682
        %v981 = vmul.f32 %v973, %v687
        %v982 = vmul.f32 %v974, %v692
        %v983 = vpack.c.bf16 %v976, %v975
        %v984 = vpack.c.bf16 %v978, %v977
        %v985 = vpack.c.bf16 %v980, %v979
        %v986 = vpack.c.bf16 %v982, %v981
        %v987 = vld [vmem:[%s5] sm:$0xf]
        %v988 = vld [vmem:[%s5 + $0x4] sm:$0xf]
        %v989 = vld [vmem:[%s5 + $0x8] sm:$0xf]
        %v990 = vld [vmem:[%s5 + $0xc] sm:$0xf]
        %v991 = vld [vmem:[%s6] sm:$0x1]
        %v993 = vperm.slane %v991, 0
        %v999 = vunpack.c.l.b16 %v987
        %v1000 = vunpack.c.l.b16 %v988
        %v1001 = vunpack.c.l.b16 %v989
        %v1002 = vunpack.c.l.b16 %v990
        %v1003 = vpack.c.b16 %v1000, %v999
        %v1004 = vpack.c.b16 %v1002, %v1001
        %v1008 = vsel %vm779, %v983, 0
        %v1011 = vsel %vm779, %v984, 0
        %v1014 = vsel %vm779, %v985, 0
        %v1017 = vsel %vm779, %v986, 0
        %1019 = vmatpush.bf16.msra.mxu0 0
        %1020 = vmatpush.bf16.msra.mxu0 0
        %1021 = vmatpush.bf16.msra.mxu0 0
        %1022 = vmatpush.bf16.msra.mxu0 0
        %1023 = vmatpush.bf16.msra.mxu0 0
        %1024 = vmatpush.bf16.msra.mxu0 0
        %1025 = vmatpush.bf16.msra.mxu0 %v1004
        %1026 = vmatpush.bf16.msra.mxu0 %v1003
        %1027 = vmatmul.bf16.gmra.mxu0 %v1008
        %v1028 = vpop.f32.mrf.mxu0
        %v1029 = vadd.f32 %v993, %v1028
        %v1030 = vpop.f32.mrf.mxu0
        %v1031 = vadd.f32 %v993, %v1030
        %1032 = vmatmul.bf16.gmra.mxu0 %v1011
        %v1033 = vpop.f32.mrf.mxu0
        %v1034 = vadd.f32 %v993, %v1033
        %v1035 = vpop.f32.mrf.mxu0
        %v1036 = vadd.f32 %v993, %v1035
        %1037 = vmatmul.bf16.gmra.mxu0 %v1014
        %v1038 = vpop.f32.mrf.mxu0
        %v1039 = vadd.f32 %v993, %v1038
        %v1040 = vpop.f32.mrf.mxu0
        %v1041 = vadd.f32 %v993, %v1040
        %1042 = vmatmul.bf16.gmra.mxu0 %v1017
        %v1043 = vpop.f32.mrf.mxu0
        %v1044 = vadd.f32 %v993, %v1043
        %v1045 = vpop.f32.mrf.mxu0
        %v1046 = vadd.f32 %v993, %v1045
        %1047 = vdwg.mxu0
        %v1048 = vld [vmem:[%s7] sm:$0xf]
        %v1049 = vld [vmem:[%s7 + $0x4] sm:$0xf]
        %v1050 = vld [vmem:[%s7 + $0x8] sm:$0xf]
        %v1051 = vld [vmem:[%s7 + $0xc] sm:$0xf]
        %v1052 = vpack.c.bf16 %v1031, %v1029
        %v1053 = vpack.c.bf16 %v1036, %v1034
        %v1054 = vpack.c.bf16 %v1041, %v1039
        %v1055 = vpack.c.bf16 %v1046, %v1044
        %1060 = vrot.lane.b32.xlu0 %v1052, 96
        %v1061 = vpop.permute.xlu0 %1060
        %1062 = vrot.lane.b32.xlu0 %v1053, 96
        %v1063 = vpop.permute.xlu0 %1062
        %1064 = vrot.lane.b32.xlu0 %v1054, 96
        %v1065 = vpop.permute.xlu0 %1064
        %1066 = vrot.lane.b32.xlu0 %v1055, 96
        %v1067 = vpop.permute.xlu0 %1066
        %vm1068 = vcmask 130048
        %v1070 = vsel %vm1068, %v1052, 0
        %v1073 = vsel %vm1068, %v1053, 0
        %v1076 = vsel %vm1068, %v1054, 0
        %v1079 = vsel %vm1068, %v1055, 0
        %v1082 = vsel %vm1068, %v1061, 0
        %v1085 = vsel %vm1068, %v1063, 0
        %v1088 = vsel %vm1068, %v1065, 0
        %v1091 = vsel %vm1068, %v1067, 0
        %1093 = vmatpush.bf16.xpose.msra.mxu0 0
        %1094 = vmatpush.bf16.xpose.msra.mxu0 0
        %1095 = vmatpush.bf16.xpose.msra.mxu0 0
        %1096 = vmatpush.bf16.xpose.msra.mxu0 0
        %1097 = vmatpush.bf16.xpose.msra.mxu0 %v1091
        %1098 = vmatpush.bf16.xpose.msra.mxu0 %v1088
        %1099 = vmatpush.bf16.xpose.msra.mxu0 %v1085
        %1100 = vmatpush.bf16.xpose.msra.mxu0 %v1082
        %1101 = vmatmul.bf16.gmra.mxu0 %v1070
        %v1102 = vpop.f32.mrf.mxu0
        %v1103 = vadd.f32 0.0, %v1102
        %v1104 = vpop.f32.mrf.mxu0
        %v1105 = vadd.f32 0.0, %v1104
        %1106 = vmatmul.bf16.gmra.mxu0 %v1073
        %v1107 = vpop.f32.mrf.mxu0
        %v1108 = vadd.f32 0.0, %v1107
        %v1109 = vpop.f32.mrf.mxu0
        %v1110 = vadd.f32 0.0, %v1109
        %1111 = vmatmul.bf16.gmra.mxu0 %v1076
        %v1112 = vpop.f32.mrf.mxu0
        %v1113 = vadd.f32 0.0, %v1112
        %v1114 = vpop.f32.mrf.mxu0
        %v1115 = vadd.f32 0.0, %v1114
        %1116 = vmatmul.bf16.gmra.mxu0 %v1079
        %v1117 = vpop.f32.mrf.mxu0
        %v1118 = vadd.f32 0.0, %v1117
        %v1119 = vpop.f32.mrf.mxu0
        %v1120 = vadd.f32 0.0, %v1119
        %1121 = vdwg.mxu0
        %v1122 = vsel %vm705, %v1103, -10000.0
        %v1123 = vsel %vm706, %v1105, -10000.0
        %v1124 = vsel %vm707, %v1108, -10000.0
        %v1125 = vsel %vm708, %v1110, -10000.0
        %v1126 = vsel %vm709, %v1113, -10000.0
        %v1127 = vsel %vm710, %v1115, -10000.0
        %v1128 = vsel %vm711, %v1118, -10000.0
        %v1129 = vsel %vm712, %v1120, -10000.0
        %vm1130 = vcmask 523264
        %v1131 = vsel %vm1130, %v1122, -inf
        %1132 = vmax.xlane.f32.xlu0 %v1131
        %v1133 = vpop.xlane.xlu0 %1132
        %v1134 = vsel %vm1130, %v1123, -inf
        %1135 = vmax.xlane.f32.xlu0 %v1134
        %v1136 = vpop.xlane.xlu0 %1135
        %v1137 = vsel %vm1130, %v1124, -inf
        %1138 = vmax.xlane.f32.xlu0 %v1137
        %v1139 = vpop.xlane.xlu0 %1138
        %v1140 = vsel %vm1130, %v1125, -inf
        %1141 = vmax.xlane.f32.xlu0 %v1140
        %v1142 = vpop.xlane.xlu0 %1141
        %v1143 = vsel %vm1130, %v1126, -inf
        %1144 = vmax.xlane.f32.xlu0 %v1143
        %v1145 = vpop.xlane.xlu0 %1144
        %v1146 = vsel %vm1130, %v1127, -inf
        %1147 = vmax.xlane.f32.xlu0 %v1146
        %v1148 = vpop.xlane.xlu0 %1147
        %v1149 = vsel %vm1130, %v1128, -inf
        %1150 = vmax.xlane.f32.xlu0 %v1149
        %v1151 = vpop.xlane.xlu0 %1150
        %v1152 = vsel %vm1130, %v1129, -inf
        %1153 = vmax.xlane.f32.xlu0 %v1152
        %v1154 = vpop.xlane.xlu0 %1153
        %v1155 = vsub.f32 %v1122, %v1133
        %v1156 = vsub.f32 %v1123, %v1136
        %v1157 = vsub.f32 %v1124, %v1139
        %v1158 = vsub.f32 %v1125, %v1142
        %v1159 = vsub.f32 %v1126, %v1145
        %v1160 = vsub.f32 %v1127, %v1148
        %v1161 = vsub.f32 %v1128, %v1151
        %v1162 = vsub.f32 %v1129, %v1154
        %v1163 = vmul.f32 %v1155, 1.442695
        %v1164 = vpow.pop %v1163
        %v1165 = vmul.f32 %v1156, 1.442695
        %v1166 = vpow.pop %v1165
        %v1167 = vmul.f32 %v1157, 1.442695
        %v1168 = vpow.pop %v1167
        %v1169 = vmul.f32 %v1158, 1.442695
        %v1170 = vpow.pop %v1169
        %v1171 = vmul.f32 %v1159, 1.442695
        %v1172 = vpow.pop %v1171
        %v1173 = vmul.f32 %v1160, 1.442695
        %v1174 = vpow.pop %v1173
        %v1175 = vmul.f32 %v1161, 1.442695
        %v1176 = vpow.pop %v1175
        %v1177 = vmul.f32 %v1162, 1.442695
        %v1178 = vpow.pop %v1177
        %v1179 = vsel %vm1130, %v1164, 0.0
        %1180 = vadd.xlane.f32.xlu0 %v1179
        %v1181 = vpop.xlane.xlu0 %1180
        %v1182 = vsel %vm1130, %v1166, 0.0
        %1183 = vadd.xlane.f32.xlu0 %v1182
        %v1184 = vpop.xlane.xlu0 %1183
        %v1185 = vsel %vm1130, %v1168, 0.0
        %1186 = vadd.xlane.f32.xlu0 %v1185
        %v1187 = vpop.xlane.xlu0 %1186
        %v1188 = vsel %vm1130, %v1170, 0.0
        %1189 = vadd.xlane.f32.xlu0 %v1188
        %v1190 = vpop.xlane.xlu0 %1189
        %v1191 = vsel %vm1130, %v1172, 0.0
        %1192 = vadd.xlane.f32.xlu0 %v1191
        %v1193 = vpop.xlane.xlu0 %1192
        %v1194 = vsel %vm1130, %v1174, 0.0
        %1195 = vadd.xlane.f32.xlu0 %v1194
        %v1196 = vpop.xlane.xlu0 %1195
        %v1197 = vsel %vm1130, %v1176, 0.0
        %1198 = vadd.xlane.f32.xlu0 %v1197
        %v1199 = vpop.xlane.xlu0 %1198
        %v1200 = vsel %vm1130, %v1178, 0.0
        %1201 = vadd.xlane.f32.xlu0 %v1200
        %v1202 = vpop.xlane.xlu0 %1201
        %v1203 = vrcp.pop %v1181
        %v1204 = vmul.f32 %v1181, %v1203
        %v1205 = vsub.f32 1.0, %v1204
        %v1206 = vmul.f32 %v1203, %v1205
        %v1207 = vadd.f32 %v1203, %v1206
        %vm1208 = vweird.f32 %v1181
        %vm1209 = vweird.f32 %v1203
        %vm1210 = vmor %vm1208, %vm1209
        %v1211 = vsel %vm1210, %v1203, %v1207
        %v1212 = vand.u32 2147483647, %v1181
        %vm1213 = vcmp.eq.f32.partialorder %v1212, 8.507059e+37
        %v1214 = vand.u32 %v1181, 2147483648
        %v1215 = vor.u32 1.1754944e-38, %v1214
        %v1216 = vsel %vm1213, %v1215, %v1211
        %v1217 = vmul.f32 %v1164, %v1216
        %v1218 = vrcp.pop %v1184
        %v1219 = vmul.f32 %v1184, %v1218
        %v1220 = vsub.f32 1.0, %v1219
        %v1221 = vmul.f32 %v1218, %v1220
        %v1222 = vadd.f32 %v1218, %v1221
        %vm1223 = vweird.f32 %v1184
        %vm1224 = vweird.f32 %v1218
        %vm1225 = vmor %vm1223, %vm1224
        %v1226 = vsel %vm1225, %v1218, %v1222
        %v1227 = vand.u32 2147483647, %v1184
        %vm1228 = vcmp.eq.f32.partialorder %v1227, 8.507059e+37
        %v1229 = vand.u32 %v1184, 2147483648
        %v1230 = vor.u32 1.1754944e-38, %v1229
        %v1231 = vsel %vm1228, %v1230, %v1226
        %v1232 = vmul.f32 %v1166, %v1231
        %v1233 = vrcp.pop %v1187
        %v1234 = vmul.f32 %v1187, %v1233
        %v1235 = vsub.f32 1.0, %v1234
        %v1236 = vmul.f32 %v1233, %v1235
        %v1237 = vadd.f32 %v1233, %v1236
        %vm1238 = vweird.f32 %v1187
        %vm1239 = vweird.f32 %v1233
        %vm1240 = vmor %vm1238, %vm1239
        %v1241 = vsel %vm1240, %v1233, %v1237
        %v1242 = vand.u32 2147483647, %v1187
        %vm1243 = vcmp.eq.f32.partialorder %v1242, 8.507059e+37
        %v1244 = vand.u32 %v1187, 2147483648
        %v1245 = vor.u32 1.1754944e-38, %v1244
        %v1246 = vsel %vm1243, %v1245, %v1241
        %v1247 = vmul.f32 %v1168, %v1246
        %v1248 = vrcp.pop %v1190
        %v1249 = vmul.f32 %v1190, %v1248
        %v1250 = vsub.f32 1.0, %v1249
        %v1251 = vmul.f32 %v1248, %v1250
        %v1252 = vadd.f32 %v1248, %v1251
        %vm1253 = vweird.f32 %v1190
        %vm1254 = vweird.f32 %v1248
        %vm1255 = vmor %vm1253, %vm1254
        %v1256 = vsel %vm1255, %v1248, %v1252
        %v1257 = vand.u32 2147483647, %v1190
        %vm1258 = vcmp.eq.f32.partialorder %v1257, 8.507059e+37
        %v1259 = vand.u32 %v1190, 2147483648
        %v1260 = vor.u32 1.1754944e-38, %v1259
        %v1261 = vsel %vm1258, %v1260, %v1256
        %v1262 = vmul.f32 %v1170, %v1261
        %v1263 = vrcp.pop %v1193
        %v1264 = vmul.f32 %v1193, %v1263
        %v1265 = vsub.f32 1.0, %v1264
        %v1266 = vmul.f32 %v1263, %v1265
        %v1267 = vadd.f32 %v1263, %v1266
        %vm1268 = vweird.f32 %v1193
        %vm1269 = vweird.f32 %v1263
        %vm1270 = vmor %vm1268, %vm1269
        %v1271 = vsel %vm1270, %v1263, %v1267
        %v1272 = vand.u32 2147483647, %v1193
        %vm1273 = vcmp.eq.f32.partialorder %v1272, 8.507059e+37
        %v1274 = vand.u32 %v1193, 2147483648
        %v1275 = vor.u32 1.1754944e-38, %v1274
        %v1276 = vsel %vm1273, %v1275, %v1271
        %v1277 = vmul.f32 %v1172, %v1276
        %v1278 = vrcp.pop %v1196
        %v1279 = vmul.f32 %v1196, %v1278
        %v1280 = vsub.f32 1.0, %v1279
        %v1281 = vmul.f32 %v1278, %v1280
        %v1282 = vadd.f32 %v1278, %v1281
        %vm1283 = vweird.f32 %v1196
        %vm1284 = vweird.f32 %v1278
        %vm1285 = vmor %vm1283, %vm1284
        %v1286 = vsel %vm1285, %v1278, %v1282
        %v1287 = vand.u32 2147483647, %v1196
        %vm1288 = vcmp.eq.f32.partialorder %v1287, 8.507059e+37
        %v1289 = vand.u32 %v1196, 2147483648
        %v1290 = vor.u32 1.1754944e-38, %v1289
        %v1291 = vsel %vm1288, %v1290, %v1286
        %v1292 = vmul.f32 %v1174, %v1291
        %v1293 = vrcp.pop %v1199
        %v1294 = vmul.f32 %v1199, %v1293
        %v1295 = vsub.f32 1.0, %v1294
        %v1296 = vmul.f32 %v1293, %v1295
        %v1297 = vadd.f32 %v1293, %v1296
        %vm1298 = vweird.f32 %v1199
        %vm1299 = vweird.f32 %v1293
        %vm1300 = vmor %vm1298, %vm1299
        %v1301 = vsel %vm1300, %v1293, %v1297
        %v1302 = vand.u32 2147483647, %v1199
        %vm1303 = vcmp.eq.f32.partialorder %v1302, 8.507059e+37
        %v1304 = vand.u32 %v1199, 2147483648
        %v1305 = vor.u32 1.1754944e-38, %v1304
        %v1306 = vsel %vm1303, %v1305, %v1301
        %v1307 = vmul.f32 %v1176, %v1306
        %v1308 = vrcp.pop %v1202
        %v1309 = vmul.f32 %v1202, %v1308
        %v1310 = vsub.f32 1.0, %v1309
        %v1311 = vmul.f32 %v1308, %v1310
        %v1312 = vadd.f32 %v1308, %v1311
        %vm1313 = vweird.f32 %v1202
        %vm1314 = vweird.f32 %v1308
        %vm1315 = vmor %vm1313, %vm1314
        %v1316 = vsel %vm1315, %v1308, %v1312
        %v1317 = vand.u32 2147483647, %v1202
        %vm1318 = vcmp.eq.f32.partialorder %v1317, 8.507059e+37
        %v1319 = vand.u32 %v1202, 2147483648
        %v1320 = vor.u32 1.1754944e-38, %v1319
        %v1321 = vsel %vm1318, %v1320, %v1316
        %v1322 = vmul.f32 %v1178, %v1321
        %v1323 = vpack.c.bf16 %v1232, %v1217
        %v1324 = vpack.c.bf16 %v1262, %v1247
        %v1325 = vpack.c.bf16 %v1292, %v1277
        %v1326 = vpack.c.bf16 %v1322, %v1307
        %1327 = vrot.lane.b32.xlu0 %v1052, 64
        %v1328 = vpop.permute.xlu0 %1327
        %1329 = vrot.lane.b32.xlu0 %v1053, 64
        %v1330 = vpop.permute.xlu0 %1329
        %1331 = vrot.lane.b32.xlu0 %v1054, 64
        %v1332 = vpop.permute.xlu0 %1331
        %1333 = vrot.lane.b32.xlu0 %v1055, 64
        %v1334 = vpop.permute.xlu0 %1333
        %v1340 = vsel %vm1130, %v1323, 0
        %v1343 = vsel %vm1130, %v1324, 0
        %v1346 = vsel %vm1130, %v1325, 0
        %v1349 = vsel %vm1130, %v1326, 0
        %1351 = vmatpush.bf16.msra.mxu0 0
        %1352 = vmatpush.bf16.msra.mxu0 0
        %1353 = vmatpush.bf16.msra.mxu0 0
        %1354 = vmatpush.bf16.msra.mxu0 0
        %1355 = vmatpush.bf16.msra.mxu0 %v1334
        %1356 = vmatpush.bf16.msra.mxu0 %v1332
        %1357 = vmatpush.bf16.msra.mxu0 %v1330
        %1358 = vmatpush.bf16.msra.mxu0 %v1328
        %1359 = vmatmul.bf16.gmra.mxu0 %v1340
        %v1360 = vpop.f32.mrf.mxu0
        %v1361 = vadd.f32 0.0, %v1360
        %v1362 = vpop.f32.mrf.mxu0
        %v1363 = vadd.f32 0.0, %v1362
        %1364 = vmatmul.bf16.gmra.mxu0 %v1343
        %v1365 = vpop.f32.mrf.mxu0
        %v1366 = vadd.f32 0.0, %v1365
        %v1367 = vpop.f32.mrf.mxu0
        %v1368 = vadd.f32 0.0, %v1367
        %1369 = vmatmul.bf16.gmra.mxu0 %v1346
        %v1370 = vpop.f32.mrf.mxu0
        %v1371 = vadd.f32 0.0, %v1370
        %v1372 = vpop.f32.mrf.mxu0
        %v1373 = vadd.f32 0.0, %v1372
        %1374 = vmatmul.bf16.gmra.mxu0 %v1349
        %v1375 = vpop.f32.mrf.mxu0
        %v1376 = vadd.f32 0.0, %v1375
        %v1377 = vpop.f32.mrf.mxu0
        %v1378 = vadd.f32 0.0, %v1377
        %1379 = vdwg.mxu0
        %v1380 = vpack.c.bf16 %v1363, %v1361
        %v1381 = vpack.c.bf16 %v1368, %v1366
        %v1382 = vpack.c.bf16 %v1373, %v1371
        %v1383 = vpack.c.bf16 %v1378, %v1376
        %1384 = vrot.lane.b32.xlu0 %v1052, 112
        %v1385 = vpop.permute.xlu0 %1384
        %1386 = vrot.lane.b32.xlu0 %v1053, 112
        %v1387 = vpop.permute.xlu0 %1386
        %1388 = vrot.lane.b32.xlu0 %v1054, 112
        %v1389 = vpop.permute.xlu0 %1388
        %1390 = vrot.lane.b32.xlu0 %v1055, 112
        %v1391 = vpop.permute.xlu0 %1390
        %1392 = vrot.lane.b32.xlu0 %v1052, 80
        %v1393 = vpop.permute.xlu0 %1392
        %1394 = vrot.lane.b32.xlu0 %v1053, 80
        %v1395 = vpop.permute.xlu0 %1394
        %1396 = vrot.lane.b32.xlu0 %v1054, 80
        %v1397 = vpop.permute.xlu0 %1396
        %1398 = vrot.lane.b32.xlu0 %v1055, 80
        %v1399 = vpop.permute.xlu0 %1398
        %v1401 = vsel %vm1068, %v1385, 0
        %v1404 = vsel %vm1068, %v1387, 0
        %v1407 = vsel %vm1068, %v1389, 0
        %v1410 = vsel %vm1068, %v1391, 0
        %v1413 = vsel %vm1068, %v1393, 0
        %v1416 = vsel %vm1068, %v1395, 0
        %v1419 = vsel %vm1068, %v1397, 0
        %v1422 = vsel %vm1068, %v1399, 0
        %1424 = vmatpush.bf16.xpose.msra.mxu0 0
        %1425 = vmatpush.bf16.xpose.msra.mxu0 0
        %1426 = vmatpush.bf16.xpose.msra.mxu0 0
        %1427 = vmatpush.bf16.xpose.msra.mxu0 0
        %1428 = vmatpush.bf16.xpose.msra.mxu0 %v1422
        %1429 = vmatpush.bf16.xpose.msra.mxu0 %v1419
        %1430 = vmatpush.bf16.xpose.msra.mxu0 %v1416
        %1431 = vmatpush.bf16.xpose.msra.mxu0 %v1413
        %1432 = vmatmul.bf16.gmra.mxu0 %v1401
        %v1433 = vpop.f32.mrf.mxu0
        %v1434 = vadd.f32 0.0, %v1433
        %v1435 = vpop.f32.mrf.mxu0
        %v1436 = vadd.f32 0.0, %v1435
        %1437 = vmatmul.bf16.gmra.mxu0 %v1404
        %v1438 = vpop.f32.mrf.mxu0
        %v1439 = vadd.f32 0.0, %v1438
        %v1440 = vpop.f32.mrf.mxu0
        %v1441 = vadd.f32 0.0, %v1440
        %1442 = vmatmul.bf16.gmra.mxu0 %v1407
        %v1443 = vpop.f32.mrf.mxu0
        %v1444 = vadd.f32 0.0, %v1443
        %v1445 = vpop.f32.mrf.mxu0
        %v1446 = vadd.f32 0.0, %v1445
        %1447 = vmatmul.bf16.gmra.mxu0 %v1410
        %v1448 = vpop.f32.mrf.mxu0
        %v1449 = vadd.f32 0.0, %v1448
        %v1450 = vpop.f32.mrf.mxu0
        %v1451 = vadd.f32 0.0, %v1450
        %1452 = vdwg.mxu0
        %v1453 = vsel %vm705, %v1434, -10000.0
        %v1454 = vsel %vm706, %v1436, -10000.0
        %v1455 = vsel %vm707, %v1439, -10000.0
        %v1456 = vsel %vm708, %v1441, -10000.0
        %v1457 = vsel %vm709, %v1444, -10000.0
        %v1458 = vsel %vm710, %v1446, -10000.0
        %v1459 = vsel %vm711, %v1449, -10000.0
        %v1460 = vsel %vm712, %v1451, -10000.0
        %v1461 = vsel %vm1130, %v1453, -inf
        %1462 = vmax.xlane.f32.xlu0 %v1461
        %v1463 = vpop.xlane.xlu0 %1462
        %v1464 = vsel %vm1130, %v1454, -inf
        %1465 = vmax.xlane.f32.xlu0 %v1464
        %v1466 = vpop.xlane.xlu0 %1465
        %v1467 = vsel %vm1130, %v1455, -inf
        %1468 = vmax.xlane.f32.xlu0 %v1467
        %v1469 = vpop.xlane.xlu0 %1468
        %v1470 = vsel %vm1130, %v1456, -inf
        %1471 = vmax.xlane.f32.xlu0 %v1470
        %v1472 = vpop.xlane.xlu0 %1471
        %v1473 = vsel %vm1130, %v1457, -inf
        %1474 = vmax.xlane.f32.xlu0 %v1473
        %v1475 = vpop.xlane.xlu0 %1474
        %v1476 = vsel %vm1130, %v1458, -inf
        %1477 = vmax.xlane.f32.xlu0 %v1476
        %v1478 = vpop.xlane.xlu0 %1477
        %v1479 = vsel %vm1130, %v1459, -inf
        %1480 = vmax.xlane.f32.xlu0 %v1479
        %v1481 = vpop.xlane.xlu0 %1480
        %v1482 = vsel %vm1130, %v1460, -inf
        %1483 = vmax.xlane.f32.xlu0 %v1482
        %v1484 = vpop.xlane.xlu0 %1483
        %v1485 = vsub.f32 %v1453, %v1463
        %v1486 = vsub.f32 %v1454, %v1466
        %v1487 = vsub.f32 %v1455, %v1469
        %v1488 = vsub.f32 %v1456, %v1472
        %v1489 = vsub.f32 %v1457, %v1475
        %v1490 = vsub.f32 %v1458, %v1478
        %v1491 = vsub.f32 %v1459, %v1481
        %v1492 = vsub.f32 %v1460, %v1484
        %v1493 = vmul.f32 %v1485, 1.442695
        %v1494 = vpow.pop %v1493
        %v1495 = vmul.f32 %v1486, 1.442695
        %v1496 = vpow.pop %v1495
        %v1497 = vmul.f32 %v1487, 1.442695
        %v1498 = vpow.pop %v1497
        %v1499 = vmul.f32 %v1488, 1.442695
        %v1500 = vpow.pop %v1499
        %v1501 = vmul.f32 %v1489, 1.442695
        %v1502 = vpow.pop %v1501
        %v1503 = vmul.f32 %v1490, 1.442695
        %v1504 = vpow.pop %v1503
        %v1505 = vmul.f32 %v1491, 1.442695
        %v1506 = vpow.pop %v1505
        %v1507 = vmul.f32 %v1492, 1.442695
        %v1508 = vpow.pop %v1507
        %v1509 = vsel %vm1130, %v1494, 0.0
        %1510 = vadd.xlane.f32.xlu0 %v1509
        %v1511 = vpop.xlane.xlu0 %1510
        %v1512 = vsel %vm1130, %v1496, 0.0
        %1513 = vadd.xlane.f32.xlu0 %v1512
        %v1514 = vpop.xlane.xlu0 %1513
        %v1515 = vsel %vm1130, %v1498, 0.0
        %1516 = vadd.xlane.f32.xlu0 %v1515
        %v1517 = vpop.xlane.xlu0 %1516
        %v1518 = vsel %vm1130, %v1500, 0.0
        %1519 = vadd.xlane.f32.xlu0 %v1518
        %v1520 = vpop.xlane.xlu0 %1519
        %v1521 = vsel %vm1130, %v1502, 0.0
        %1522 = vadd.xlane.f32.xlu0 %v1521
        %v1523 = vpop.xlane.xlu0 %1522
        %v1524 = vsel %vm1130, %v1504, 0.0
        %1525 = vadd.xlane.f32.xlu0 %v1524
        %v1526 = vpop.xlane.xlu0 %1525
        %v1527 = vsel %vm1130, %v1506, 0.0
        %1528 = vadd.xlane.f32.xlu0 %v1527
        %v1529 = vpop.xlane.xlu0 %1528
        %v1530 = vsel %vm1130, %v1508, 0.0
        %1531 = vadd.xlane.f32.xlu0 %v1530
        %v1532 = vpop.xlane.xlu0 %1531
        %v1533 = vrcp.pop %v1511
        %v1534 = vmul.f32 %v1511, %v1533
        %v1535 = vsub.f32 1.0, %v1534
        %v1536 = vmul.f32 %v1533, %v1535
        %v1537 = vadd.f32 %v1533, %v1536
        %vm1538 = vweird.f32 %v1511
        %vm1539 = vweird.f32 %v1533
        %vm1540 = vmor %vm1538, %vm1539
        %v1541 = vsel %vm1540, %v1533, %v1537
        %v1542 = vand.u32 2147483647, %v1511
        %vm1543 = vcmp.eq.f32.partialorder %v1542, 8.507059e+37
        %v1544 = vand.u32 %v1511, 2147483648
        %v1545 = vor.u32 1.1754944e-38, %v1544
        %v1546 = vsel %vm1543, %v1545, %v1541
        %v1547 = vmul.f32 %v1494, %v1546
        %v1548 = vrcp.pop %v1514
        %v1549 = vmul.f32 %v1514, %v1548
        %v1550 = vsub.f32 1.0, %v1549
        %v1551 = vmul.f32 %v1548, %v1550
        %v1552 = vadd.f32 %v1548, %v1551
        %vm1553 = vweird.f32 %v1514
        %vm1554 = vweird.f32 %v1548
        %vm1555 = vmor %vm1553, %vm1554
        %v1556 = vsel %vm1555, %v1548, %v1552
        %v1557 = vand.u32 2147483647, %v1514
        %vm1558 = vcmp.eq.f32.partialorder %v1557, 8.507059e+37
        %v1559 = vand.u32 %v1514, 2147483648
        %v1560 = vor.u32 1.1754944e-38, %v1559
        %v1561 = vsel %vm1558, %v1560, %v1556
        %v1562 = vmul.f32 %v1496, %v1561
        %v1563 = vrcp.pop %v1517
        %v1564 = vmul.f32 %v1517, %v1563
        %v1565 = vsub.f32 1.0, %v1564
        %v1566 = vmul.f32 %v1563, %v1565
        %v1567 = vadd.f32 %v1563, %v1566
        %vm1568 = vweird.f32 %v1517
        %vm1569 = vweird.f32 %v1563
        %vm1570 = vmor %vm1568, %vm1569
        %v1571 = vsel %vm1570, %v1563, %v1567
        %v1572 = vand.u32 2147483647, %v1517
        %vm1573 = vcmp.eq.f32.partialorder %v1572, 8.507059e+37
        %v1574 = vand.u32 %v1517, 2147483648
        %v1575 = vor.u32 1.1754944e-38, %v1574
        %v1576 = vsel %vm1573, %v1575, %v1571
        %v1577 = vmul.f32 %v1498, %v1576
        %v1578 = vrcp.pop %v1520
        %v1579 = vmul.f32 %v1520, %v1578
        %v1580 = vsub.f32 1.0, %v1579
        %v1581 = vmul.f32 %v1578, %v1580
        %v1582 = vadd.f32 %v1578, %v1581
        %vm1583 = vweird.f32 %v1520
        %vm1584 = vweird.f32 %v1578
        %vm1585 = vmor %vm1583, %vm1584
        %v1586 = vsel %vm1585, %v1578, %v1582
        %v1587 = vand.u32 2147483647, %v1520
        %vm1588 = vcmp.eq.f32.partialorder %v1587, 8.507059e+37
        %v1589 = vand.u32 %v1520, 2147483648
        %v1590 = vor.u32 1.1754944e-38, %v1589
        %v1591 = vsel %vm1588, %v1590, %v1586
        %v1592 = vmul.f32 %v1500, %v1591
        %v1593 = vrcp.pop %v1523
        %v1594 = vmul.f32 %v1523, %v1593
        %v1595 = vsub.f32 1.0, %v1594
        %v1596 = vmul.f32 %v1593, %v1595
        %v1597 = vadd.f32 %v1593, %v1596
        %vm1598 = vweird.f32 %v1523
        %vm1599 = vweird.f32 %v1593
        %vm1600 = vmor %vm1598, %vm1599
        %v1601 = vsel %vm1600, %v1593, %v1597
        %v1602 = vand.u32 2147483647, %v1523
        %vm1603 = vcmp.eq.f32.partialorder %v1602, 8.507059e+37
        %v1604 = vand.u32 %v1523, 2147483648
        %v1605 = vor.u32 1.1754944e-38, %v1604
        %v1606 = vsel %vm1603, %v1605, %v1601
        %v1607 = vmul.f32 %v1502, %v1606
        %v1608 = vrcp.pop %v1526
        %v1609 = vmul.f32 %v1526, %v1608
        %v1610 = vsub.f32 1.0, %v1609
        %v1611 = vmul.f32 %v1608, %v1610
        %v1612 = vadd.f32 %v1608, %v1611
        %vm1613 = vweird.f32 %v1526
        %vm1614 = vweird.f32 %v1608
        %vm1615 = vmor %vm1613, %vm1614
        %v1616 = vsel %vm1615, %v1608, %v1612
        %v1617 = vand.u32 2147483647, %v1526
        %vm1618 = vcmp.eq.f32.partialorder %v1617, 8.507059e+37
        %v1619 = vand.u32 %v1526, 2147483648
        %v1620 = vor.u32 1.1754944e-38, %v1619
        %v1621 = vsel %vm1618, %v1620, %v1616
        %v1622 = vmul.f32 %v1504, %v1621
        %v1623 = vrcp.pop %v1529
        %v1624 = vmul.f32 %v1529, %v1623
        %v1625 = vsub.f32 1.0, %v1624
        %v1626 = vmul.f32 %v1623, %v1625
        %v1627 = vadd.f32 %v1623, %v1626
        %vm1628 = vweird.f32 %v1529
        %vm1629 = vweird.f32 %v1623
        %vm1630 = vmor %vm1628, %vm1629
        %v1631 = vsel %vm1630, %v1623, %v1627
        %v1632 = vand.u32 2147483647, %v1529
        %vm1633 = vcmp.eq.f32.partialorder %v1632, 8.507059e+37
        %v1634 = vand.u32 %v1529, 2147483648
        %v1635 = vor.u32 1.1754944e-38, %v1634
        %v1636 = vsel %vm1633, %v1635, %v1631
        %v1637 = vmul.f32 %v1506, %v1636
        %v1638 = vrcp.pop %v1532
        %v1639 = vmul.f32 %v1532, %v1638
        %v1640 = vsub.f32 1.0, %v1639
        %v1641 = vmul.f32 %v1638, %v1640
        %v1642 = vadd.f32 %v1638, %v1641
        %vm1643 = vweird.f32 %v1532
        %vm1644 = vweird.f32 %v1638
        %vm1645 = vmor %vm1643, %vm1644
        %v1646 = vsel %vm1645, %v1638, %v1642
        %v1647 = vand.u32 2147483647, %v1532
        %vm1648 = vcmp.eq.f32.partialorder %v1647, 8.507059e+37
        %v1649 = vand.u32 %v1532, 2147483648
        %v1650 = vor.u32 1.1754944e-38, %v1649
        %v1651 = vsel %vm1648, %v1650, %v1646
        %v1652 = vmul.f32 %v1508, %v1651
        %v1653 = vpack.c.bf16 %v1562, %v1547
        %v1654 = vpack.c.bf16 %v1592, %v1577
        %v1655 = vpack.c.bf16 %v1622, %v1607
        %v1656 = vpack.c.bf16 %v1652, %v1637
        %1657 = vrot.lane.b32.xlu0 %v1052, 48
        %v1658 = vpop.permute.xlu0 %1657
        %1659 = vrot.lane.b32.xlu0 %v1053, 48
        %v1660 = vpop.permute.xlu0 %1659
        %1661 = vrot.lane.b32.xlu0 %v1054, 48
        %v1662 = vpop.permute.xlu0 %1661
        %1663 = vrot.lane.b32.xlu0 %v1055, 48
        %v1664 = vpop.permute.xlu0 %1663
        %v1670 = vsel %vm1130, %v1653, 0
        %v1673 = vsel %vm1130, %v1654, 0
        %v1676 = vsel %vm1130, %v1655, 0
        %v1679 = vsel %vm1130, %v1656, 0
        %1681 = vmatpush.bf16.msra.mxu0 0
        %1682 = vmatpush.bf16.msra.mxu0 0
        %1683 = vmatpush.bf16.msra.mxu0 0
        %1684 = vmatpush.bf16.msra.mxu0 0
        %1685 = vmatpush.bf16.msra.mxu0 %v1664
        %1686 = vmatpush.bf16.msra.mxu0 %v1662
        %1687 = vmatpush.bf16.msra.mxu0 %v1660
        %1688 = vmatpush.bf16.msra.mxu0 %v1658
        %1689 = vmatmul.bf16.gmra.mxu0 %v1670
        %v1690 = vpop.f32.mrf.mxu0
        %v1691 = vadd.f32 0.0, %v1690
        %v1692 = vpop.f32.mrf.mxu0
        %v1693 = vadd.f32 0.0, %v1692
        %1694 = vmatmul.bf16.gmra.mxu0 %v1673
        %v1695 = vpop.f32.mrf.mxu0
        %v1696 = vadd.f32 0.0, %v1695
        %v1697 = vpop.f32.mrf.mxu0
        %v1698 = vadd.f32 0.0, %v1697
        %1699 = vmatmul.bf16.gmra.mxu0 %v1676
        %v1700 = vpop.f32.mrf.mxu0
        %v1701 = vadd.f32 0.0, %v1700
        %v1702 = vpop.f32.mrf.mxu0
        %v1703 = vadd.f32 0.0, %v1702
        %1704 = vmatmul.bf16.gmra.mxu0 %v1679
        %v1705 = vpop.f32.mrf.mxu0
        %v1706 = vadd.f32 0.0, %v1705
        %v1707 = vpop.f32.mrf.mxu0
        %v1708 = vadd.f32 0.0, %v1707
        %1709 = vdwg.mxu0
        %v1710 = vpack.c.bf16 %v1693, %v1691
        %v1711 = vpack.c.bf16 %v1698, %v1696
        %v1712 = vpack.c.bf16 %v1703, %v1701
        %v1713 = vpack.c.bf16 %v1708, %v1706
        %v1716 = vunpack.c.l.b16 %v1050
        %v1717 = vunpack.c.l.b16 %v1051
        %v1718 = vpack.c.b16 %v1717, %v1716
        %v1721 = vsel %vm1068, %v1710, 0
        %v1724 = vsel %vm1068, %v1711, 0
        %v1727 = vsel %vm1068, %v1712, 0
        %v1730 = vsel %vm1068, %v1713, 0
        %1732 = vmatpush.bf16.msra.mxu0 0
        %1733 = vmatpush.bf16.msra.mxu0 0
        %1734 = vmatpush.bf16.msra.mxu0 0
        %1735 = vmatpush.bf16.msra.mxu0 0
        %1736 = vmatpush.bf16.msra.mxu0 0
        %1737 = vmatpush.bf16.msra.mxu0 0
        %1738 = vmatpush.bf16.msra.mxu0 0
        %1739 = vmatpush.bf16.msra.mxu0 %v1718
        %1740 = vmatmul.bf16.gmra.mxu0 %v1721
        %v1741 = vpop.f32.mrf.mxu0
        %v1742 = vadd.f32 0.0, %v1741
        %v1743 = vpop.f32.mrf.mxu0
        %v1744 = vadd.f32 0.0, %v1743
        %1745 = vmatmul.bf16.gmra.mxu0 %v1724
        %v1746 = vpop.f32.mrf.mxu0
        %v1747 = vadd.f32 0.0, %v1746
        %v1748 = vpop.f32.mrf.mxu0
        %v1749 = vadd.f32 0.0, %v1748
        %1750 = vmatmul.bf16.gmra.mxu0 %v1727
        %v1751 = vpop.f32.mrf.mxu0
        %v1752 = vadd.f32 0.0, %v1751
        %v1753 = vpop.f32.mrf.mxu0
        %v1754 = vadd.f32 0.0, %v1753
        %1755 = vmatmul.bf16.gmra.mxu0 %v1730
        %v1756 = vpop.f32.mrf.mxu0
        %v1757 = vadd.f32 0.0, %v1756
        %v1758 = vpop.f32.mrf.mxu0
        %v1759 = vadd.f32 0.0, %v1758
        %1760 = vdwg.mxu0
        %v1763 = vunpack.c.l.b16 %v1048
        %v1764 = vunpack.c.l.b16 %v1049
        %v1765 = vpack.c.b16 %v1764, %v1763
        %v1768 = vsel %vm1068, %v1380, 0
        %v1771 = vsel %vm1068, %v1381, 0
        %v1774 = vsel %vm1068, %v1382, 0
        %v1777 = vsel %vm1068, %v1383, 0
        %1779 = vmatpush.bf16.msra.mxu0 0
        %1780 = vmatpush.bf16.msra.mxu0 0
        %1781 = vmatpush.bf16.msra.mxu0 0
        %1782 = vmatpush.bf16.msra.mxu0 0
        %1783 = vmatpush.bf16.msra.mxu0 0
        %1784 = vmatpush.bf16.msra.mxu0 0
        %1785 = vmatpush.bf16.msra.mxu0 0
        %1786 = vmatpush.bf16.msra.mxu0 %v1765
        %1787 = vmatmul.bf16.gmra.mxu0 %v1768
        %v1788 = vpop.f32.mrf.mxu0
        %v1789 = vadd.f32 %v1742, %v1788
        %v1790 = vpop.f32.mrf.mxu0
        %v1791 = vadd.f32 %v1744, %v1790
        %1792 = vmatmul.bf16.gmra.mxu0 %v1771
        %v1793 = vpop.f32.mrf.mxu0
        %v1794 = vadd.f32 %v1747, %v1793
        %v1795 = vpop.f32.mrf.mxu0
        %v1796 = vadd.f32 %v1749, %v1795
        %1797 = vmatmul.bf16.gmra.mxu0 %v1774
        %v1798 = vpop.f32.mrf.mxu0
        %v1799 = vadd.f32 %v1752, %v1798
        %v1800 = vpop.f32.mrf.mxu0
        %v1801 = vadd.f32 %v1754, %v1800
        %1802 = vmatmul.bf16.gmra.mxu0 %v1777
        %v1803 = vpop.f32.mrf.mxu0
        %v1804 = vadd.f32 %v1757, %v1803
        %v1805 = vpop.f32.mrf.mxu0
        %v1806 = vadd.f32 %v1759, %v1805
        %1807 = vdwg.mxu0
        %v1808 = vld [vmem:[%s8] sm:$0x1]
        %v1810 = vperm.slane %v1808, 0
        %v1812 = vadd.f32 %v1789, %v1810
        %v1813 = vadd.f32 %v1791, %v1810
        %v1814 = vadd.f32 %v1794, %v1810
        %v1815 = vadd.f32 %v1796, %v1810
        %v1816 = vadd.f32 %v1799, %v1810
        %v1817 = vadd.f32 %v1801, %v1810
        %v1818 = vadd.f32 %v1804, %v1810
        %v1819 = vadd.f32 %v1806, %v1810
        %v1820 = vadd.f32 %v975, %v1812
        %v1821 = vadd.f32 %v976, %v1813
        %v1822 = vadd.f32 %v977, %v1814
        %v1823 = vadd.f32 %v978, %v1815
        %v1824 = vadd.f32 %v979, %v1816
        %v1825 = vadd.f32 %v980, %v1817
        %v1826 = vadd.f32 %v981, %v1818
        %v1827 = vadd.f32 %v982, %v1819
        %v1828 = vld [vmem:[%s9] sm:$0x1]
        %v1829 = vld [vmem:[%s10] sm:$0x1]
        %v1830 = vsel %vm779, %v1820, 0.0
        %1831 = vadd.xlane.f32.xlu0 %v1830
        %v1832 = vpop.xlane.xlu0 %1831
        %v1833 = vsel %vm779, %v1821, 0.0
        %1834 = vadd.xlane.f32.xlu0 %v1833
        %v1835 = vpop.xlane.xlu0 %1834
        %v1836 = vsel %vm779, %v1822, 0.0
        %1837 = vadd.xlane.f32.xlu0 %v1836
        %v1838 = vpop.xlane.xlu0 %1837
        %v1839 = vsel %vm779, %v1823, 0.0
        %1840 = vadd.xlane.f32.xlu0 %v1839
        %v1841 = vpop.xlane.xlu0 %1840
        %v1842 = vsel %vm779, %v1824, 0.0
        %1843 = vadd.xlane.f32.xlu0 %v1842
        %v1844 = vpop.xlane.xlu0 %1843
        %v1845 = vsel %vm779, %v1825, 0.0
        %1846 = vadd.xlane.f32.xlu0 %v1845
        %v1847 = vpop.xlane.xlu0 %1846
        %v1848 = vsel %vm779, %v1826, 0.0
        %1849 = vadd.xlane.f32.xlu0 %v1848
        %v1850 = vpop.xlane.xlu0 %1849
        %v1851 = vsel %vm779, %v1827, 0.0
        %1852 = vadd.xlane.f32.xlu0 %v1851
        %v1853 = vpop.xlane.xlu0 %1852
        %v1854 = vrcp.pop 32.0
        %v1855 = vmul.f32 32.0, %v1854
        %v1856 = vsub.f32 1.0, %v1855
        %v1857 = vmul.f32 %v1854, %v1856
        %v1858 = vadd.f32 %v1854, %v1857
        %vm1859 = vweird.f32 %v1854
        %v1860 = vsel %vm1859, %v1854, %v1858
        %v1861 = vmul.f32 %v1832, %v1860
        %v1862 = vmul.f32 %v1835, %v1860
        %v1863 = vmul.f32 %v1838, %v1860
        %v1864 = vmul.f32 %v1841, %v1860
        %v1865 = vmul.f32 %v1844, %v1860
        %v1866 = vmul.f32 %v1847, %v1860
        %v1867 = vmul.f32 %v1850, %v1860
        %v1868 = vmul.f32 %v1853, %v1860
        %v1869 = vsub.f32 %v1820, %v1861
        %v1870 = vsub.f32 %v1821, %v1862
        %v1871 = vsub.f32 %v1822, %v1863
        %v1872 = vsub.f32 %v1823, %v1864
        %v1873 = vsub.f32 %v1824, %v1865
        %v1874 = vsub.f32 %v1825, %v1866
        %v1875 = vsub.f32 %v1826, %v1867
        %v1876 = vsub.f32 %v1827, %v1868
        %v1877 = vmul.f32 %v1869, %v1869
        %v1878 = vmul.f32 %v1870, %v1870
        %v1879 = vmul.f32 %v1871, %v1871
        %v1880 = vmul.f32 %v1872, %v1872
        %v1881 = vmul.f32 %v1873, %v1873
        %v1882 = vmul.f32 %v1874, %v1874
        %v1883 = vmul.f32 %v1875, %v1875
        %v1884 = vmul.f32 %v1876, %v1876
        %v1885 = vsel %vm779, %v1877, 0.0
        %1886 = vadd.xlane.f32.xlu0 %v1885
        %v1887 = vpop.xlane.xlu0 %1886
        %v1888 = vsel %vm779, %v1878, 0.0
        %1889 = vadd.xlane.f32.xlu0 %v1888
        %v1890 = vpop.xlane.xlu0 %1889
        %v1891 = vsel %vm779, %v1879, 0.0
        %1892 = vadd.xlane.f32.xlu0 %v1891
        %v1893 = vpop.xlane.xlu0 %1892
        %v1894 = vsel %vm779, %v1880, 0.0
        %1895 = vadd.xlane.f32.xlu0 %v1894
        %v1896 = vpop.xlane.xlu0 %1895
        %v1897 = vsel %vm779, %v1881, 0.0
        %1898 = vadd.xlane.f32.xlu0 %v1897
        %v1899 = vpop.xlane.xlu0 %1898
        %v1900 = vsel %vm779, %v1882, 0.0
        %1901 = vadd.xlane.f32.xlu0 %v1900
        %v1902 = vpop.xlane.xlu0 %1901
        %v1903 = vsel %vm779, %v1883, 0.0
        %1904 = vadd.xlane.f32.xlu0 %v1903
        %v1905 = vpop.xlane.xlu0 %1904
        %v1906 = vsel %vm779, %v1884, 0.0
        %1907 = vadd.xlane.f32.xlu0 %v1906
        %v1908 = vpop.xlane.xlu0 %1907
        %v1909 = vmul.f32 %v1887, %v1860
        %v1910 = vmul.f32 %v1890, %v1860
        %v1911 = vmul.f32 %v1893, %v1860
        %v1912 = vmul.f32 %v1896, %v1860
        %v1913 = vmul.f32 %v1899, %v1860
        %v1914 = vmul.f32 %v1902, %v1860
        %v1915 = vmul.f32 %v1905, %v1860
        %v1916 = vmul.f32 %v1908, %v1860
        %v1917 = vadd.f32 %v1909, 1e-05
        %v1918 = vadd.f32 %v1910, 1e-05
        %v1919 = vadd.f32 %v1911, 1e-05
        %v1920 = vadd.f32 %v1912, 1e-05
        %v1921 = vadd.f32 %v1913, 1e-05
        %v1922 = vadd.f32 %v1914, 1e-05
        %v1923 = vadd.f32 %v1915, 1e-05
        %v1924 = vadd.f32 %v1916, 1e-05
        %v1925 = vrsqrt.pop %v1917
        %v1926 = vmul.f32 %v1925, %v1917
        %v1927 = vmul.f32 %v1926, %v1925
        %v1928 = vmul.f32 0.5, %v1927
        %v1929 = vsub.f32 1.5, %v1928
        %v1930 = vmul.f32 %v1925, %v1929
        %vm1931 = vweird.f32 %v1917
        %vm1932 = vweird.f32 %v1925
        %vm1933 = vmor %vm1931, %vm1932
        %v1934 = vsel %vm1933, %v1925, %v1930
        %v1935 = vrsqrt.pop %v1918
        %v1936 = vmul.f32 %v1935, %v1918
        %v1937 = vmul.f32 %v1936, %v1935
        %v1938 = vmul.f32 0.5, %v1937
        %v1939 = vsub.f32 1.5, %v1938
        %v1940 = vmul.f32 %v1935, %v1939
        %vm1941 = vweird.f32 %v1918
        %vm1942 = vweird.f32 %v1935
        %vm1943 = vmor %vm1941, %vm1942
        %v1944 = vsel %vm1943, %v1935, %v1940
        %v1945 = vrsqrt.pop %v1919
        %v1946 = vmul.f32 %v1945, %v1919
        %v1947 = vmul.f32 %v1946, %v1945
        %v1948 = vmul.f32 0.5, %v1947
        %v1949 = vsub.f32 1.5, %v1948
        %v1950 = vmul.f32 %v1945, %v1949
        %vm1951 = vweird.f32 %v1919
        %vm1952 = vweird.f32 %v1945
        %vm1953 = vmor %vm1951, %vm1952
        %v1954 = vsel %vm1953, %v1945, %v1950
        %v1955 = vrsqrt.pop %v1920
        %v1956 = vmul.f32 %v1955, %v1920
        %v1957 = vmul.f32 %v1956, %v1955
        %v1958 = vmul.f32 0.5, %v1957
        %v1959 = vsub.f32 1.5, %v1958
        %v1960 = vmul.f32 %v1955, %v1959
        %vm1961 = vweird.f32 %v1920
        %vm1962 = vweird.f32 %v1955
        %vm1963 = vmor %vm1961, %vm1962
        %v1964 = vsel %vm1963, %v1955, %v1960
        %v1965 = vrsqrt.pop %v1921
        %v1966 = vmul.f32 %v1965, %v1921
        %v1967 = vmul.f32 %v1966, %v1965
        %v1968 = vmul.f32 0.5, %v1967
        %v1969 = vsub.f32 1.5, %v1968
        %v1970 = vmul.f32 %v1965, %v1969
        %vm1971 = vweird.f32 %v1921
        %vm1972 = vweird.f32 %v1965
        %vm1973 = vmor %vm1971, %vm1972
        %v1974 = vsel %vm1973, %v1965, %v1970
        %v1975 = vrsqrt.pop %v1922
        %v1976 = vmul.f32 %v1975, %v1922
        %v1977 = vmul.f32 %v1976, %v1975
        %v1978 = vmul.f32 0.5, %v1977
        %v1979 = vsub.f32 1.5, %v1978
        %v1980 = vmul.f32 %v1975, %v1979
        %vm1981 = vweird.f32 %v1922
        %vm1982 = vweird.f32 %v1975
        %vm1983 = vmor %vm1981, %vm1982
        %v1984 = vsel %vm1983, %v1975, %v1980
        %v1985 = vrsqrt.pop %v1923
        %v1986 = vmul.f32 %v1985, %v1923
        %v1987 = vmul.f32 %v1986, %v1985
        %v1988 = vmul.f32 0.5, %v1987
        %v1989 = vsub.f32 1.5, %v1988
        %v1990 = vmul.f32 %v1985, %v1989
        %vm1991 = vweird.f32 %v1923
        %vm1992 = vweird.f32 %v1985
        %vm1993 = vmor %vm1991, %vm1992
        %v1994 = vsel %vm1993, %v1985, %v1990
        %v1995 = vrsqrt.pop %v1924
        %v1996 = vmul.f32 %v1995, %v1924
        %v1997 = vmul.f32 %v1996, %v1995
        %v1998 = vmul.f32 0.5, %v1997
        %v1999 = vsub.f32 1.5, %v1998
        %v2000 = vmul.f32 %v1995, %v1999
        %vm2001 = vweird.f32 %v1924
        %vm2002 = vweird.f32 %v1995
        %vm2003 = vmor %vm2001, %vm2002
        %v2004 = vsel %vm2003, %v1995, %v2000
        %v2005 = vmul.f32 %v1869, %v1934
        %v2006 = vmul.f32 %v1870, %v1944
        %v2007 = vmul.f32 %v1871, %v1954
        %v2008 = vmul.f32 %v1872, %v1964
        %v2009 = vmul.f32 %v1873, %v1974
        %v2010 = vmul.f32 %v1874, %v1984
        %v2011 = vmul.f32 %v1875, %v1994
        %v2012 = vmul.f32 %v1876, %v2004
        %v2014 = vperm.slane %v1828, 0
        %v2016 = vmul.f32 %v2005, %v2014
        %v2017 = vmul.f32 %v2006, %v2014
        %v2018 = vmul.f32 %v2007, %v2014
        %v2019 = vmul.f32 %v2008, %v2014
        %v2020 = vmul.f32 %v2009, %v2014
        %v2021 = vmul.f32 %v2010, %v2014
        %v2022 = vmul.f32 %v2011, %v2014
        %v2023 = vmul.f32 %v2012, %v2014
        %v2025 = vperm.slane %v1829, 0
        %v2027 = vadd.f32 %v2016, %v2025
        %v2028 = vadd.f32 %v2017, %v2025
        %v2029 = vadd.f32 %v2018, %v2025
        %v2030 = vadd.f32 %v2019, %v2025
        %v2031 = vadd.f32 %v2020, %v2025
        %v2032 = vadd.f32 %v2021, %v2025
        %v2033 = vadd.f32 %v2022, %v2025
        %v2034 = vadd.f32 %v2023, %v2025
        %v2035 = vmul.f32 %v2027, %v657
        %v2036 = vmul.f32 %v2028, %v662
        %v2037 = vmul.f32 %v2029, %v667
        %v2038 = vmul.f32 %v2030, %v672
        %v2039 = vmul.f32 %v2031, %v677
        %v2040 = vmul.f32 %v2032, %v682
        %v2041 = vmul.f32 %v2033, %v687
        %v2042 = vmul.f32 %v2034, %v692
        %v2043 = vld [vmem:[%s11] sm:$0xf]
        %v2044 = vld [vmem:[%s11 + $0x4] sm:$0xf]
        %v2045 = vld [vmem:[%s11 + $0x8] sm:$0xf]
        %v2046 = vld [vmem:[%s11 + $0xc] sm:$0xf]
        %v2047 = vld [vmem:[%s11 + $0x10] sm:$0xf]
        %v2048 = vld [vmem:[%s11 + $0x14] sm:$0xf]
        %v2049 = vld [vmem:[%s11 + $0x18] sm:$0xf]
        %v2050 = vld [vmem:[%s11 + $0x1c] sm:$0xf]
        %v2051 = vld [vmem:[%s11 + $0x20] sm:$0xf]
        %v2052 = vld [vmem:[%s11 + $0x24] sm:$0xf]
        %v2053 = vld [vmem:[%s11 + $0x28] sm:$0xf]
        %v2054 = vld [vmem:[%s11 + $0x2c] sm:$0xf]
        %v2055 = vld [vmem:[%s12] sm:$0x1]
        %vm2064 = vcmask 1041408
        %v2065 = vrot.slane %v2035, 6
        %v2066 = vrot.slane %v2036, 6
        %v2067 = vsel %vm2064, %v2065, %v2066
        %v2068 = vrot.slane %v2037, 6
        %v2069 = vsel %vm2064, %v2066, %v2068
        %v2070 = vrot.slane %v2038, 6
        %v2071 = vsel %vm2064, %v2068, %v2070
        %v2072 = vrot.slane %v2039, 6
        %v2073 = vsel %vm2064, %v2070, %v2072
        %v2074 = vrot.slane %v2040, 6
        %v2075 = vsel %vm2064, %v2072, %v2074
        %v2076 = vrot.slane %v2041, 6
        %v2077 = vsel %vm2064, %v2074, %v2076
        %v2078 = vrot.slane %v2042, 6
        %v2079 = vsel %vm2064, %v2076, %v2078
        %v2088 = vsel %vm2064, 0.0, %v2065
        %v2089 = vpack.c.bf16 %v2067, %v2088
        %v2090 = vpack.c.bf16 %v2071, %v2069
        %v2091 = vpack.c.bf16 %v2075, %v2073
        %v2092 = vpack.c.bf16 %v2079, %v2077
        %v2093 = vrot.slane %v2035, 7
        %v2094 = vrot.slane %v2036, 7
        %v2095 = vsel %vm734, %v2093, %v2094
        %v2096 = vrot.slane %v2037, 7
        %v2097 = vsel %vm734, %v2094, %v2096
        %v2098 = vrot.slane %v2038, 7
        %v2099 = vsel %vm734, %v2096, %v2098
        %v2100 = vrot.slane %v2039, 7
        %v2101 = vsel %vm734, %v2098, %v2100
        %v2102 = vrot.slane %v2040, 7
        %v2103 = vsel %vm734, %v2100, %v2102
        %v2104 = vrot.slane %v2041, 7
        %v2105 = vsel %vm734, %v2102, %v2104
        %v2106 = vrot.slane %v2042, 7
        %v2107 = vsel %vm734, %v2104, %v2106
        %v2116 = vsel %vm734, 0.0, %v2093
        %v2117 = vpack.c.bf16 %v2095, %v2116
        %v2118 = vpack.c.bf16 %v2099, %v2097
        %v2119 = vpack.c.bf16 %v2103, %v2101
        %v2120 = vpack.c.bf16 %v2107, %v2105
        %v2125 = vunpack.c.l.b16 %v2047
        %v2126 = vunpack.c.l.b16 %v2048
        %v2127 = vunpack.c.l.b16 %v2049
        %v2128 = vunpack.c.l.b16 %v2050
        %v2129 = vpack.c.b16 %v2126, %v2125
        %v2130 = vpack.c.b16 %v2128, %v2127
        %v2134 = vsel %vm779, %v2117, 0
        %v2137 = vsel %vm779, %v2118, 0
        %v2140 = vsel %vm779, %v2119, 0
        %v2143 = vsel %vm779, %v2120, 0
        %2145 = vmatpush.bf16.msra.mxu0 0
        %2146 = vmatpush.bf16.msra.mxu0 0
        %2147 = vmatpush.bf16.msra.mxu0 0
        %2148 = vmatpush.bf16.msra.mxu0 0
        %2149 = vmatpush.bf16.msra.mxu0 0
        %2150 = vmatpush.bf16.msra.mxu0 0
        %2151 = vmatpush.bf16.msra.mxu0 %v2130
        %2152 = vmatpush.bf16.msra.mxu0 %v2129
        %2153 = vmatmul.bf16.gmra.mxu0 %v2134
        %v2154 = vpop.f32.mrf.mxu0
        %v2155 = vadd.f32 0.0, %v2154
        %v2156 = vpop.f32.mrf.mxu0
        %v2157 = vadd.f32 0.0, %v2156
        %2158 = vmatmul.bf16.gmra.mxu0 %v2137
        %v2159 = vpop.f32.mrf.mxu0
        %v2160 = vadd.f32 0.0, %v2159
        %v2161 = vpop.f32.mrf.mxu0
        %v2162 = vadd.f32 0.0, %v2161
        %2163 = vmatmul.bf16.gmra.mxu0 %v2140
        %v2164 = vpop.f32.mrf.mxu0
        %v2165 = vadd.f32 0.0, %v2164
        %v2166 = vpop.f32.mrf.mxu0
        %v2167 = vadd.f32 0.0, %v2166
        %2168 = vmatmul.bf16.gmra.mxu0 %v2143
        %v2169 = vpop.f32.mrf.mxu0
        %v2170 = vadd.f32 0.0, %v2169
        %v2171 = vpop.f32.mrf.mxu0
        %v2172 = vadd.f32 0.0, %v2171
        %2173 = vdwg.mxu0
        %v2178 = vunpack.c.l.b16 %v2043
        %v2179 = vunpack.c.l.b16 %v2044
        %v2180 = vunpack.c.l.b16 %v2045
        %v2181 = vunpack.c.l.b16 %v2046
        %v2182 = vpack.c.b16 %v2179, %v2178
        %v2183 = vpack.c.b16 %v2181, %v2180
        %v2187 = vsel %vm779, %v2089, 0
        %v2190 = vsel %vm779, %v2090, 0
        %v2193 = vsel %vm779, %v2091, 0
        %v2196 = vsel %vm779, %v2092, 0
        %2198 = vmatpush.bf16.msra.mxu0 0
        %2199 = vmatpush.bf16.msra.mxu0 0
        %2200 = vmatpush.bf16.msra.mxu0 0
        %2201 = vmatpush.bf16.msra.mxu0 0
        %2202 = vmatpush.bf16.msra.mxu0 0
        %2203 = vmatpush.bf16.msra.mxu0 0
        %2204 = vmatpush.bf16.msra.mxu0 %v2183
        %2205 = vmatpush.bf16.msra.mxu0 %v2182
        %2206 = vmatmul.bf16.gmra.mxu0 %v2187
        %v2207 = vpop.f32.mrf.mxu0
        %v2208 = vadd.f32 %v2155, %v2207
        %v2209 = vpop.f32.mrf.mxu0
        %v2210 = vadd.f32 %v2157, %v2209
        %2211 = vmatmul.bf16.gmra.mxu0 %v2190
        %v2212 = vpop.f32.mrf.mxu0
        %v2213 = vadd.f32 %v2160, %v2212
        %v2214 = vpop.f32.mrf.mxu0
        %v2215 = vadd.f32 %v2162, %v2214
        %2216 = vmatmul.bf16.gmra.mxu0 %v2193
        %v2217 = vpop.f32.mrf.mxu0
        %v2218 = vadd.f32 %v2165, %v2217
        %v2219 = vpop.f32.mrf.mxu0
        %v2220 = vadd.f32 %v2167, %v2219
        %2221 = vmatmul.bf16.gmra.mxu0 %v2196
        %v2222 = vpop.f32.mrf.mxu0
        %v2223 = vadd.f32 %v2170, %v2222
        %v2224 = vpop.f32.mrf.mxu0
        %v2225 = vadd.f32 %v2172, %v2224
        %2226 = vdwg.mxu0
        %v2227 = vpack.c.bf16 %v2036, %v2035
        %v2228 = vpack.c.bf16 %v2038, %v2037
        %v2229 = vpack.c.bf16 %v2040, %v2039
        %v2230 = vpack.c.bf16 %v2042, %v2041
        %v2235 = vunpack.c.l.b16 %v2051
        %v2236 = vunpack.c.l.b16 %v2052
        %v2237 = vunpack.c.l.b16 %v2053
        %v2238 = vunpack.c.l.b16 %v2054
        %v2239 = vpack.c.b16 %v2236, %v2235
        %v2240 = vpack.c.b16 %v2238, %v2237
        %v2244 = vsel %vm779, %v2227, 0
        %v2247 = vsel %vm779, %v2228, 0
        %v2250 = vsel %vm779, %v2229, 0
        %v2253 = vsel %vm779, %v2230, 0
        %2255 = vmatpush.bf16.msra.mxu0 0
        %2256 = vmatpush.bf16.msra.mxu0 0
        %2257 = vmatpush.bf16.msra.mxu0 0
        %2258 = vmatpush.bf16.msra.mxu0 0
        %2259 = vmatpush.bf16.msra.mxu0 0
        %2260 = vmatpush.bf16.msra.mxu0 0
        %2261 = vmatpush.bf16.msra.mxu0 %v2240
        %2262 = vmatpush.bf16.msra.mxu0 %v2239
        %2263 = vmatmul.bf16.gmra.mxu0 %v2244
        %v2264 = vpop.f32.mrf.mxu0
        %v2265 = vadd.f32 0.0, %v2264
        %v2266 = vpop.f32.mrf.mxu0
        %v2267 = vadd.f32 0.0, %v2266
        %2268 = vmatmul.bf16.gmra.mxu0 %v2247
        %v2269 = vpop.f32.mrf.mxu0
        %v2270 = vadd.f32 0.0, %v2269
        %v2271 = vpop.f32.mrf.mxu0
        %v2272 = vadd.f32 0.0, %v2271
        %2273 = vmatmul.bf16.gmra.mxu0 %v2250
        %v2274 = vpop.f32.mrf.mxu0
        %v2275 = vadd.f32 0.0, %v2274
        %v2276 = vpop.f32.mrf.mxu0
        %v2277 = vadd.f32 0.0, %v2276
        %2278 = vmatmul.bf16.gmra.mxu0 %v2253
        %v2279 = vpop.f32.mrf.mxu0
        %v2280 = vadd.f32 0.0, %v2279
        %v2281 = vpop.f32.mrf.mxu0
        %v2282 = vadd.f32 0.0, %v2281
        %2283 = vdwg.mxu0
        %v2284 = vadd.f32 %v2208, %v2265
        %v2285 = vadd.f32 %v2210, %v2267
        %v2286 = vadd.f32 %v2213, %v2270
        %v2287 = vadd.f32 %v2215, %v2272
        %v2288 = vadd.f32 %v2218, %v2275
        %v2289 = vadd.f32 %v2220, %v2277
        %v2290 = vadd.f32 %v2223, %v2280
        %v2291 = vadd.f32 %v2225, %v2282
        %v2293 = vperm.slane %v2055, 0
        %v2295 = vadd.f32 %v2284, %v2293
        %v2296 = vadd.f32 %v2285, %v2293
        %v2297 = vadd.f32 %v2286, %v2293
        %v2298 = vadd.f32 %v2287, %v2293
        %v2299 = vadd.f32 %v2288, %v2293
        %v2300 = vadd.f32 %v2289, %v2293
        %v2301 = vadd.f32 %v2290, %v2293
        %v2302 = vadd.f32 %v2291, %v2293
        %v2303 = vmax.f32 %v2295, 0.0
        %v2304 = vmax.f32 %v2296, 0.0
        %v2305 = vmax.f32 %v2297, 0.0
        %v2306 = vmax.f32 %v2298, 0.0
        %v2307 = vmax.f32 %v2299, 0.0
        %v2308 = vmax.f32 %v2300, 0.0
        %v2309 = vmax.f32 %v2301, 0.0
        %v2310 = vmax.f32 %v2302, 0.0
        %v2311 = vmul.f32 %v2303, %v657
        %v2312 = vmul.f32 %v2304, %v662
        %v2313 = vmul.f32 %v2305, %v667
        %v2314 = vmul.f32 %v2306, %v672
        %v2315 = vmul.f32 %v2307, %v677
        %v2316 = vmul.f32 %v2308, %v682
        %v2317 = vmul.f32 %v2309, %v687
        %v2318 = vmul.f32 %v2310, %v692
        %v2319 = vld [vmem:[%s13] sm:$0xf]
        %v2320 = vld [vmem:[%s13 + $0x4] sm:$0xf]
        %v2321 = vld [vmem:[%s13 + $0x8] sm:$0xf]
        %v2322 = vld [vmem:[%s13 + $0xc] sm:$0xf]
        %v2323 = vld [vmem:[%s13 + $0x10] sm:$0xf]
        %v2324 = vld [vmem:[%s13 + $0x14] sm:$0xf]
        %v2325 = vld [vmem:[%s13 + $0x18] sm:$0xf]
        %v2326 = vld [vmem:[%s13 + $0x1c] sm:$0xf]
        %v2327 = vld [vmem:[%s13 + $0x20] sm:$0xf]
        %v2328 = vld [vmem:[%s13 + $0x24] sm:$0xf]
        %v2329 = vld [vmem:[%s13 + $0x28] sm:$0xf]
        %v2330 = vld [vmem:[%s13 + $0x2c] sm:$0xf]
        %v2331 = vld [vmem:[%s13 + $0x30] sm:$0xf]
        %v2332 = vld [vmem:[%s13 + $0x34] sm:$0xf]
        %v2333 = vld [vmem:[%s13 + $0x38] sm:$0xf]
        %v2334 = vld [vmem:[%s13 + $0x3c] sm:$0xf]
        %v2335 = vld [vmem:[%s13 + $0x40] sm:$0xf]
        %v2336 = vld [vmem:[%s13 + $0x44] sm:$0xf]
        %v2337 = vld [vmem:[%s13 + $0x48] sm:$0xf]
        %v2338 = vld [vmem:[%s13 + $0x4c] sm:$0xf]
        %v2339 = vld [vmem:[%s13 + $0x50] sm:$0xf]
        %v2340 = vld [vmem:[%s13 + $0x54] sm:$0xf]
        %v2341 = vld [vmem:[%s13 + $0x58] sm:$0xf]
        %v2342 = vld [vmem:[%s13 + $0x5c] sm:$0xf]
        %v2343 = vld [vmem:[%s14] sm:$0x1]
        %v2352 = vrot.slane %v2311, 6
        %v2353 = vrot.slane %v2312, 6
        %v2354 = vsel %vm2064, %v2352, %v2353
        %v2355 = vrot.slane %v2313, 6
        %v2356 = vsel %vm2064, %v2353, %v2355
        %v2357 = vrot.slane %v2314, 6
        %v2358 = vsel %vm2064, %v2355, %v2357
        %v2359 = vrot.slane %v2315, 6
        %v2360 = vsel %vm2064, %v2357, %v2359
        %v2361 = vrot.slane %v2316, 6
        %v2362 = vsel %vm2064, %v2359, %v2361
        %v2363 = vrot.slane %v2317, 6
        %v2364 = vsel %vm2064, %v2361, %v2363
        %v2365 = vrot.slane %v2318, 6
        %v2366 = vsel %vm2064, %v2363, %v2365
        %v2375 = vsel %vm2064, 0.0, %v2352
        %v2376 = vpack.c.bf16 %v2354, %v2375
        %v2377 = vpack.c.bf16 %v2358, %v2356
        %v2378 = vpack.c.bf16 %v2362, %v2360
        %v2379 = vpack.c.bf16 %v2366, %v2364
        %v2380 = vrot.slane %v2311, 7
        %v2381 = vrot.slane %v2312, 7
        %v2382 = vsel %vm734, %v2380, %v2381
        %v2383 = vrot.slane %v2313, 7
        %v2384 = vsel %vm734, %v2381, %v2383
        %v2385 = vrot.slane %v2314, 7
        %v2386 = vsel %vm734, %v2383, %v2385
        %v2387 = vrot.slane %v2315, 7
        %v2388 = vsel %vm734, %v2385, %v2387
        %v2389 = vrot.slane %v2316, 7
        %v2390 = vsel %vm734, %v2387, %v2389
        %v2391 = vrot.slane %v2317, 7
        %v2392 = vsel %vm734, %v2389, %v2391
        %v2393 = vrot.slane %v2318, 7
        %v2394 = vsel %vm734, %v2391, %v2393
        %v2403 = vsel %vm734, 0.0, %v2380
        %v2404 = vpack.c.bf16 %v2382, %v2403
        %v2405 = vpack.c.bf16 %v2386, %v2384
        %v2406 = vpack.c.bf16 %v2390, %v2388
        %v2407 = vpack.c.bf16 %v2394, %v2392
        %v2416 = vunpack.c.l.b16 %v2327
        %v2417 = vunpack.c.l.b16 %v2328
        %v2418 = vunpack.c.l.b16 %v2329
        %v2419 = vunpack.c.l.b16 %v2330
        %v2420 = vunpack.c.l.b16 %v2331
        %v2421 = vunpack.c.l.b16 %v2332
        %v2422 = vunpack.c.l.b16 %v2333
        %v2423 = vunpack.c.l.b16 %v2334
        %v2424 = vpack.c.b16 %v2417, %v2416
        %v2425 = vpack.c.b16 %v2419, %v2418
        %v2426 = vpack.c.b16 %v2421, %v2420
        %v2427 = vpack.c.b16 %v2423, %v2422
        %v2433 = vsel %vm1130, %v2404, 0
        %v2436 = vsel %vm1130, %v2405, 0
        %v2439 = vsel %vm1130, %v2406, 0
        %v2442 = vsel %vm1130, %v2407, 0
        %2444 = vmatpush.bf16.msra.mxu0 0
        %2445 = vmatpush.bf16.msra.mxu0 0
        %2446 = vmatpush.bf16.msra.mxu0 0
        %2447 = vmatpush.bf16.msra.mxu0 0
        %2448 = vmatpush.bf16.msra.mxu0 %v2427
        %2449 = vmatpush.bf16.msra.mxu0 %v2426
        %2450 = vmatpush.bf16.msra.mxu0 %v2425
        %2451 = vmatpush.bf16.msra.mxu0 %v2424
        %2452 = vmatmul.bf16.gmra.mxu0 %v2433
        %v2453 = vpop.f32.mrf.mxu0
        %v2454 = vadd.f32 0.0, %v2453
        %v2455 = vpop.f32.mrf.mxu0
        %v2456 = vadd.f32 0.0, %v2455
        %2457 = vmatmul.bf16.gmra.mxu0 %v2436
        %v2458 = vpop.f32.mrf.mxu0
        %v2459 = vadd.f32 0.0, %v2458
        %v2460 = vpop.f32.mrf.mxu0
        %v2461 = vadd.f32 0.0, %v2460
        %2462 = vmatmul.bf16.gmra.mxu0 %v2439
        %v2463 = vpop.f32.mrf.mxu0
        %v2464 = vadd.f32 0.0, %v2463
        %v2465 = vpop.f32.mrf.mxu0
        %v2466 = vadd.f32 0.0, %v2465
        %2467 = vmatmul.bf16.gmra.mxu0 %v2442
        %v2468 = vpop.f32.mrf.mxu0
        %v2469 = vadd.f32 0.0, %v2468
        %v2470 = vpop.f32.mrf.mxu0
        %v2471 = vadd.f32 0.0, %v2470
        %2472 = vdwg.mxu0
        %v2481 = vunpack.c.l.b16 %v2319
        %v2482 = vunpack.c.l.b16 %v2320
        %v2483 = vunpack.c.l.b16 %v2321
        %v2484 = vunpack.c.l.b16 %v2322
        %v2485 = vunpack.c.l.b16 %v2323
        %v2486 = vunpack.c.l.b16 %v2324
        %v2487 = vunpack.c.l.b16 %v2325
        %v2488 = vunpack.c.l.b16 %v2326
        %v2489 = vpack.c.b16 %v2482, %v2481
        %v2490 = vpack.c.b16 %v2484, %v2483
        %v2491 = vpack.c.b16 %v2486, %v2485
        %v2492 = vpack.c.b16 %v2488, %v2487
        %v2498 = vsel %vm1130, %v2376, 0
        %v2501 = vsel %vm1130, %v2377, 0
        %v2504 = vsel %vm1130, %v2378, 0
        %v2507 = vsel %vm1130, %v2379, 0
        %2509 = vmatpush.bf16.msra.mxu0 0
        %2510 = vmatpush.bf16.msra.mxu0 0
        %2511 = vmatpush.bf16.msra.mxu0 0
        %2512 = vmatpush.bf16.msra.mxu0 0
        %2513 = vmatpush.bf16.msra.mxu0 %v2492
        %2514 = vmatpush.bf16.msra.mxu0 %v2491
        %2515 = vmatpush.bf16.msra.mxu0 %v2490
        %2516 = vmatpush.bf16.msra.mxu0 %v2489
        %2517 = vmatmul.bf16.gmra.mxu0 %v2498
        %v2518 = vpop.f32.mrf.mxu0
        %v2519 = vadd.f32 %v2454, %v2518
        %v2520 = vpop.f32.mrf.mxu0
        %v2521 = vadd.f32 %v2456, %v2520
        %2522 = vmatmul.bf16.gmra.mxu0 %v2501
        %v2523 = vpop.f32.mrf.mxu0
        %v2524 = vadd.f32 %v2459, %v2523
        %v2525 = vpop.f32.mrf.mxu0
        %v2526 = vadd.f32 %v2461, %v2525
        %2527 = vmatmul.bf16.gmra.mxu0 %v2504
        %v2528 = vpop.f32.mrf.mxu0
        %v2529 = vadd.f32 %v2464, %v2528
        %v2530 = vpop.f32.mrf.mxu0
        %v2531 = vadd.f32 %v2466, %v2530
        %2532 = vmatmul.bf16.gmra.mxu0 %v2507
        %v2533 = vpop.f32.mrf.mxu0
        %v2534 = vadd.f32 %v2469, %v2533
        %v2535 = vpop.f32.mrf.mxu0
        %v2536 = vadd.f32 %v2471, %v2535
        %2537 = vdwg.mxu0
        %v2538 = vpack.c.bf16 %v2312, %v2311
        %v2539 = vpack.c.bf16 %v2314, %v2313
        %v2540 = vpack.c.bf16 %v2316, %v2315
        %v2541 = vpack.c.bf16 %v2318, %v2317
        %v2550 = vunpack.c.l.b16 %v2335
        %v2551 = vunpack.c.l.b16 %v2336
        %v2552 = vunpack.c.l.b16 %v2337
        %v2553 = vunpack.c.l.b16 %v2338
        %v2554 = vunpack.c.l.b16 %v2339
        %v2555 = vunpack.c.l.b16 %v2340
        %v2556 = vunpack.c.l.b16 %v2341
        %v2557 = vunpack.c.l.b16 %v2342
        %v2558 = vpack.c.b16 %v2551, %v2550
        %v2559 = vpack.c.b16 %v2553, %v2552
        %v2560 = vpack.c.b16 %v2555, %v2554
        %v2561 = vpack.c.b16 %v2557, %v2556
        %v2567 = vsel %vm1130, %v2538, 0
        %v2570 = vsel %vm1130, %v2539, 0
        %v2573 = vsel %vm1130, %v2540, 0
        %v2576 = vsel %vm1130, %v2541, 0
        %2578 = vmatpush.bf16.msra.mxu0 0
        %2579 = vmatpush.bf16.msra.mxu0 0
        %2580 = vmatpush.bf16.msra.mxu0 0
        %2581 = vmatpush.bf16.msra.mxu0 0
        %2582 = vmatpush.bf16.msra.mxu0 %v2561
        %2583 = vmatpush.bf16.msra.mxu0 %v2560
        %2584 = vmatpush.bf16.msra.mxu0 %v2559
        %2585 = vmatpush.bf16.msra.mxu0 %v2558
        %2586 = vmatmul.bf16.gmra.mxu0 %v2567
        %v2587 = vpop.f32.mrf.mxu0
        %v2588 = vadd.f32 0.0, %v2587
        %v2589 = vpop.f32.mrf.mxu0
        %v2590 = vadd.f32 0.0, %v2589
        %2591 = vmatmul.bf16.gmra.mxu0 %v2570
        %v2592 = vpop.f32.mrf.mxu0
        %v2593 = vadd.f32 0.0, %v2592
        %v2594 = vpop.f32.mrf.mxu0
        %v2595 = vadd.f32 0.0, %v2594
        %2596 = vmatmul.bf16.gmra.mxu0 %v2573
        %v2597 = vpop.f32.mrf.mxu0
        %v2598 = vadd.f32 0.0, %v2597
        %v2599 = vpop.f32.mrf.mxu0
        %v2600 = vadd.f32 0.0, %v2599
        %2601 = vmatmul.bf16.gmra.mxu0 %v2576
        %v2602 = vpop.f32.mrf.mxu0
        %v2603 = vadd.f32 0.0, %v2602
        %v2604 = vpop.f32.mrf.mxu0
        %v2605 = vadd.f32 0.0, %v2604
        %2606 = vdwg.mxu0
        %v2607 = vadd.f32 %v2519, %v2588
        %v2608 = vadd.f32 %v2521, %v2590
        %v2609 = vadd.f32 %v2524, %v2593
        %v2610 = vadd.f32 %v2526, %v2595
        %v2611 = vadd.f32 %v2529, %v2598
        %v2612 = vadd.f32 %v2531, %v2600
        %v2613 = vadd.f32 %v2534, %v2603
        %v2614 = vadd.f32 %v2536, %v2605
        %v2616 = vperm.slane %v2343, 0
        %v2618 = vadd.f32 %v2607, %v2616
        %v2619 = vadd.f32 %v2608, %v2616
        %v2620 = vadd.f32 %v2609, %v2616
        %v2621 = vadd.f32 %v2610, %v2616
        %v2622 = vadd.f32 %v2611, %v2616
        %v2623 = vadd.f32 %v2612, %v2616
        %v2624 = vadd.f32 %v2613, %v2616
        %v2625 = vadd.f32 %v2614, %v2616
        %v2626 = vmul.f32 %v2618, %v657
        %v2627 = vmul.f32 %v2619, %v662
        %v2628 = vmul.f32 %v2620, %v667
        %v2629 = vmul.f32 %v2621, %v672
        %v2630 = vmul.f32 %v2622, %v677
        %v2631 = vmul.f32 %v2623, %v682
        %v2632 = vmul.f32 %v2624, %v687
        %v2633 = vmul.f32 %v2625, %v692
        %v2634 = vadd.f32 %v2027, %v2626
        %v2635 = vadd.f32 %v2028, %v2627
        %v2636 = vadd.f32 %v2029, %v2628
        %v2637 = vadd.f32 %v2030, %v2629
        %v2638 = vadd.f32 %v2031, %v2630
        %v2639 = vadd.f32 %v2032, %v2631
        %v2640 = vadd.f32 %v2033, %v2632
        %v2641 = vadd.f32 %v2034, %v2633
        %v2642 = vld [vmem:[%s15] sm:$0x1]
        %v2643 = vld [vmem:[%s16] sm:$0x1]
        %v2644 = vsel %vm779, %v2634, 0.0
        %2645 = vadd.xlane.f32.xlu0 %v2644
        %v2646 = vpop.xlane.xlu0 %2645
        %v2647 = vsel %vm779, %v2635, 0.0
        %2648 = vadd.xlane.f32.xlu0 %v2647
        %v2649 = vpop.xlane.xlu0 %2648
        %v2650 = vsel %vm779, %v2636, 0.0
        %2651 = vadd.xlane.f32.xlu0 %v2650
        %v2652 = vpop.xlane.xlu0 %2651
        %v2653 = vsel %vm779, %v2637, 0.0
        %2654 = vadd.xlane.f32.xlu0 %v2653
        %v2655 = vpop.xlane.xlu0 %2654
        %v2656 = vsel %vm779, %v2638, 0.0
        %2657 = vadd.xlane.f32.xlu0 %v2656
        %v2658 = vpop.xlane.xlu0 %2657
        %v2659 = vsel %vm779, %v2639, 0.0
        %2660 = vadd.xlane.f32.xlu0 %v2659
        %v2661 = vpop.xlane.xlu0 %2660
        %v2662 = vsel %vm779, %v2640, 0.0
        %2663 = vadd.xlane.f32.xlu0 %v2662
        %v2664 = vpop.xlane.xlu0 %2663
        %v2665 = vsel %vm779, %v2641, 0.0
        %2666 = vadd.xlane.f32.xlu0 %v2665
        %v2667 = vpop.xlane.xlu0 %2666
        %v2668 = vmul.f32 %v2646, %v1860
        %v2669 = vmul.f32 %v2649, %v1860
        %v2670 = vmul.f32 %v2652, %v1860
        %v2671 = vmul.f32 %v2655, %v1860
        %v2672 = vmul.f32 %v2658, %v1860
        %v2673 = vmul.f32 %v2661, %v1860
        %v2674 = vmul.f32 %v2664, %v1860
        %v2675 = vmul.f32 %v2667, %v1860
        %v2676 = vsub.f32 %v2634, %v2668
        %v2677 = vsub.f32 %v2635, %v2669
        %v2678 = vsub.f32 %v2636, %v2670
        %v2679 = vsub.f32 %v2637, %v2671
        %v2680 = vsub.f32 %v2638, %v2672
        %v2681 = vsub.f32 %v2639, %v2673
        %v2682 = vsub.f32 %v2640, %v2674
        %v2683 = vsub.f32 %v2641, %v2675
        %v2684 = vmul.f32 %v2676, %v2676
        %v2685 = vmul.f32 %v2677, %v2677
        %v2686 = vmul.f32 %v2678, %v2678
        %v2687 = vmul.f32 %v2679, %v2679
        %v2688 = vmul.f32 %v2680, %v2680
        %v2689 = vmul.f32 %v2681, %v2681
        %v2690 = vmul.f32 %v2682, %v2682
        %v2691 = vmul.f32 %v2683, %v2683
        %v2692 = vsel %vm779, %v2684, 0.0
        %2693 = vadd.xlane.f32.xlu0 %v2692
        %v2694 = vpop.xlane.xlu0 %2693
        %v2695 = vsel %vm779, %v2685, 0.0
        %2696 = vadd.xlane.f32.xlu0 %v2695
        %v2697 = vpop.xlane.xlu0 %2696
        %v2698 = vsel %vm779, %v2686, 0.0
        %2699 = vadd.xlane.f32.xlu0 %v2698
        %v2700 = vpop.xlane.xlu0 %2699
        %v2701 = vsel %vm779, %v2687, 0.0
        %2702 = vadd.xlane.f32.xlu0 %v2701
        %v2703 = vpop.xlane.xlu0 %2702
        %v2704 = vsel %vm779, %v2688, 0.0
        %2705 = vadd.xlane.f32.xlu0 %v2704
        %v2706 = vpop.xlane.xlu0 %2705
        %v2707 = vsel %vm779, %v2689, 0.0
        %2708 = vadd.xlane.f32.xlu0 %v2707
        %v2709 = vpop.xlane.xlu0 %2708
        %v2710 = vsel %vm779, %v2690, 0.0
        %2711 = vadd.xlane.f32.xlu0 %v2710
        %v2712 = vpop.xlane.xlu0 %2711
        %v2713 = vsel %vm779, %v2691, 0.0
        %2714 = vadd.xlane.f32.xlu0 %v2713
        %v2715 = vpop.xlane.xlu0 %2714
        %v2716 = vmul.f32 %v2694, %v1860
        %v2717 = vmul.f32 %v2697, %v1860
        %v2718 = vmul.f32 %v2700, %v1860
        %v2719 = vmul.f32 %v2703, %v1860
        %v2720 = vmul.f32 %v2706, %v1860
        %v2721 = vmul.f32 %v2709, %v1860
        %v2722 = vmul.f32 %v2712, %v1860
        %v2723 = vmul.f32 %v2715, %v1860
        %v2724 = vadd.f32 %v2716, 1e-05
        %v2725 = vadd.f32 %v2717, 1e-05
        %v2726 = vadd.f32 %v2718, 1e-05
        %v2727 = vadd.f32 %v2719, 1e-05
        %v2728 = vadd.f32 %v2720, 1e-05
        %v2729 = vadd.f32 %v2721, 1e-05
        %v2730 = vadd.f32 %v2722, 1e-05
        %v2731 = vadd.f32 %v2723, 1e-05
        %v2732 = vrsqrt.pop %v2724
        %v2733 = vmul.f32 %v2732, %v2724
        %v2734 = vmul.f32 %v2733, %v2732
        %v2735 = vmul.f32 0.5, %v2734
        %v2736 = vsub.f32 1.5, %v2735
        %v2737 = vmul.f32 %v2732, %v2736
        %vm2738 = vweird.f32 %v2724
        %vm2739 = vweird.f32 %v2732
        %vm2740 = vmor %vm2738, %vm2739
        %v2741 = vsel %vm2740, %v2732, %v2737
        %v2742 = vrsqrt.pop %v2725
        %v2743 = vmul.f32 %v2742, %v2725
        %v2744 = vmul.f32 %v2743, %v2742
        %v2745 = vmul.f32 0.5, %v2744
        %v2746 = vsub.f32 1.5, %v2745
        %v2747 = vmul.f32 %v2742, %v2746
        %vm2748 = vweird.f32 %v2725
        %vm2749 = vweird.f32 %v2742
        %vm2750 = vmor %vm2748, %vm2749
        %v2751 = vsel %vm2750, %v2742, %v2747
        %v2752 = vrsqrt.pop %v2726
        %v2753 = vmul.f32 %v2752, %v2726
        %v2754 = vmul.f32 %v2753, %v2752
        %v2755 = vmul.f32 0.5, %v2754
        %v2756 = vsub.f32 1.5, %v2755
        %v2757 = vmul.f32 %v2752, %v2756
        %vm2758 = vweird.f32 %v2726
        %vm2759 = vweird.f32 %v2752
        %vm2760 = vmor %vm2758, %vm2759
        %v2761 = vsel %vm2760, %v2752, %v2757
        %v2762 = vrsqrt.pop %v2727
        %v2763 = vmul.f32 %v2762, %v2727
        %v2764 = vmul.f32 %v2763, %v2762
        %v2765 = vmul.f32 0.5, %v2764
        %v2766 = vsub.f32 1.5, %v2765
        %v2767 = vmul.f32 %v2762, %v2766
        %vm2768 = vweird.f32 %v2727
        %vm2769 = vweird.f32 %v2762
        %vm2770 = vmor %vm2768, %vm2769
        %v2771 = vsel %vm2770, %v2762, %v2767
        %v2772 = vrsqrt.pop %v2728
        %v2773 = vmul.f32 %v2772, %v2728
        %v2774 = vmul.f32 %v2773, %v2772
        %v2775 = vmul.f32 0.5, %v2774
        %v2776 = vsub.f32 1.5, %v2775
        %v2777 = vmul.f32 %v2772, %v2776
        %vm2778 = vweird.f32 %v2728
        %vm2779 = vweird.f32 %v2772
        %vm2780 = vmor %vm2778, %vm2779
        %v2781 = vsel %vm2780, %v2772, %v2777
        %v2782 = vrsqrt.pop %v2729
        %v2783 = vmul.f32 %v2782, %v2729
        %v2784 = vmul.f32 %v2783, %v2782
        %v2785 = vmul.f32 0.5, %v2784
        %v2786 = vsub.f32 1.5, %v2785
        %v2787 = vmul.f32 %v2782, %v2786
        %vm2788 = vweird.f32 %v2729
        %vm2789 = vweird.f32 %v2782
        %vm2790 = vmor %vm2788, %vm2789
        %v2791 = vsel %vm2790, %v2782, %v2787
        %v2792 = vrsqrt.pop %v2730
        %v2793 = vmul.f32 %v2792, %v2730
        %v2794 = vmul.f32 %v2793, %v2792
        %v2795 = vmul.f32 0.5, %v2794
        %v2796 = vsub.f32 1.5, %v2795
        %v2797 = vmul.f32 %v2792, %v2796
        %vm2798 = vweird.f32 %v2730
        %vm2799 = vweird.f32 %v2792
        %vm2800 = vmor %vm2798, %vm2799
        %v2801 = vsel %vm2800, %v2792, %v2797
        %v2802 = vrsqrt.pop %v2731
        %v2803 = vmul.f32 %v2802, %v2731
        %v2804 = vmul.f32 %v2803, %v2802
        %v2805 = vmul.f32 0.5, %v2804
        %v2806 = vsub.f32 1.5, %v2805
        %v2807 = vmul.f32 %v2802, %v2806
        %vm2808 = vweird.f32 %v2731
        %vm2809 = vweird.f32 %v2802
        %vm2810 = vmor %vm2808, %vm2809
        %v2811 = vsel %vm2810, %v2802, %v2807
        %v2812 = vmul.f32 %v2676, %v2741
        %v2813 = vmul.f32 %v2677, %v2751
        %v2814 = vmul.f32 %v2678, %v2761
        %v2815 = vmul.f32 %v2679, %v2771
        %v2816 = vmul.f32 %v2680, %v2781
        %v2817 = vmul.f32 %v2681, %v2791
        %v2818 = vmul.f32 %v2682, %v2801
        %v2819 = vmul.f32 %v2683, %v2811
        %v2821 = vperm.slane %v2642, 0
        %v2823 = vmul.f32 %v2812, %v2821
        %v2824 = vmul.f32 %v2813, %v2821
        %v2825 = vmul.f32 %v2814, %v2821
        %v2826 = vmul.f32 %v2815, %v2821
        %v2827 = vmul.f32 %v2816, %v2821
        %v2828 = vmul.f32 %v2817, %v2821
        %v2829 = vmul.f32 %v2818, %v2821
        %v2830 = vmul.f32 %v2819, %v2821
        %v2832 = vperm.slane %v2643, 0
        %v2834 = vadd.f32 %v2823, %v2832
        %v2835 = vadd.f32 %v2824, %v2832
        %v2836 = vadd.f32 %v2825, %v2832
        %v2837 = vadd.f32 %v2826, %v2832
        %v2838 = vadd.f32 %v2827, %v2832
        %v2839 = vadd.f32 %v2828, %v2832
        %v2840 = vadd.f32 %v2829, %v2832
        %v2841 = vadd.f32 %v2830, %v2832
        %v2842 = vpack.c.bf16 %v2835, %v2834
        %v2843 = vpack.c.bf16 %v2837, %v2836
        %v2844 = vpack.c.bf16 %v2839, %v2838
        %v2845 = vpack.c.bf16 %v2841, %v2840
        %s2846 = scalar_lea.vmem %s5, 16
        %v2847 = vld [vmem:[%s2846] sm:$0xf]
        %v2848 = vld [vmem:[%s2846 + $0x4] sm:$0xf]
        %v2849 = vld [vmem:[%s2846 + $0x8] sm:$0xf]
        %v2850 = vld [vmem:[%s2846 + $0xc] sm:$0xf]
        %s2851 = scalar_lea.vmem %s6, 1
        %v2852 = vld [vmem:[%s2851] sm:$0x1]
        %v2854 = vperm.slane %v2852, 0
        %v2860 = vunpack.c.l.b16 %v2847
        %v2861 = vunpack.c.l.b16 %v2848
        %v2862 = vunpack.c.l.b16 %v2849
        %v2863 = vunpack.c.l.b16 %v2850
        %v2864 = vpack.c.b16 %v2861, %v2860
        %v2865 = vpack.c.b16 %v2863, %v2862
        %v2869 = vsel %vm779, %v2842, 0
        %v2872 = vsel %vm779, %v2843, 0
        %v2875 = vsel %vm779, %v2844, 0
        %v2878 = vsel %vm779, %v2845, 0
        %2880 = vmatpush.bf16.msra.mxu0 0
        %2881 = vmatpush.bf16.msra.mxu0 0
        %2882 = vmatpush.bf16.msra.mxu0 0
        %2883 = vmatpush.bf16.msra.mxu0 0
        %2884 = vmatpush.bf16.msra.mxu0 0
        %2885 = vmatpush.bf16.msra.mxu0 0
        %2886 = vmatpush.bf16.msra.mxu0 %v2865
        %2887 = vmatpush.bf16.msra.mxu0 %v2864
        %2888 = vmatmul.bf16.gmra.mxu0 %v2869
        %v2889 = vpop.f32.mrf.mxu0
        %v2890 = vadd.f32 %v2854, %v2889
        %v2891 = vpop.f32.mrf.mxu0
        %v2892 = vadd.f32 %v2854, %v2891
        %2893 = vmatmul.bf16.gmra.mxu0 %v2872
        %v2894 = vpop.f32.mrf.mxu0
        %v2895 = vadd.f32 %v2854, %v2894
        %v2896 = vpop.f32.mrf.mxu0
        %v2897 = vadd.f32 %v2854, %v2896
        %2898 = vmatmul.bf16.gmra.mxu0 %v2875
        %v2899 = vpop.f32.mrf.mxu0
        %v2900 = vadd.f32 %v2854, %v2899
        %v2901 = vpop.f32.mrf.mxu0
        %v2902 = vadd.f32 %v2854, %v2901
        %2903 = vmatmul.bf16.gmra.mxu0 %v2878
        %v2904 = vpop.f32.mrf.mxu0
        %v2905 = vadd.f32 %v2854, %v2904
        %v2906 = vpop.f32.mrf.mxu0
        %v2907 = vadd.f32 %v2854, %v2906
        %2908 = vdwg.mxu0
        %s2909 = scalar_lea.vmem %s7, 16
        %v2910 = vld [vmem:[%s2909] sm:$0xf]
        %v2911 = vld [vmem:[%s2909 + $0x4] sm:$0xf]
        %v2912 = vld [vmem:[%s2909 + $0x8] sm:$0xf]
        %v2913 = vld [vmem:[%s2909 + $0xc] sm:$0xf]
        %v2914 = vpack.c.bf16 %v2892, %v2890
        %v2915 = vpack.c.bf16 %v2897, %v2895
        %v2916 = vpack.c.bf16 %v2902, %v2900
        %v2917 = vpack.c.bf16 %v2907, %v2905
        %2922 = vrot.lane.b32.xlu0 %v2914, 96
        %v2923 = vpop.permute.xlu0 %2922
        %2924 = vrot.lane.b32.xlu0 %v2915, 96
        %v2925 = vpop.permute.xlu0 %2924
        %2926 = vrot.lane.b32.xlu0 %v2916, 96
        %v2927 = vpop.permute.xlu0 %2926
        %2928 = vrot.lane.b32.xlu0 %v2917, 96
        %v2929 = vpop.permute.xlu0 %2928
        %v2931 = vsel %vm1068, %v2914, 0
        %v2934 = vsel %vm1068, %v2915, 0
        %v2937 = vsel %vm1068, %v2916, 0
        %v2940 = vsel %vm1068, %v2917, 0
        %v2943 = vsel %vm1068, %v2923, 0
        %v2946 = vsel %vm1068, %v2925, 0
        %v2949 = vsel %vm1068, %v2927, 0
        %v2952 = vsel %vm1068, %v2929, 0
        %2954 = vmatpush.bf16.xpose.msra.mxu0 0
        %2955 = vmatpush.bf16.xpose.msra.mxu0 0
        %2956 = vmatpush.bf16.xpose.msra.mxu0 0
        %2957 = vmatpush.bf16.xpose.msra.mxu0 0
        %2958 = vmatpush.bf16.xpose.msra.mxu0 %v2952
        %2959 = vmatpush.bf16.xpose.msra.mxu0 %v2949
        %2960 = vmatpush.bf16.xpose.msra.mxu0 %v2946
        %2961 = vmatpush.bf16.xpose.msra.mxu0 %v2943
        %2962 = vmatmul.bf16.gmra.mxu0 %v2931
        %v2963 = vpop.f32.mrf.mxu0
        %v2964 = vadd.f32 0.0, %v2963
        %v2965 = vpop.f32.mrf.mxu0
        %v2966 = vadd.f32 0.0, %v2965
        %2967 = vmatmul.bf16.gmra.mxu0 %v2934
        %v2968 = vpop.f32.mrf.mxu0
        %v2969 = vadd.f32 0.0, %v2968
        %v2970 = vpop.f32.mrf.mxu0
        %v2971 = vadd.f32 0.0, %v2970
        %2972 = vmatmul.bf16.gmra.mxu0 %v2937
        %v2973 = vpop.f32.mrf.mxu0
        %v2974 = vadd.f32 0.0, %v2973
        %v2975 = vpop.f32.mrf.mxu0
        %v2976 = vadd.f32 0.0, %v2975
        %2977 = vmatmul.bf16.gmra.mxu0 %v2940
        %v2978 = vpop.f32.mrf.mxu0
        %v2979 = vadd.f32 0.0, %v2978
        %v2980 = vpop.f32.mrf.mxu0
        %v2981 = vadd.f32 0.0, %v2980
        %2982 = vdwg.mxu0
        %v2983 = vsel %vm705, %v2964, -10000.0
        %v2984 = vsel %vm706, %v2966, -10000.0
        %v2985 = vsel %vm707, %v2969, -10000.0
        %v2986 = vsel %vm708, %v2971, -10000.0
        %v2987 = vsel %vm709, %v2974, -10000.0
        %v2988 = vsel %vm710, %v2976, -10000.0
        %v2989 = vsel %vm711, %v2979, -10000.0
        %v2990 = vsel %vm712, %v2981, -10000.0
        %v2991 = vsel %vm1130, %v2983, -inf
        %2992 = vmax.xlane.f32.xlu0 %v2991
        %v2993 = vpop.xlane.xlu0 %2992
        %v2994 = vsel %vm1130, %v2984, -inf
        %2995 = vmax.xlane.f32.xlu0 %v2994
        %v2996 = vpop.xlane.xlu0 %2995
        %v2997 = vsel %vm1130, %v2985, -inf
        %2998 = vmax.xlane.f32.xlu0 %v2997
        %v2999 = vpop.xlane.xlu0 %2998
        %v3000 = vsel %vm1130, %v2986, -inf
        %3001 = vmax.xlane.f32.xlu0 %v3000
        %v3002 = vpop.xlane.xlu0 %3001
        %v3003 = vsel %vm1130, %v2987, -inf
        %3004 = vmax.xlane.f32.xlu0 %v3003
        %v3005 = vpop.xlane.xlu0 %3004
        %v3006 = vsel %vm1130, %v2988, -inf
        %3007 = vmax.xlane.f32.xlu0 %v3006
        %v3008 = vpop.xlane.xlu0 %3007
        %v3009 = vsel %vm1130, %v2989, -inf
        %3010 = vmax.xlane.f32.xlu0 %v3009
        %v3011 = vpop.xlane.xlu0 %3010
        %v3012 = vsel %vm1130, %v2990, -inf
        %3013 = vmax.xlane.f32.xlu0 %v3012
        %v3014 = vpop.xlane.xlu0 %3013
        %v3015 = vsub.f32 %v2983, %v2993
        %v3016 = vsub.f32 %v2984, %v2996
        %v3017 = vsub.f32 %v2985, %v2999
        %v3018 = vsub.f32 %v2986, %v3002
        %v3019 = vsub.f32 %v2987, %v3005
        %v3020 = vsub.f32 %v2988, %v3008
        %v3021 = vsub.f32 %v2989, %v3011
        %v3022 = vsub.f32 %v2990, %v3014
        %v3023 = vmul.f32 %v3015, 1.442695
        %v3024 = vpow.pop %v3023
        %v3025 = vmul.f32 %v3016, 1.442695
        %v3026 = vpow.pop %v3025
        %v3027 = vmul.f32 %v3017, 1.442695
        %v3028 = vpow.pop %v3027
        %v3029 = vmul.f32 %v3018, 1.442695
        %v3030 = vpow.pop %v3029
        %v3031 = vmul.f32 %v3019, 1.442695
        %v3032 = vpow.pop %v3031
        %v3033 = vmul.f32 %v3020, 1.442695
        %v3034 = vpow.pop %v3033
        %v3035 = vmul.f32 %v3021, 1.442695
        %v3036 = vpow.pop %v3035
        %v3037 = vmul.f32 %v3022, 1.442695
        %v3038 = vpow.pop %v3037
        %v3039 = vsel %vm1130, %v3024, 0.0
        %3040 = vadd.xlane.f32.xlu0 %v3039
        %v3041 = vpop.xlane.xlu0 %3040
        %v3042 = vsel %vm1130, %v3026, 0.0
        %3043 = vadd.xlane.f32.xlu0 %v3042
        %v3044 = vpop.xlane.xlu0 %3043
        %v3045 = vsel %vm1130, %v3028, 0.0
        %3046 = vadd.xlane.f32.xlu0 %v3045
        %v3047 = vpop.xlane.xlu0 %3046
        %v3048 = vsel %vm1130, %v3030, 0.0
        %3049 = vadd.xlane.f32.xlu0 %v3048
        %v3050 = vpop.xlane.xlu0 %3049
        %v3051 = vsel %vm1130, %v3032, 0.0
        %3052 = vadd.xlane.f32.xlu0 %v3051
        %v3053 = vpop.xlane.xlu0 %3052
        %v3054 = vsel %vm1130, %v3034, 0.0
        %3055 = vadd.xlane.f32.xlu0 %v3054
        %v3056 = vpop.xlane.xlu0 %3055
        %v3057 = vsel %vm1130, %v3036, 0.0
        %3058 = vadd.xlane.f32.xlu0 %v3057
        %v3059 = vpop.xlane.xlu0 %3058
        %v3060 = vsel %vm1130, %v3038, 0.0
        %3061 = vadd.xlane.f32.xlu0 %v3060
        %v3062 = vpop.xlane.xlu0 %3061
        %v3063 = vrcp.pop %v3041
        %v3064 = vmul.f32 %v3041, %v3063
        %v3065 = vsub.f32 1.0, %v3064
        %v3066 = vmul.f32 %v3063, %v3065
        %v3067 = vadd.f32 %v3063, %v3066
        %vm3068 = vweird.f32 %v3041
        %vm3069 = vweird.f32 %v3063
        %vm3070 = vmor %vm3068, %vm3069
        %v3071 = vsel %vm3070, %v3063, %v3067
        %v3072 = vand.u32 2147483647, %v3041
        %vm3073 = vcmp.eq.f32.partialorder %v3072, 8.507059e+37
        %v3074 = vand.u32 %v3041, 2147483648
        %v3075 = vor.u32 1.1754944e-38, %v3074
        %v3076 = vsel %vm3073, %v3075, %v3071
        %v3077 = vmul.f32 %v3024, %v3076
        %v3078 = vrcp.pop %v3044
        %v3079 = vmul.f32 %v3044, %v3078
        %v3080 = vsub.f32 1.0, %v3079
        %v3081 = vmul.f32 %v3078, %v3080
        %v3082 = vadd.f32 %v3078, %v3081
        %vm3083 = vweird.f32 %v3044
        %vm3084 = vweird.f32 %v3078
        %vm3085 = vmor %vm3083, %vm3084
        %v3086 = vsel %vm3085, %v3078, %v3082
        %v3087 = vand.u32 2147483647, %v3044
        %vm3088 = vcmp.eq.f32.partialorder %v3087, 8.507059e+37
        %v3089 = vand.u32 %v3044, 2147483648
        %v3090 = vor.u32 1.1754944e-38, %v3089
        %v3091 = vsel %vm3088, %v3090, %v3086
        %v3092 = vmul.f32 %v3026, %v3091
        %v3093 = vrcp.pop %v3047
        %v3094 = vmul.f32 %v3047, %v3093
        %v3095 = vsub.f32 1.0, %v3094
        %v3096 = vmul.f32 %v3093, %v3095
        %v3097 = vadd.f32 %v3093, %v3096
        %vm3098 = vweird.f32 %v3047
        %vm3099 = vweird.f32 %v3093
        %vm3100 = vmor %vm3098, %vm3099
        %v3101 = vsel %vm3100, %v3093, %v3097
        %v3102 = vand.u32 2147483647, %v3047
        %vm3103 = vcmp.eq.f32.partialorder %v3102, 8.507059e+37
        %v3104 = vand.u32 %v3047, 2147483648
        %v3105 = vor.u32 1.1754944e-38, %v3104
        %v3106 = vsel %vm3103, %v3105, %v3101
        %v3107 = vmul.f32 %v3028, %v3106
        %v3108 = vrcp.pop %v3050
        %v3109 = vmul.f32 %v3050, %v3108
        %v3110 = vsub.f32 1.0, %v3109
        %v3111 = vmul.f32 %v3108, %v3110
        %v3112 = vadd.f32 %v3108, %v3111
        %vm3113 = vweird.f32 %v3050
        %vm3114 = vweird.f32 %v3108
        %vm3115 = vmor %vm3113, %vm3114
        %v3116 = vsel %vm3115, %v3108, %v3112
        %v3117 = vand.u32 2147483647, %v3050
        %vm3118 = vcmp.eq.f32.partialorder %v3117, 8.507059e+37
        %v3119 = vand.u32 %v3050, 2147483648
        %v3120 = vor.u32 1.1754944e-38, %v3119
        %v3121 = vsel %vm3118, %v3120, %v3116
        %v3122 = vmul.f32 %v3030, %v3121
        %v3123 = vrcp.pop %v3053
        %v3124 = vmul.f32 %v3053, %v3123
        %v3125 = vsub.f32 1.0, %v3124
        %v3126 = vmul.f32 %v3123, %v3125
        %v3127 = vadd.f32 %v3123, %v3126
        %vm3128 = vweird.f32 %v3053
        %vm3129 = vweird.f32 %v3123
        %vm3130 = vmor %vm3128, %vm3129
        %v3131 = vsel %vm3130, %v3123, %v3127
        %v3132 = vand.u32 2147483647, %v3053
        %vm3133 = vcmp.eq.f32.partialorder %v3132, 8.507059e+37
        %v3134 = vand.u32 %v3053, 2147483648
        %v3135 = vor.u32 1.1754944e-38, %v3134
        %v3136 = vsel %vm3133, %v3135, %v3131
        %v3137 = vmul.f32 %v3032, %v3136
        %v3138 = vrcp.pop %v3056
        %v3139 = vmul.f32 %v3056, %v3138
        %v3140 = vsub.f32 1.0, %v3139
        %v3141 = vmul.f32 %v3138, %v3140
        %v3142 = vadd.f32 %v3138, %v3141
        %vm3143 = vweird.f32 %v3056
        %vm3144 = vweird.f32 %v3138
        %vm3145 = vmor %vm3143, %vm3144
        %v3146 = vsel %vm3145, %v3138, %v3142
        %v3147 = vand.u32 2147483647, %v3056
        %vm3148 = vcmp.eq.f32.partialorder %v3147, 8.507059e+37
        %v3149 = vand.u32 %v3056, 2147483648
        %v3150 = vor.u32 1.1754944e-38, %v3149
        %v3151 = vsel %vm3148, %v3150, %v3146
        %v3152 = vmul.f32 %v3034, %v3151
        %v3153 = vrcp.pop %v3059
        %v3154 = vmul.f32 %v3059, %v3153
        %v3155 = vsub.f32 1.0, %v3154
        %v3156 = vmul.f32 %v3153, %v3155
        %v3157 = vadd.f32 %v3153, %v3156
        %vm3158 = vweird.f32 %v3059
        %vm3159 = vweird.f32 %v3153
        %vm3160 = vmor %vm3158, %vm3159
        %v3161 = vsel %vm3160, %v3153, %v3157
        %v3162 = vand.u32 2147483647, %v3059
        %vm3163 = vcmp.eq.f32.partialorder %v3162, 8.507059e+37
        %v3164 = vand.u32 %v3059, 2147483648
        %v3165 = vor.u32 1.1754944e-38, %v3164
        %v3166 = vsel %vm3163, %v3165, %v3161
        %v3167 = vmul.f32 %v3036, %v3166
        %v3168 = vrcp.pop %v3062
        %v3169 = vmul.f32 %v3062, %v3168
        %v3170 = vsub.f32 1.0, %v3169
        %v3171 = vmul.f32 %v3168, %v3170
        %v3172 = vadd.f32 %v3168, %v3171
        %vm3173 = vweird.f32 %v3062
        %vm3174 = vweird.f32 %v3168
        %vm3175 = vmor %vm3173, %vm3174
        %v3176 = vsel %vm3175, %v3168, %v3172
        %v3177 = vand.u32 2147483647, %v3062
        %vm3178 = vcmp.eq.f32.partialorder %v3177, 8.507059e+37
        %v3179 = vand.u32 %v3062, 2147483648
        %v3180 = vor.u32 1.1754944e-38, %v3179
        %v3181 = vsel %vm3178, %v3180, %v3176
        %v3182 = vmul.f32 %v3038, %v3181
        %v3183 = vpack.c.bf16 %v3092, %v3077
        %v3184 = vpack.c.bf16 %v3122, %v3107
        %v3185 = vpack.c.bf16 %v3152, %v3137
        %v3186 = vpack.c.bf16 %v3182, %v3167
        %3187 = vrot.lane.b32.xlu0 %v2914, 64
        %v3188 = vpop.permute.xlu0 %3187
        %3189 = vrot.lane.b32.xlu0 %v2915, 64
        %v3190 = vpop.permute.xlu0 %3189
        %3191 = vrot.lane.b32.xlu0 %v2916, 64
        %v3192 = vpop.permute.xlu0 %3191
        %3193 = vrot.lane.b32.xlu0 %v2917, 64
        %v3194 = vpop.permute.xlu0 %3193
        %v3200 = vsel %vm1130, %v3183, 0
        %v3203 = vsel %vm1130, %v3184, 0
        %v3206 = vsel %vm1130, %v3185, 0
        %v3209 = vsel %vm1130, %v3186, 0
        %3211 = vmatpush.bf16.msra.mxu0 0
        %3212 = vmatpush.bf16.msra.mxu0 0
        %3213 = vmatpush.bf16.msra.mxu0 0
        %3214 = vmatpush.bf16.msra.mxu0 0
        %3215 = vmatpush.bf16.msra.mxu0 %v3194
        %3216 = vmatpush.bf16.msra.mxu0 %v3192
        %3217 = vmatpush.bf16.msra.mxu0 %v3190
        %3218 = vmatpush.bf16.msra.mxu0 %v3188
        %3219 = vmatmul.bf16.gmra.mxu0 %v3200
        %v3220 = vpop.f32.mrf.mxu0
        %v3221 = vadd.f32 0.0, %v3220
        %v3222 = vpop.f32.mrf.mxu0
        %v3223 = vadd.f32 0.0, %v3222
        %3224 = vmatmul.bf16.gmra.mxu0 %v3203
        %v3225 = vpop.f32.mrf.mxu0
        %v3226 = vadd.f32 0.0, %v3225
        %v3227 = vpop.f32.mrf.mxu0
        %v3228 = vadd.f32 0.0, %v3227
        %3229 = vmatmul.bf16.gmra.mxu0 %v3206
        %v3230 = vpop.f32.mrf.mxu0
        %v3231 = vadd.f32 0.0, %v3230
        %v3232 = vpop.f32.mrf.mxu0
        %v3233 = vadd.f32 0.0, %v3232
        %3234 = vmatmul.bf16.gmra.mxu0 %v3209
        %v3235 = vpop.f32.mrf.mxu0
        %v3236 = vadd.f32 0.0, %v3235
        %v3237 = vpop.f32.mrf.mxu0
        %v3238 = vadd.f32 0.0, %v3237
        %3239 = vdwg.mxu0
        %v3240 = vpack.c.bf16 %v3223, %v3221
        %v3241 = vpack.c.bf16 %v3228, %v3226
        %v3242 = vpack.c.bf16 %v3233, %v3231
        %v3243 = vpack.c.bf16 %v3238, %v3236
        %3244 = vrot.lane.b32.xlu0 %v2914, 112
        %v3245 = vpop.permute.xlu0 %3244
        %3246 = vrot.lane.b32.xlu0 %v2915, 112
        %v3247 = vpop.permute.xlu0 %3246
        %3248 = vrot.lane.b32.xlu0 %v2916, 112
        %v3249 = vpop.permute.xlu0 %3248
        %3250 = vrot.lane.b32.xlu0 %v2917, 112
        %v3251 = vpop.permute.xlu0 %3250
        %3252 = vrot.lane.b32.xlu0 %v2914, 80
        %v3253 = vpop.permute.xlu0 %3252
        %3254 = vrot.lane.b32.xlu0 %v2915, 80
        %v3255 = vpop.permute.xlu0 %3254
        %3256 = vrot.lane.b32.xlu0 %v2916, 80
        %v3257 = vpop.permute.xlu0 %3256
        %3258 = vrot.lane.b32.xlu0 %v2917, 80
        %v3259 = vpop.permute.xlu0 %3258
        %v3261 = vsel %vm1068, %v3245, 0
        %v3264 = vsel %vm1068, %v3247, 0
        %v3267 = vsel %vm1068, %v3249, 0
        %v3270 = vsel %vm1068, %v3251, 0
        %v3273 = vsel %vm1068, %v3253, 0
        %v3276 = vsel %vm1068, %v3255, 0
        %v3279 = vsel %vm1068, %v3257, 0
        %v3282 = vsel %vm1068, %v3259, 0
        %3284 = vmatpush.bf16.xpose.msra.mxu0 0
        %3285 = vmatpush.bf16.xpose.msra.mxu0 0
        %3286 = vmatpush.bf16.xpose.msra.mxu0 0
        %3287 = vmatpush.bf16.xpose.msra.mxu0 0
        %3288 = vmatpush.bf16.xpose.msra.mxu0 %v3282
        %3289 = vmatpush.bf16.xpose.msra.mxu0 %v3279
        %3290 = vmatpush.bf16.xpose.msra.mxu0 %v3276
        %3291 = vmatpush.bf16.xpose.msra.mxu0 %v3273
        %3292 = vmatmul.bf16.gmra.mxu0 %v3261
        %v3293 = vpop.f32.mrf.mxu0
        %v3294 = vadd.f32 0.0, %v3293
        %v3295 = vpop.f32.mrf.mxu0
        %v3296 = vadd.f32 0.0, %v3295
        %3297 = vmatmul.bf16.gmra.mxu0 %v3264
        %v3298 = vpop.f32.mrf.mxu0
        %v3299 = vadd.f32 0.0, %v3298
        %v3300 = vpop.f32.mrf.mxu0
        %v3301 = vadd.f32 0.0, %v3300
        %3302 = vmatmul.bf16.gmra.mxu0 %v3267
        %v3303 = vpop.f32.mrf.mxu0
        %v3304 = vadd.f32 0.0, %v3303
        %v3305 = vpop.f32.mrf.mxu0
        %v3306 = vadd.f32 0.0, %v3305
        %3307 = vmatmul.bf16.gmra.mxu0 %v3270
        %v3308 = vpop.f32.mrf.mxu0
        %v3309 = vadd.f32 0.0, %v3308
        %v3310 = vpop.f32.mrf.mxu0
        %v3311 = vadd.f32 0.0, %v3310
        %3312 = vdwg.mxu0
        %v3313 = vsel %vm705, %v3294, -10000.0
        %v3314 = vsel %vm706, %v3296, -10000.0
        %v3315 = vsel %vm707, %v3299, -10000.0
        %v3316 = vsel %vm708, %v3301, -10000.0
        %v3317 = vsel %vm709, %v3304, -10000.0
        %v3318 = vsel %vm710, %v3306, -10000.0
        %v3319 = vsel %vm711, %v3309, -10000.0
        %v3320 = vsel %vm712, %v3311, -10000.0
        %v3321 = vsel %vm1130, %v3313, -inf
        %3322 = vmax.xlane.f32.xlu0 %v3321
        %v3323 = vpop.xlane.xlu0 %3322
        %v3324 = vsel %vm1130, %v3314, -inf
        %3325 = vmax.xlane.f32.xlu0 %v3324
        %v3326 = vpop.xlane.xlu0 %3325
        %v3327 = vsel %vm1130, %v3315, -inf
        %3328 = vmax.xlane.f32.xlu0 %v3327
        %v3329 = vpop.xlane.xlu0 %3328
        %v3330 = vsel %vm1130, %v3316, -inf
        %3331 = vmax.xlane.f32.xlu0 %v3330
        %v3332 = vpop.xlane.xlu0 %3331
        %v3333 = vsel %vm1130, %v3317, -inf
        %3334 = vmax.xlane.f32.xlu0 %v3333
        %v3335 = vpop.xlane.xlu0 %3334
        %v3336 = vsel %vm1130, %v3318, -inf
        %3337 = vmax.xlane.f32.xlu0 %v3336
        %v3338 = vpop.xlane.xlu0 %3337
        %v3339 = vsel %vm1130, %v3319, -inf
        %3340 = vmax.xlane.f32.xlu0 %v3339
        %v3341 = vpop.xlane.xlu0 %3340
        %v3342 = vsel %vm1130, %v3320, -inf
        %3343 = vmax.xlane.f32.xlu0 %v3342
        %v3344 = vpop.xlane.xlu0 %3343
        %v3345 = vsub.f32 %v3313, %v3323
        %v3346 = vsub.f32 %v3314, %v3326
        %v3347 = vsub.f32 %v3315, %v3329
        %v3348 = vsub.f32 %v3316, %v3332
        %v3349 = vsub.f32 %v3317, %v3335
        %v3350 = vsub.f32 %v3318, %v3338
        %v3351 = vsub.f32 %v3319, %v3341
        %v3352 = vsub.f32 %v3320, %v3344
        %v3353 = vmul.f32 %v3345, 1.442695
        %v3354 = vpow.pop %v3353
        %v3355 = vmul.f32 %v3346, 1.442695
        %v3356 = vpow.pop %v3355
        %v3357 = vmul.f32 %v3347, 1.442695
        %v3358 = vpow.pop %v3357
        %v3359 = vmul.f32 %v3348, 1.442695
        %v3360 = vpow.pop %v3359
        %v3361 = vmul.f32 %v3349, 1.442695
        %v3362 = vpow.pop %v3361
        %v3363 = vmul.f32 %v3350, 1.442695
        %v3364 = vpow.pop %v3363
        %v3365 = vmul.f32 %v3351, 1.442695
        %v3366 = vpow.pop %v3365
        %v3367 = vmul.f32 %v3352, 1.442695
        %v3368 = vpow.pop %v3367
        %v3369 = vsel %vm1130, %v3354, 0.0
        %3370 = vadd.xlane.f32.xlu0 %v3369
        %v3371 = vpop.xlane.xlu0 %3370
        %v3372 = vsel %vm1130, %v3356, 0.0
        %3373 = vadd.xlane.f32.xlu0 %v3372
        %v3374 = vpop.xlane.xlu0 %3373
        %v3375 = vsel %vm1130, %v3358, 0.0
        %3376 = vadd.xlane.f32.xlu0 %v3375
        %v3377 = vpop.xlane.xlu0 %3376
        %v3378 = vsel %vm1130, %v3360, 0.0
        %3379 = vadd.xlane.f32.xlu0 %v3378
        %v3380 = vpop.xlane.xlu0 %3379
        %v3381 = vsel %vm1130, %v3362, 0.0
        %3382 = vadd.xlane.f32.xlu0 %v3381
        %v3383 = vpop.xlane.xlu0 %3382
        %v3384 = vsel %vm1130, %v3364, 0.0
        %3385 = vadd.xlane.f32.xlu0 %v3384
        %v3386 = vpop.xlane.xlu0 %3385
        %v3387 = vsel %vm1130, %v3366, 0.0
        %3388 = vadd.xlane.f32.xlu0 %v3387
        %v3389 = vpop.xlane.xlu0 %3388
        %v3390 = vsel %vm1130, %v3368, 0.0
        %3391 = vadd.xlane.f32.xlu0 %v3390
        %v3392 = vpop.xlane.xlu0 %3391
        %v3393 = vrcp.pop %v3371
        %v3394 = vmul.f32 %v3371, %v3393
        %v3395 = vsub.f32 1.0, %v3394
        %v3396 = vmul.f32 %v3393, %v3395
        %v3397 = vadd.f32 %v3393, %v3396
        %vm3398 = vweird.f32 %v3371
        %vm3399 = vweird.f32 %v3393
        %vm3400 = vmor %vm3398, %vm3399
        %v3401 = vsel %vm3400, %v3393, %v3397
        %v3402 = vand.u32 2147483647, %v3371
        %vm3403 = vcmp.eq.f32.partialorder %v3402, 8.507059e+37
        %v3404 = vand.u32 %v3371, 2147483648
        %v3405 = vor.u32 1.1754944e-38, %v3404
        %v3406 = vsel %vm3403, %v3405, %v3401
        %v3407 = vmul.f32 %v3354, %v3406
        %v3408 = vrcp.pop %v3374
        %v3409 = vmul.f32 %v3374, %v3408
        %v3410 = vsub.f32 1.0, %v3409
        %v3411 = vmul.f32 %v3408, %v3410
        %v3412 = vadd.f32 %v3408, %v3411
        %vm3413 = vweird.f32 %v3374
        %vm3414 = vweird.f32 %v3408
        %vm3415 = vmor %vm3413, %vm3414
        %v3416 = vsel %vm3415, %v3408, %v3412
        %v3417 = vand.u32 2147483647, %v3374
        %vm3418 = vcmp.eq.f32.partialorder %v3417, 8.507059e+37
        %v3419 = vand.u32 %v3374, 2147483648
        %v3420 = vor.u32 1.1754944e-38, %v3419
        %v3421 = vsel %vm3418, %v3420, %v3416
        %v3422 = vmul.f32 %v3356, %v3421
        %v3423 = vrcp.pop %v3377
        %v3424 = vmul.f32 %v3377, %v3423
        %v3425 = vsub.f32 1.0, %v3424
        %v3426 = vmul.f32 %v3423, %v3425
        %v3427 = vadd.f32 %v3423, %v3426
        %vm3428 = vweird.f32 %v3377
        %vm3429 = vweird.f32 %v3423
        %vm3430 = vmor %vm3428, %vm3429
        %v3431 = vsel %vm3430, %v3423, %v3427
        %v3432 = vand.u32 2147483647, %v3377
        %vm3433 = vcmp.eq.f32.partialorder %v3432, 8.507059e+37
        %v3434 = vand.u32 %v3377, 2147483648
        %v3435 = vor.u32 1.1754944e-38, %v3434
        %v3436 = vsel %vm3433, %v3435, %v3431
        %v3437 = vmul.f32 %v3358, %v3436
        %v3438 = vrcp.pop %v3380
        %v3439 = vmul.f32 %v3380, %v3438
        %v3440 = vsub.f32 1.0, %v3439
        %v3441 = vmul.f32 %v3438, %v3440
        %v3442 = vadd.f32 %v3438, %v3441
        %vm3443 = vweird.f32 %v3380
        %vm3444 = vweird.f32 %v3438
        %vm3445 = vmor %vm3443, %vm3444
        %v3446 = vsel %vm3445, %v3438, %v3442
        %v3447 = vand.u32 2147483647, %v3380
        %vm3448 = vcmp.eq.f32.partialorder %v3447, 8.507059e+37
        %v3449 = vand.u32 %v3380, 2147483648
        %v3450 = vor.u32 1.1754944e-38, %v3449
        %v3451 = vsel %vm3448, %v3450, %v3446
        %v3452 = vmul.f32 %v3360, %v3451
        %v3453 = vrcp.pop %v3383
        %v3454 = vmul.f32 %v3383, %v3453
        %v3455 = vsub.f32 1.0, %v3454
        %v3456 = vmul.f32 %v3453, %v3455
        %v3457 = vadd.f32 %v3453, %v3456
        %vm3458 = vweird.f32 %v3383
        %vm3459 = vweird.f32 %v3453
        %vm3460 = vmor %vm3458, %vm3459
        %v3461 = vsel %vm3460, %v3453, %v3457
        %v3462 = vand.u32 2147483647, %v3383
        %vm3463 = vcmp.eq.f32.partialorder %v3462, 8.507059e+37
        %v3464 = vand.u32 %v3383, 2147483648
        %v3465 = vor.u32 1.1754944e-38, %v3464
        %v3466 = vsel %vm3463, %v3465, %v3461
        %v3467 = vmul.f32 %v3362, %v3466
        %v3468 = vrcp.pop %v3386
        %v3469 = vmul.f32 %v3386, %v3468
        %v3470 = vsub.f32 1.0, %v3469
        %v3471 = vmul.f32 %v3468, %v3470
        %v3472 = vadd.f32 %v3468, %v3471
        %vm3473 = vweird.f32 %v3386
        %vm3474 = vweird.f32 %v3468
        %vm3475 = vmor %vm3473, %vm3474
        %v3476 = vsel %vm3475, %v3468, %v3472
        %v3477 = vand.u32 2147483647, %v3386
        %vm3478 = vcmp.eq.f32.partialorder %v3477, 8.507059e+37
        %v3479 = vand.u32 %v3386, 2147483648
        %v3480 = vor.u32 1.1754944e-38, %v3479
        %v3481 = vsel %vm3478, %v3480, %v3476
        %v3482 = vmul.f32 %v3364, %v3481
        %v3483 = vrcp.pop %v3389
        %v3484 = vmul.f32 %v3389, %v3483
        %v3485 = vsub.f32 1.0, %v3484
        %v3486 = vmul.f32 %v3483, %v3485
        %v3487 = vadd.f32 %v3483, %v3486
        %vm3488 = vweird.f32 %v3389
        %vm3489 = vweird.f32 %v3483
        %vm3490 = vmor %vm3488, %vm3489
        %v3491 = vsel %vm3490, %v3483, %v3487
        %v3492 = vand.u32 2147483647, %v3389
        %vm3493 = vcmp.eq.f32.partialorder %v3492, 8.507059e+37
        %v3494 = vand.u32 %v3389, 2147483648
        %v3495 = vor.u32 1.1754944e-38, %v3494
        %v3496 = vsel %vm3493, %v3495, %v3491
        %v3497 = vmul.f32 %v3366, %v3496
        %v3498 = vrcp.pop %v3392
        %v3499 = vmul.f32 %v3392, %v3498
        %v3500 = vsub.f32 1.0, %v3499
        %v3501 = vmul.f32 %v3498, %v3500
        %v3502 = vadd.f32 %v3498, %v3501
        %vm3503 = vweird.f32 %v3392
        %vm3504 = vweird.f32 %v3498
        %vm3505 = vmor %vm3503, %vm3504
        %v3506 = vsel %vm3505, %v3498, %v3502
        %v3507 = vand.u32 2147483647, %v3392
        %vm3508 = vcmp.eq.f32.partialorder %v3507, 8.507059e+37
        %v3509 = vand.u32 %v3392, 2147483648
        %v3510 = vor.u32 1.1754944e-38, %v3509
        %v3511 = vsel %vm3508, %v3510, %v3506
        %v3512 = vmul.f32 %v3368, %v3511
        %v3513 = vpack.c.bf16 %v3422, %v3407
        %v3514 = vpack.c.bf16 %v3452, %v3437
        %v3515 = vpack.c.bf16 %v3482, %v3467
        %v3516 = vpack.c.bf16 %v3512, %v3497
        %3517 = vrot.lane.b32.xlu0 %v2914, 48
        %v3518 = vpop.permute.xlu0 %3517
        %3519 = vrot.lane.b32.xlu0 %v2915, 48
        %v3520 = vpop.permute.xlu0 %3519
        %3521 = vrot.lane.b32.xlu0 %v2916, 48
        %v3522 = vpop.permute.xlu0 %3521
        %3523 = vrot.lane.b32.xlu0 %v2917, 48
        %v3524 = vpop.permute.xlu0 %3523
        %v3530 = vsel %vm1130, %v3513, 0
        %v3533 = vsel %vm1130, %v3514, 0
        %v3536 = vsel %vm1130, %v3515, 0
        %v3539 = vsel %vm1130, %v3516, 0
        %3541 = vmatpush.bf16.msra.mxu0 0
        %3542 = vmatpush.bf16.msra.mxu0 0
        %3543 = vmatpush.bf16.msra.mxu0 0
        %3544 = vmatpush.bf16.msra.mxu0 0
        %3545 = vmatpush.bf16.msra.mxu0 %v3524
        %3546 = vmatpush.bf16.msra.mxu0 %v3522
        %3547 = vmatpush.bf16.msra.mxu0 %v3520
        %3548 = vmatpush.bf16.msra.mxu0 %v3518
        %3549 = vmatmul.bf16.gmra.mxu0 %v3530
        %v3550 = vpop.f32.mrf.mxu0
        %v3551 = vadd.f32 0.0, %v3550
        %v3552 = vpop.f32.mrf.mxu0
        %v3553 = vadd.f32 0.0, %v3552
        %3554 = vmatmul.bf16.gmra.mxu0 %v3533
        %v3555 = vpop.f32.mrf.mxu0
        %v3556 = vadd.f32 0.0, %v3555
        %v3557 = vpop.f32.mrf.mxu0
        %v3558 = vadd.f32 0.0, %v3557
        %3559 = vmatmul.bf16.gmra.mxu0 %v3536
        %v3560 = vpop.f32.mrf.mxu0
        %v3561 = vadd.f32 0.0, %v3560
        %v3562 = vpop.f32.mrf.mxu0
        %v3563 = vadd.f32 0.0, %v3562
        %3564 = vmatmul.bf16.gmra.mxu0 %v3539
        %v3565 = vpop.f32.mrf.mxu0
        %v3566 = vadd.f32 0.0, %v3565
        %v3567 = vpop.f32.mrf.mxu0
        %v3568 = vadd.f32 0.0, %v3567
        %3569 = vdwg.mxu0
        %v3570 = vpack.c.bf16 %v3553, %v3551
        %v3571 = vpack.c.bf16 %v3558, %v3556
        %v3572 = vpack.c.bf16 %v3563, %v3561
        %v3573 = vpack.c.bf16 %v3568, %v3566
        %v3576 = vunpack.c.l.b16 %v2912
        %v3577 = vunpack.c.l.b16 %v2913
        %v3578 = vpack.c.b16 %v3577, %v3576
        %v3581 = vsel %vm1068, %v3570, 0
        %v3584 = vsel %vm1068, %v3571, 0
        %v3587 = vsel %vm1068, %v3572, 0
        %v3590 = vsel %vm1068, %v3573, 0
        %3592 = vmatpush.bf16.msra.mxu0 0
        %3593 = vmatpush.bf16.msra.mxu0 0
        %3594 = vmatpush.bf16.msra.mxu0 0
        %3595 = vmatpush.bf16.msra.mxu0 0
        %3596 = vmatpush.bf16.msra.mxu0 0
        %3597 = vmatpush.bf16.msra.mxu0 0
        %3598 = vmatpush.bf16.msra.mxu0 0
        %3599 = vmatpush.bf16.msra.mxu0 %v3578
        %3600 = vmatmul.bf16.gmra.mxu0 %v3581
        %v3601 = vpop.f32.mrf.mxu0
        %v3602 = vadd.f32 0.0, %v3601
        %v3603 = vpop.f32.mrf.mxu0
        %v3604 = vadd.f32 0.0, %v3603
        %3605 = vmatmul.bf16.gmra.mxu0 %v3584
        %v3606 = vpop.f32.mrf.mxu0
        %v3607 = vadd.f32 0.0, %v3606
        %v3608 = vpop.f32.mrf.mxu0
        %v3609 = vadd.f32 0.0, %v3608
        %3610 = vmatmul.bf16.gmra.mxu0 %v3587
        %v3611 = vpop.f32.mrf.mxu0
        %v3612 = vadd.f32 0.0, %v3611
        %v3613 = vpop.f32.mrf.mxu0
        %v3614 = vadd.f32 0.0, %v3613
        %3615 = vmatmul.bf16.gmra.mxu0 %v3590
        %v3616 = vpop.f32.mrf.mxu0
        %v3617 = vadd.f32 0.0, %v3616
        %v3618 = vpop.f32.mrf.mxu0
        %v3619 = vadd.f32 0.0, %v3618
        %3620 = vdwg.mxu0
        %v3623 = vunpack.c.l.b16 %v2910
        %v3624 = vunpack.c.l.b16 %v2911
        %v3625 = vpack.c.b16 %v3624, %v3623
        %v3628 = vsel %vm1068, %v3240, 0
        %v3631 = vsel %vm1068, %v3241, 0
        %v3634 = vsel %vm1068, %v3242, 0
        %v3637 = vsel %vm1068, %v3243, 0
        %3639 = vmatpush.bf16.msra.mxu0 0
        %3640 = vmatpush.bf16.msra.mxu0 0
        %3641 = vmatpush.bf16.msra.mxu0 0
        %3642 = vmatpush.bf16.msra.mxu0 0
        %3643 = vmatpush.bf16.msra.mxu0 0
        %3644 = vmatpush.bf16.msra.mxu0 0
        %3645 = vmatpush.bf16.msra.mxu0 0
        %3646 = vmatpush.bf16.msra.mxu0 %v3625
        %3647 = vmatmul.bf16.gmra.mxu0 %v3628
        %v3648 = vpop.f32.mrf.mxu0
        %v3649 = vadd.f32 %v3602, %v3648
        %v3650 = vpop.f32.mrf.mxu0
        %v3651 = vadd.f32 %v3604, %v3650
        %3652 = vmatmul.bf16.gmra.mxu0 %v3631
        %v3653 = vpop.f32.mrf.mxu0
        %v3654 = vadd.f32 %v3607, %v3653
        %v3655 = vpop.f32.mrf.mxu0
        %v3656 = vadd.f32 %v3609, %v3655
        %3657 = vmatmul.bf16.gmra.mxu0 %v3634
        %v3658 = vpop.f32.mrf.mxu0
        %v3659 = vadd.f32 %v3612, %v3658
        %v3660 = vpop.f32.mrf.mxu0
        %v3661 = vadd.f32 %v3614, %v3660
        %3662 = vmatmul.bf16.gmra.mxu0 %v3637
        %v3663 = vpop.f32.mrf.mxu0
        %v3664 = vadd.f32 %v3617, %v3663
        %v3665 = vpop.f32.mrf.mxu0
        %v3666 = vadd.f32 %v3619, %v3665
        %3667 = vdwg.mxu0
        %s3668 = scalar_lea.vmem %s8, 1
        %v3669 = vld [vmem:[%s3668] sm:$0x1]
        %v3671 = vperm.slane %v3669, 0
        %v3673 = vadd.f32 %v3649, %v3671
        %v3674 = vadd.f32 %v3651, %v3671
        %v3675 = vadd.f32 %v3654, %v3671
        %v3676 = vadd.f32 %v3656, %v3671
        %v3677 = vadd.f32 %v3659, %v3671
        %v3678 = vadd.f32 %v3661, %v3671
        %v3679 = vadd.f32 %v3664, %v3671
        %v3680 = vadd.f32 %v3666, %v3671
        %v3681 = vadd.f32 %v2834, %v3673
        %v3682 = vadd.f32 %v2835, %v3674
        %v3683 = vadd.f32 %v2836, %v3675
        %v3684 = vadd.f32 %v2837, %v3676
        %v3685 = vadd.f32 %v2838, %v3677
        %v3686 = vadd.f32 %v2839, %v3678
        %v3687 = vadd.f32 %v2840, %v3679
        %v3688 = vadd.f32 %v2841, %v3680
        %s3689 = scalar_lea.vmem %s9, 1
        %v3690 = vld [vmem:[%s3689] sm:$0x1]
        %s3691 = scalar_lea.vmem %s10, 1
        %v3692 = vld [vmem:[%s3691] sm:$0x1]
        %v3693 = vsel %vm779, %v3681, 0.0
        %3694 = vadd.xlane.f32.xlu0 %v3693
        %v3695 = vpop.xlane.xlu0 %3694
        %v3696 = vsel %vm779, %v3682, 0.0
        %3697 = vadd.xlane.f32.xlu0 %v3696
        %v3698 = vpop.xlane.xlu0 %3697
        %v3699 = vsel %vm779, %v3683, 0.0
        %3700 = vadd.xlane.f32.xlu0 %v3699
        %v3701 = vpop.xlane.xlu0 %3700
        %v3702 = vsel %vm779, %v3684, 0.0
        %3703 = vadd.xlane.f32.xlu0 %v3702
        %v3704 = vpop.xlane.xlu0 %3703
        %v3705 = vsel %vm779, %v3685, 0.0
        %3706 = vadd.xlane.f32.xlu0 %v3705
        %v3707 = vpop.xlane.xlu0 %3706
        %v3708 = vsel %vm779, %v3686, 0.0
        %3709 = vadd.xlane.f32.xlu0 %v3708
        %v3710 = vpop.xlane.xlu0 %3709
        %v3711 = vsel %vm779, %v3687, 0.0
        %3712 = vadd.xlane.f32.xlu0 %v3711
        %v3713 = vpop.xlane.xlu0 %3712
        %v3714 = vsel %vm779, %v3688, 0.0
        %3715 = vadd.xlane.f32.xlu0 %v3714
        %v3716 = vpop.xlane.xlu0 %3715
        %v3717 = vmul.f32 %v3695, %v1860
        %v3718 = vmul.f32 %v3698, %v1860
        %v3719 = vmul.f32 %v3701, %v1860
        %v3720 = vmul.f32 %v3704, %v1860
        %v3721 = vmul.f32 %v3707, %v1860
        %v3722 = vmul.f32 %v3710, %v1860
        %v3723 = vmul.f32 %v3713, %v1860
        %v3724 = vmul.f32 %v3716, %v1860
        %v3725 = vsub.f32 %v3681, %v3717
        %v3726 = vsub.f32 %v3682, %v3718
        %v3727 = vsub.f32 %v3683, %v3719
        %v3728 = vsub.f32 %v3684, %v3720
        %v3729 = vsub.f32 %v3685, %v3721
        %v3730 = vsub.f32 %v3686, %v3722
        %v3731 = vsub.f32 %v3687, %v3723
        %v3732 = vsub.f32 %v3688, %v3724
        %v3733 = vmul.f32 %v3725, %v3725
        %v3734 = vmul.f32 %v3726, %v3726
        %v3735 = vmul.f32 %v3727, %v3727
        %v3736 = vmul.f32 %v3728, %v3728
        %v3737 = vmul.f32 %v3729, %v3729
        %v3738 = vmul.f32 %v3730, %v3730
        %v3739 = vmul.f32 %v3731, %v3731
        %v3740 = vmul.f32 %v3732, %v3732
        %v3741 = vsel %vm779, %v3733, 0.0
        %3742 = vadd.xlane.f32.xlu0 %v3741
        %v3743 = vpop.xlane.xlu0 %3742
        %v3744 = vsel %vm779, %v3734, 0.0
        %3745 = vadd.xlane.f32.xlu0 %v3744
        %v3746 = vpop.xlane.xlu0 %3745
        %v3747 = vsel %vm779, %v3735, 0.0
        %3748 = vadd.xlane.f32.xlu0 %v3747
        %v3749 = vpop.xlane.xlu0 %3748
        %v3750 = vsel %vm779, %v3736, 0.0
        %3751 = vadd.xlane.f32.xlu0 %v3750
        %v3752 = vpop.xlane.xlu0 %3751
        %v3753 = vsel %vm779, %v3737, 0.0
        %3754 = vadd.xlane.f32.xlu0 %v3753
        %v3755 = vpop.xlane.xlu0 %3754
        %v3756 = vsel %vm779, %v3738, 0.0
        %3757 = vadd.xlane.f32.xlu0 %v3756
        %v3758 = vpop.xlane.xlu0 %3757
        %v3759 = vsel %vm779, %v3739, 0.0
        %3760 = vadd.xlane.f32.xlu0 %v3759
        %v3761 = vpop.xlane.xlu0 %3760
        %v3762 = vsel %vm779, %v3740, 0.0
        %3763 = vadd.xlane.f32.xlu0 %v3762
        %v3764 = vpop.xlane.xlu0 %3763
        %v3765 = vmul.f32 %v3743, %v1860
        %v3766 = vmul.f32 %v3746, %v1860
        %v3767 = vmul.f32 %v3749, %v1860
        %v3768 = vmul.f32 %v3752, %v1860
        %v3769 = vmul.f32 %v3755, %v1860
        %v3770 = vmul.f32 %v3758, %v1860
        %v3771 = vmul.f32 %v3761, %v1860
        %v3772 = vmul.f32 %v3764, %v1860
        %v3773 = vadd.f32 %v3765, 1e-05
        %v3774 = vadd.f32 %v3766, 1e-05
        %v3775 = vadd.f32 %v3767, 1e-05
        %v3776 = vadd.f32 %v3768, 1e-05
        %v3777 = vadd.f32 %v3769, 1e-05
        %v3778 = vadd.f32 %v3770, 1e-05
        %v3779 = vadd.f32 %v3771, 1e-05
        %v3780 = vadd.f32 %v3772, 1e-05
        %v3781 = vrsqrt.pop %v3773
        %v3782 = vmul.f32 %v3781, %v3773
        %v3783 = vmul.f32 %v3782, %v3781
        %v3784 = vmul.f32 0.5, %v3783
        %v3785 = vsub.f32 1.5, %v3784
        %v3786 = vmul.f32 %v3781, %v3785
        %vm3787 = vweird.f32 %v3773
        %vm3788 = vweird.f32 %v3781
        %vm3789 = vmor %vm3787, %vm3788
        %v3790 = vsel %vm3789, %v3781, %v3786
        %v3791 = vrsqrt.pop %v3774
        %v3792 = vmul.f32 %v3791, %v3774
        %v3793 = vmul.f32 %v3792, %v3791
        %v3794 = vmul.f32 0.5, %v3793
        %v3795 = vsub.f32 1.5, %v3794
        %v3796 = vmul.f32 %v3791, %v3795
        %vm3797 = vweird.f32 %v3774
        %vm3798 = vweird.f32 %v3791
        %vm3799 = vmor %vm3797, %vm3798
        %v3800 = vsel %vm3799, %v3791, %v3796
        %v3801 = vrsqrt.pop %v3775
        %v3802 = vmul.f32 %v3801, %v3775
        %v3803 = vmul.f32 %v3802, %v3801
        %v3804 = vmul.f32 0.5, %v3803
        %v3805 = vsub.f32 1.5, %v3804
        %v3806 = vmul.f32 %v3801, %v3805
        %vm3807 = vweird.f32 %v3775
        %vm3808 = vweird.f32 %v3801
        %vm3809 = vmor %vm3807, %vm3808
        %v3810 = vsel %vm3809, %v3801, %v3806
        %v3811 = vrsqrt.pop %v3776
        %v3812 = vmul.f32 %v3811, %v3776
        %v3813 = vmul.f32 %v3812, %v3811
        %v3814 = vmul.f32 0.5, %v3813
        %v3815 = vsub.f32 1.5, %v3814
        %v3816 = vmul.f32 %v3811, %v3815
        %vm3817 = vweird.f32 %v3776
        %vm3818 = vweird.f32 %v3811
        %vm3819 = vmor %vm3817, %vm3818
        %v3820 = vsel %vm3819, %v3811, %v3816
        %v3821 = vrsqrt.pop %v3777
        %v3822 = vmul.f32 %v3821, %v3777
        %v3823 = vmul.f32 %v3822, %v3821
        %v3824 = vmul.f32 0.5, %v3823
        %v3825 = vsub.f32 1.5, %v3824
        %v3826 = vmul.f32 %v3821, %v3825
        %vm3827 = vweird.f32 %v3777
        %vm3828 = vweird.f32 %v3821
        %vm3829 = vmor %vm3827, %vm3828
        %v3830 = vsel %vm3829, %v3821, %v3826
        %v3831 = vrsqrt.pop %v3778
        %v3832 = vmul.f32 %v3831, %v3778
        %v3833 = vmul.f32 %v3832, %v3831
        %v3834 = vmul.f32 0.5, %v3833
        %v3835 = vsub.f32 1.5, %v3834
        %v3836 = vmul.f32 %v3831, %v3835
        %vm3837 = vweird.f32 %v3778
        %vm3838 = vweird.f32 %v3831
        %vm3839 = vmor %vm3837, %vm3838
        %v3840 = vsel %vm3839, %v3831, %v3836
        %v3841 = vrsqrt.pop %v3779
        %v3842 = vmul.f32 %v3841, %v3779
        %v3843 = vmul.f32 %v3842, %v3841
        %v3844 = vmul.f32 0.5, %v3843
        %v3845 = vsub.f32 1.5, %v3844
        %v3846 = vmul.f32 %v3841, %v3845
        %vm3847 = vweird.f32 %v3779
        %vm3848 = vweird.f32 %v3841
        %vm3849 = vmor %vm3847, %vm3848
        %v3850 = vsel %vm3849, %v3841, %v3846
        %v3851 = vrsqrt.pop %v3780
        %v3852 = vmul.f32 %v3851, %v3780
        %v3853 = vmul.f32 %v3852, %v3851
        %v3854 = vmul.f32 0.5, %v3853
        %v3855 = vsub.f32 1.5, %v3854
        %v3856 = vmul.f32 %v3851, %v3855
        %vm3857 = vweird.f32 %v3780
        %vm3858 = vweird.f32 %v3851
        %vm3859 = vmor %vm3857, %vm3858
        %v3860 = vsel %vm3859, %v3851, %v3856
        %v3861 = vmul.f32 %v3725, %v3790
        %v3862 = vmul.f32 %v3726, %v3800
        %v3863 = vmul.f32 %v3727, %v3810
        %v3864 = vmul.f32 %v3728, %v3820
        %v3865 = vmul.f32 %v3729, %v3830
        %v3866 = vmul.f32 %v3730, %v3840
        %v3867 = vmul.f32 %v3731, %v3850
        %v3868 = vmul.f32 %v3732, %v3860
        %v3870 = vperm.slane %v3690, 0
        %v3872 = vmul.f32 %v3861, %v3870
        %v3873 = vmul.f32 %v3862, %v3870
        %v3874 = vmul.f32 %v3863, %v3870
        %v3875 = vmul.f32 %v3864, %v3870
        %v3876 = vmul.f32 %v3865, %v3870
        %v3877 = vmul.f32 %v3866, %v3870
        %v3878 = vmul.f32 %v3867, %v3870
        %v3879 = vmul.f32 %v3868, %v3870
        %v3881 = vperm.slane %v3692, 0
        %v3883 = vadd.f32 %v3872, %v3881
        %v3884 = vadd.f32 %v3873, %v3881
        %v3885 = vadd.f32 %v3874, %v3881
        %v3886 = vadd.f32 %v3875, %v3881
        %v3887 = vadd.f32 %v3876, %v3881
        %v3888 = vadd.f32 %v3877, %v3881
        %v3889 = vadd.f32 %v3878, %v3881
        %v3890 = vadd.f32 %v3879, %v3881
        %v3891 = vmul.f32 %v3883, %v657
        %v3892 = vmul.f32 %v3884, %v662
        %v3893 = vmul.f32 %v3885, %v667
        %v3894 = vmul.f32 %v3886, %v672
        %v3895 = vmul.f32 %v3887, %v677
        %v3896 = vmul.f32 %v3888, %v682
        %v3897 = vmul.f32 %v3889, %v687
        %v3898 = vmul.f32 %v3890, %v692
        %s3899 = scalar_lea.vmem %s11, 48
        %v3900 = vld [vmem:[%s3899] sm:$0xf]
        %v3901 = vld [vmem:[%s3899 + $0x4] sm:$0xf]
        %v3902 = vld [vmem:[%s3899 + $0x8] sm:$0xf]
        %v3903 = vld [vmem:[%s3899 + $0xc] sm:$0xf]
        %v3904 = vld [vmem:[%s3899 + $0x10] sm:$0xf]
        %v3905 = vld [vmem:[%s3899 + $0x14] sm:$0xf]
        %v3906 = vld [vmem:[%s3899 + $0x18] sm:$0xf]
        %v3907 = vld [vmem:[%s3899 + $0x1c] sm:$0xf]
        %v3908 = vld [vmem:[%s3899 + $0x20] sm:$0xf]
        %v3909 = vld [vmem:[%s3899 + $0x24] sm:$0xf]
        %v3910 = vld [vmem:[%s3899 + $0x28] sm:$0xf]
        %v3911 = vld [vmem:[%s3899 + $0x2c] sm:$0xf]
        %s3912 = scalar_lea.vmem %s12, 1
        %v3913 = vld [vmem:[%s3912] sm:$0x1]
        %v3922 = vrot.slane %v3891, 6
        %v3923 = vrot.slane %v3892, 6
        %v3924 = vsel %vm2064, %v3922, %v3923
        %v3925 = vrot.slane %v3893, 6
        %v3926 = vsel %vm2064, %v3923, %v3925
        %v3927 = vrot.slane %v3894, 6
        %v3928 = vsel %vm2064, %v3925, %v3927
        %v3929 = vrot.slane %v3895, 6
        %v3930 = vsel %vm2064, %v3927, %v3929
        %v3931 = vrot.slane %v3896, 6
        %v3932 = vsel %vm2064, %v3929, %v3931
        %v3933 = vrot.slane %v3897, 6
        %v3934 = vsel %vm2064, %v3931, %v3933
        %v3935 = vrot.slane %v3898, 6
        %v3936 = vsel %vm2064, %v3933, %v3935
        %v3945 = vsel %vm2064, 0.0, %v3922
        %v3946 = vpack.c.bf16 %v3924, %v3945
        %v3947 = vpack.c.bf16 %v3928, %v3926
        %v3948 = vpack.c.bf16 %v3932, %v3930
        %v3949 = vpack.c.bf16 %v3936, %v3934
        %v3950 = vrot.slane %v3891, 7
        %v3951 = vrot.slane %v3892, 7
        %v3952 = vsel %vm734, %v3950, %v3951
        %v3953 = vrot.slane %v3893, 7
        %v3954 = vsel %vm734, %v3951, %v3953
        %v3955 = vrot.slane %v3894, 7
        %v3956 = vsel %vm734, %v3953, %v3955
        %v3957 = vrot.slane %v3895, 7
        %v3958 = vsel %vm734, %v3955, %v3957
        %v3959 = vrot.slane %v3896, 7
        %v3960 = vsel %vm734, %v3957, %v3959
        %v3961 = vrot.slane %v3897, 7
        %v3962 = vsel %vm734, %v3959, %v3961
        %v3963 = vrot.slane %v3898, 7
        %v3964 = vsel %vm734, %v3961, %v3963
        %v3973 = vsel %vm734, 0.0, %v3950
        %v3974 = vpack.c.bf16 %v3952, %v3973
        %v3975 = vpack.c.bf16 %v3956, %v3954
        %v3976 = vpack.c.bf16 %v3960, %v3958
        %v3977 = vpack.c.bf16 %v3964, %v3962
        %v3982 = vunpack.c.l.b16 %v3904
        %v3983 = vunpack.c.l.b16 %v3905
        %v3984 = vunpack.c.l.b16 %v3906
        %v3985 = vunpack.c.l.b16 %v3907
        %v3986 = vpack.c.b16 %v3983, %v3982
        %v3987 = vpack.c.b16 %v3985, %v3984
        %v3991 = vsel %vm779, %v3974, 0
        %v3994 = vsel %vm779, %v3975, 0
        %v3997 = vsel %vm779, %v3976, 0
        %v4000 = vsel %vm779, %v3977, 0
        %4002 = vmatpush.bf16.msra.mxu0 0
        %4003 = vmatpush.bf16.msra.mxu0 0
        %4004 = vmatpush.bf16.msra.mxu0 0
        %4005 = vmatpush.bf16.msra.mxu0 0
        %4006 = vmatpush.bf16.msra.mxu0 0
        %4007 = vmatpush.bf16.msra.mxu0 0
        %4008 = vmatpush.bf16.msra.mxu0 %v3987
        %4009 = vmatpush.bf16.msra.mxu0 %v3986
        %4010 = vmatmul.bf16.gmra.mxu0 %v3991
        %v4011 = vpop.f32.mrf.mxu0
        %v4012 = vadd.f32 0.0, %v4011
        %v4013 = vpop.f32.mrf.mxu0
        %v4014 = vadd.f32 0.0, %v4013
        %4015 = vmatmul.bf16.gmra.mxu0 %v3994
        %v4016 = vpop.f32.mrf.mxu0
        %v4017 = vadd.f32 0.0, %v4016
        %v4018 = vpop.f32.mrf.mxu0
        %v4019 = vadd.f32 0.0, %v4018
        %4020 = vmatmul.bf16.gmra.mxu0 %v3997
        %v4021 = vpop.f32.mrf.mxu0
        %v4022 = vadd.f32 0.0, %v4021
        %v4023 = vpop.f32.mrf.mxu0
        %v4024 = vadd.f32 0.0, %v4023
        %4025 = vmatmul.bf16.gmra.mxu0 %v4000
        %v4026 = vpop.f32.mrf.mxu0
        %v4027 = vadd.f32 0.0, %v4026
        %v4028 = vpop.f32.mrf.mxu0
        %v4029 = vadd.f32 0.0, %v4028
        %4030 = vdwg.mxu0
        %v4035 = vunpack.c.l.b16 %v3900
        %v4036 = vunpack.c.l.b16 %v3901
        %v4037 = vunpack.c.l.b16 %v3902
        %v4038 = vunpack.c.l.b16 %v3903
        %v4039 = vpack.c.b16 %v4036, %v4035
        %v4040 = vpack.c.b16 %v4038, %v4037
        %v4044 = vsel %vm779, %v3946, 0
        %v4047 = vsel %vm779, %v3947, 0
        %v4050 = vsel %vm779, %v3948, 0
        %v4053 = vsel %vm779, %v3949, 0
        %4055 = vmatpush.bf16.msra.mxu0 0
        %4056 = vmatpush.bf16.msra.mxu0 0
        %4057 = vmatpush.bf16.msra.mxu0 0
        %4058 = vmatpush.bf16.msra.mxu0 0
        %4059 = vmatpush.bf16.msra.mxu0 0
        %4060 = vmatpush.bf16.msra.mxu0 0
        %4061 = vmatpush.bf16.msra.mxu0 %v4040
        %4062 = vmatpush.bf16.msra.mxu0 %v4039
        %4063 = vmatmul.bf16.gmra.mxu0 %v4044
        %v4064 = vpop.f32.mrf.mxu0
        %v4065 = vadd.f32 %v4012, %v4064
        %v4066 = vpop.f32.mrf.mxu0
        %v4067 = vadd.f32 %v4014, %v4066
        %4068 = vmatmul.bf16.gmra.mxu0 %v4047
        %v4069 = vpop.f32.mrf.mxu0
        %v4070 = vadd.f32 %v4017, %v4069
        %v4071 = vpop.f32.mrf.mxu0
        %v4072 = vadd.f32 %v4019, %v4071
        %4073 = vmatmul.bf16.gmra.mxu0 %v4050
        %v4074 = vpop.f32.mrf.mxu0
        %v4075 = vadd.f32 %v4022, %v4074
        %v4076 = vpop.f32.mrf.mxu0
        %v4077 = vadd.f32 %v4024, %v4076
        %4078 = vmatmul.bf16.gmra.mxu0 %v4053
        %v4079 = vpop.f32.mrf.mxu0
        %v4080 = vadd.f32 %v4027, %v4079
        %v4081 = vpop.f32.mrf.mxu0
        %v4082 = vadd.f32 %v4029, %v4081
        %4083 = vdwg.mxu0
        %v4084 = vpack.c.bf16 %v3892, %v3891
        %v4085 = vpack.c.bf16 %v3894, %v3893
        %v4086 = vpack.c.bf16 %v3896, %v3895
        %v4087 = vpack.c.bf16 %v3898, %v3897
        %v4092 = vunpack.c.l.b16 %v3908
        %v4093 = vunpack.c.l.b16 %v3909
        %v4094 = vunpack.c.l.b16 %v3910
        %v4095 = vunpack.c.l.b16 %v3911
        %v4096 = vpack.c.b16 %v4093, %v4092
        %v4097 = vpack.c.b16 %v4095, %v4094
        %v4101 = vsel %vm779, %v4084, 0
        %v4104 = vsel %vm779, %v4085, 0
        %v4107 = vsel %vm779, %v4086, 0
        %v4110 = vsel %vm779, %v4087, 0
        %4112 = vmatpush.bf16.msra.mxu0 0
        %4113 = vmatpush.bf16.msra.mxu0 0
        %4114 = vmatpush.bf16.msra.mxu0 0
        %4115 = vmatpush.bf16.msra.mxu0 0
        %4116 = vmatpush.bf16.msra.mxu0 0
        %4117 = vmatpush.bf16.msra.mxu0 0
        %4118 = vmatpush.bf16.msra.mxu0 %v4097
        %4119 = vmatpush.bf16.msra.mxu0 %v4096
        %4120 = vmatmul.bf16.gmra.mxu0 %v4101
        %v4121 = vpop.f32.mrf.mxu0
        %v4122 = vadd.f32 0.0, %v4121
        %v4123 = vpop.f32.mrf.mxu0
        %v4124 = vadd.f32 0.0, %v4123
        %4125 = vmatmul.bf16.gmra.mxu0 %v4104
        %v4126 = vpop.f32.mrf.mxu0
        %v4127 = vadd.f32 0.0, %v4126
        %v4128 = vpop.f32.mrf.mxu0
        %v4129 = vadd.f32 0.0, %v4128
        %4130 = vmatmul.bf16.gmra.mxu0 %v4107
        %v4131 = vpop.f32.mrf.mxu0
        %v4132 = vadd.f32 0.0, %v4131
        %v4133 = vpop.f32.mrf.mxu0
        %v4134 = vadd.f32 0.0, %v4133
        %4135 = vmatmul.bf16.gmra.mxu0 %v4110
        %v4136 = vpop.f32.mrf.mxu0
        %v4137 = vadd.f32 0.0, %v4136
        %v4138 = vpop.f32.mrf.mxu0
        %v4139 = vadd.f32 0.0, %v4138
        %4140 = vdwg.mxu0
        %v4141 = vadd.f32 %v4065, %v4122
        %v4142 = vadd.f32 %v4067, %v4124
        %v4143 = vadd.f32 %v4070, %v4127
        %v4144 = vadd.f32 %v4072, %v4129
        %v4145 = vadd.f32 %v4075, %v4132
        %v4146 = vadd.f32 %v4077, %v4134
        %v4147 = vadd.f32 %v4080, %v4137
        %v4148 = vadd.f32 %v4082, %v4139
        %v4150 = vperm.slane %v3913, 0
        %v4152 = vadd.f32 %v4141, %v4150
        %v4153 = vadd.f32 %v4142, %v4150
        %v4154 = vadd.f32 %v4143, %v4150
        %v4155 = vadd.f32 %v4144, %v4150
        %v4156 = vadd.f32 %v4145, %v4150
        %v4157 = vadd.f32 %v4146, %v4150
        %v4158 = vadd.f32 %v4147, %v4150
        %v4159 = vadd.f32 %v4148, %v4150
        %v4160 = vmax.f32 %v4152, 0.0
        %v4161 = vmax.f32 %v4153, 0.0
        %v4162 = vmax.f32 %v4154, 0.0
        %v4163 = vmax.f32 %v4155, 0.0
        %v4164 = vmax.f32 %v4156, 0.0
        %v4165 = vmax.f32 %v4157, 0.0
        %v4166 = vmax.f32 %v4158, 0.0
        %v4167 = vmax.f32 %v4159, 0.0
        %v4168 = vmul.f32 %v4160, %v657
        %v4169 = vmul.f32 %v4161, %v662
        %v4170 = vmul.f32 %v4162, %v667
        %v4171 = vmul.f32 %v4163, %v672
        %v4172 = vmul.f32 %v4164, %v677
        %v4173 = vmul.f32 %v4165, %v682
        %v4174 = vmul.f32 %v4166, %v687
        %v4175 = vmul.f32 %v4167, %v692
        %s4176 = scalar_lea.vmem %s13, 96
        %v4177 = vld [vmem:[%s4176] sm:$0xf]
        %v4178 = vld [vmem:[%s4176 + $0x4] sm:$0xf]
        %v4179 = vld [vmem:[%s4176 + $0x8] sm:$0xf]
        %v4180 = vld [vmem:[%s4176 + $0xc] sm:$0xf]
        %v4181 = vld [vmem:[%s4176 + $0x10] sm:$0xf]
        %v4182 = vld [vmem:[%s4176 + $0x14] sm:$0xf]
        %v4183 = vld [vmem:[%s4176 + $0x18] sm:$0xf]
        %v4184 = vld [vmem:[%s4176 + $0x1c] sm:$0xf]
        %v4185 = vld [vmem:[%s4176 + $0x20] sm:$0xf]
        %v4186 = vld [vmem:[%s4176 + $0x24] sm:$0xf]
        %v4187 = vld [vmem:[%s4176 + $0x28] sm:$0xf]
        %v4188 = vld [vmem:[%s4176 + $0x2c] sm:$0xf]
        %v4189 = vld [vmem:[%s4176 + $0x30] sm:$0xf]
        %v4190 = vld [vmem:[%s4176 + $0x34] sm:$0xf]
        %v4191 = vld [vmem:[%s4176 + $0x38] sm:$0xf]
        %v4192 = vld [vmem:[%s4176 + $0x3c] sm:$0xf]
        %v4193 = vld [vmem:[%s4176 + $0x40] sm:$0xf]
        %v4194 = vld [vmem:[%s4176 + $0x44] sm:$0xf]
        %v4195 = vld [vmem:[%s4176 + $0x48] sm:$0xf]
        %v4196 = vld [vmem:[%s4176 + $0x4c] sm:$0xf]
        %v4197 = vld [vmem:[%s4176 + $0x50] sm:$0xf]
        %v4198 = vld [vmem:[%s4176 + $0x54] sm:$0xf]
        %v4199 = vld [vmem:[%s4176 + $0x58] sm:$0xf]
        %v4200 = vld [vmem:[%s4176 + $0x5c] sm:$0xf]
        %s4201 = scalar_lea.vmem %s14, 1
        %v4202 = vld [vmem:[%s4201] sm:$0x1]
        %v4211 = vrot.slane %v4168, 6
        %v4212 = vrot.slane %v4169, 6
        %v4213 = vsel %vm2064, %v4211, %v4212
        %v4214 = vrot.slane %v4170, 6
        %v4215 = vsel %vm2064, %v4212, %v4214
        %v4216 = vrot.slane %v4171, 6
        %v4217 = vsel %vm2064, %v4214, %v4216
        %v4218 = vrot.slane %v4172, 6
        %v4219 = vsel %vm2064, %v4216, %v4218
        %v4220 = vrot.slane %v4173, 6
        %v4221 = vsel %vm2064, %v4218, %v4220
        %v4222 = vrot.slane %v4174, 6
        %v4223 = vsel %vm2064, %v4220, %v4222
        %v4224 = vrot.slane %v4175, 6
        %v4225 = vsel %vm2064, %v4222, %v4224
        %v4234 = vsel %vm2064, 0.0, %v4211
        %v4235 = vpack.c.bf16 %v4213, %v4234
        %v4236 = vpack.c.bf16 %v4217, %v4215
        %v4237 = vpack.c.bf16 %v4221, %v4219
        %v4238 = vpack.c.bf16 %v4225, %v4223
        %v4239 = vrot.slane %v4168, 7
        %v4240 = vrot.slane %v4169, 7
        %v4241 = vsel %vm734, %v4239, %v4240
        %v4242 = vrot.slane %v4170, 7
        %v4243 = vsel %vm734, %v4240, %v4242
        %v4244 = vrot.slane %v4171, 7
        %v4245 = vsel %vm734, %v4242, %v4244
        %v4246 = vrot.slane %v4172, 7
        %v4247 = vsel %vm734, %v4244, %v4246
        %v4248 = vrot.slane %v4173, 7
        %v4249 = vsel %vm734, %v4246, %v4248
        %v4250 = vrot.slane %v4174, 7
        %v4251 = vsel %vm734, %v4248, %v4250
        %v4252 = vrot.slane %v4175, 7
        %v4253 = vsel %vm734, %v4250, %v4252
        %v4262 = vsel %vm734, 0.0, %v4239
        %v4263 = vpack.c.bf16 %v4241, %v4262
        %v4264 = vpack.c.bf16 %v4245, %v4243
        %v4265 = vpack.c.bf16 %v4249, %v4247
        %v4266 = vpack.c.bf16 %v4253, %v4251
        %v4275 = vunpack.c.l.b16 %v4185
        %v4276 = vunpack.c.l.b16 %v4186
        %v4277 = vunpack.c.l.b16 %v4187
        %v4278 = vunpack.c.l.b16 %v4188
        %v4279 = vunpack.c.l.b16 %v4189
        %v4280 = vunpack.c.l.b16 %v4190
        %v4281 = vunpack.c.l.b16 %v4191
        %v4282 = vunpack.c.l.b16 %v4192
        %v4283 = vpack.c.b16 %v4276, %v4275
        %v4284 = vpack.c.b16 %v4278, %v4277
        %v4285 = vpack.c.b16 %v4280, %v4279
        %v4286 = vpack.c.b16 %v4282, %v4281
        %v4292 = vsel %vm1130, %v4263, 0
        %v4295 = vsel %vm1130, %v4264, 0
        %v4298 = vsel %vm1130, %v4265, 0
        %v4301 = vsel %vm1130, %v4266, 0
        %4303 = vmatpush.bf16.msra.mxu0 0
        %4304 = vmatpush.bf16.msra.mxu0 0
        %4305 = vmatpush.bf16.msra.mxu0 0
        %4306 = vmatpush.bf16.msra.mxu0 0
        %4307 = vmatpush.bf16.msra.mxu0 %v4286
        %4308 = vmatpush.bf16.msra.mxu0 %v4285
        %4309 = vmatpush.bf16.msra.mxu0 %v4284
        %4310 = vmatpush.bf16.msra.mxu0 %v4283
        %4311 = vmatmul.bf16.gmra.mxu0 %v4292
        %v4312 = vpop.f32.mrf.mxu0
        %v4313 = vadd.f32 0.0, %v4312
        %v4314 = vpop.f32.mrf.mxu0
        %v4315 = vadd.f32 0.0, %v4314
        %4316 = vmatmul.bf16.gmra.mxu0 %v4295
        %v4317 = vpop.f32.mrf.mxu0
        %v4318 = vadd.f32 0.0, %v4317
        %v4319 = vpop.f32.mrf.mxu0
        %v4320 = vadd.f32 0.0, %v4319
        %4321 = vmatmul.bf16.gmra.mxu0 %v4298
        %v4322 = vpop.f32.mrf.mxu0
        %v4323 = vadd.f32 0.0, %v4322
        %v4324 = vpop.f32.mrf.mxu0
        %v4325 = vadd.f32 0.0, %v4324
        %4326 = vmatmul.bf16.gmra.mxu0 %v4301
        %v4327 = vpop.f32.mrf.mxu0
        %v4328 = vadd.f32 0.0, %v4327
        %v4329 = vpop.f32.mrf.mxu0
        %v4330 = vadd.f32 0.0, %v4329
        %4331 = vdwg.mxu0
        %v4340 = vunpack.c.l.b16 %v4177
        %v4341 = vunpack.c.l.b16 %v4178
        %v4342 = vunpack.c.l.b16 %v4179
        %v4343 = vunpack.c.l.b16 %v4180
        %v4344 = vunpack.c.l.b16 %v4181
        %v4345 = vunpack.c.l.b16 %v4182
        %v4346 = vunpack.c.l.b16 %v4183
        %v4347 = vunpack.c.l.b16 %v4184
        %v4348 = vpack.c.b16 %v4341, %v4340
        %v4349 = vpack.c.b16 %v4343, %v4342
        %v4350 = vpack.c.b16 %v4345, %v4344
        %v4351 = vpack.c.b16 %v4347, %v4346
        %v4357 = vsel %vm1130, %v4235, 0
        %v4360 = vsel %vm1130, %v4236, 0
        %v4363 = vsel %vm1130, %v4237, 0
        %v4366 = vsel %vm1130, %v4238, 0
        %4368 = vmatpush.bf16.msra.mxu0 0
        %4369 = vmatpush.bf16.msra.mxu0 0
        %4370 = vmatpush.bf16.msra.mxu0 0
        %4371 = vmatpush.bf16.msra.mxu0 0
        %4372 = vmatpush.bf16.msra.mxu0 %v4351
        %4373 = vmatpush.bf16.msra.mxu0 %v4350
        %4374 = vmatpush.bf16.msra.mxu0 %v4349
        %4375 = vmatpush.bf16.msra.mxu0 %v4348
        %4376 = vmatmul.bf16.gmra.mxu0 %v4357
        %v4377 = vpop.f32.mrf.mxu0
        %v4378 = vadd.f32 %v4313, %v4377
        %v4379 = vpop.f32.mrf.mxu0
        %v4380 = vadd.f32 %v4315, %v4379
        %4381 = vmatmul.bf16.gmra.mxu0 %v4360
        %v4382 = vpop.f32.mrf.mxu0
        %v4383 = vadd.f32 %v4318, %v4382
        %v4384 = vpop.f32.mrf.mxu0
        %v4385 = vadd.f32 %v4320, %v4384
        %4386 = vmatmul.bf16.gmra.mxu0 %v4363
        %v4387 = vpop.f32.mrf.mxu0
        %v4388 = vadd.f32 %v4323, %v4387
        %v4389 = vpop.f32.mrf.mxu0
        %v4390 = vadd.f32 %v4325, %v4389
        %4391 = vmatmul.bf16.gmra.mxu0 %v4366
        %v4392 = vpop.f32.mrf.mxu0
        %v4393 = vadd.f32 %v4328, %v4392
        %v4394 = vpop.f32.mrf.mxu0
        %v4395 = vadd.f32 %v4330, %v4394
        %4396 = vdwg.mxu0
        %v4397 = vpack.c.bf16 %v4169, %v4168
        %v4398 = vpack.c.bf16 %v4171, %v4170
        %v4399 = vpack.c.bf16 %v4173, %v4172
        %v4400 = vpack.c.bf16 %v4175, %v4174
        %v4409 = vunpack.c.l.b16 %v4193
        %v4410 = vunpack.c.l.b16 %v4194
        %v4411 = vunpack.c.l.b16 %v4195
        %v4412 = vunpack.c.l.b16 %v4196
        %v4413 = vunpack.c.l.b16 %v4197
        %v4414 = vunpack.c.l.b16 %v4198
        %v4415 = vunpack.c.l.b16 %v4199
        %v4416 = vunpack.c.l.b16 %v4200
        %v4417 = vpack.c.b16 %v4410, %v4409
        %v4418 = vpack.c.b16 %v4412, %v4411
        %v4419 = vpack.c.b16 %v4414, %v4413
        %v4420 = vpack.c.b16 %v4416, %v4415
        %v4426 = vsel %vm1130, %v4397, 0
        %v4429 = vsel %vm1130, %v4398, 0
        %v4432 = vsel %vm1130, %v4399, 0
        %v4435 = vsel %vm1130, %v4400, 0
        %4437 = vmatpush.bf16.msra.mxu0 0
        %4438 = vmatpush.bf16.msra.mxu0 0
        %4439 = vmatpush.bf16.msra.mxu0 0
        %4440 = vmatpush.bf16.msra.mxu0 0
        %4441 = vmatpush.bf16.msra.mxu0 %v4420
        %4442 = vmatpush.bf16.msra.mxu0 %v4419
        %4443 = vmatpush.bf16.msra.mxu0 %v4418
        %4444 = vmatpush.bf16.msra.mxu0 %v4417
        %4445 = vmatmul.bf16.gmra.mxu0 %v4426
        %v4446 = vpop.f32.mrf.mxu0
        %v4447 = vadd.f32 0.0, %v4446
        %v4448 = vpop.f32.mrf.mxu0
        %v4449 = vadd.f32 0.0, %v4448
        %4450 = vmatmul.bf16.gmra.mxu0 %v4429
        %v4451 = vpop.f32.mrf.mxu0
        %v4452 = vadd.f32 0.0, %v4451
        %v4453 = vpop.f32.mrf.mxu0
        %v4454 = vadd.f32 0.0, %v4453
        %4455 = vmatmul.bf16.gmra.mxu0 %v4432
        %v4456 = vpop.f32.mrf.mxu0
        %v4457 = vadd.f32 0.0, %v4456
        %v4458 = vpop.f32.mrf.mxu0
        %v4459 = vadd.f32 0.0, %v4458
        %4460 = vmatmul.bf16.gmra.mxu0 %v4435
        %v4461 = vpop.f32.mrf.mxu0
        %v4462 = vadd.f32 0.0, %v4461
        %v4463 = vpop.f32.mrf.mxu0
        %v4464 = vadd.f32 0.0, %v4463
        %4465 = vdwg.mxu0
        %v4466 = vadd.f32 %v4378, %v4447
        %v4467 = vadd.f32 %v4380, %v4449
        %v4468 = vadd.f32 %v4383, %v4452
        %v4469 = vadd.f32 %v4385, %v4454
        %v4470 = vadd.f32 %v4388, %v4457
        %v4471 = vadd.f32 %v4390, %v4459
        %v4472 = vadd.f32 %v4393, %v4462
        %v4473 = vadd.f32 %v4395, %v4464
        %v4475 = vperm.slane %v4202, 0
        %v4477 = vadd.f32 %v4466, %v4475
        %v4478 = vadd.f32 %v4467, %v4475
        %v4479 = vadd.f32 %v4468, %v4475
        %v4480 = vadd.f32 %v4469, %v4475
        %v4481 = vadd.f32 %v4470, %v4475
        %v4482 = vadd.f32 %v4471, %v4475
        %v4483 = vadd.f32 %v4472, %v4475
        %v4484 = vadd.f32 %v4473, %v4475
        %v4485 = vmul.f32 %v4477, %v657
        %v4486 = vmul.f32 %v4478, %v662
        %v4487 = vmul.f32 %v4479, %v667
        %v4488 = vmul.f32 %v4480, %v672
        %v4489 = vmul.f32 %v4481, %v677
        %v4490 = vmul.f32 %v4482, %v682
        %v4491 = vmul.f32 %v4483, %v687
        %v4492 = vmul.f32 %v4484, %v692
        %v4493 = vadd.f32 %v3883, %v4485
        %v4494 = vadd.f32 %v3884, %v4486
        %v4495 = vadd.f32 %v3885, %v4487
        %v4496 = vadd.f32 %v3886, %v4488
        %v4497 = vadd.f32 %v3887, %v4489
        %v4498 = vadd.f32 %v3888, %v4490
        %v4499 = vadd.f32 %v3889, %v4491
        %v4500 = vadd.f32 %v3890, %v4492
        %s4501 = scalar_lea.vmem %s15, 1
        %v4502 = vld [vmem:[%s4501] sm:$0x1]
        %s4503 = scalar_lea.vmem %s16, 1
        %v4504 = vld [vmem:[%s4503] sm:$0x1]
        %v4505 = vsel %vm779, %v4493, 0.0
        %4506 = vadd.xlane.f32.xlu0 %v4505
        %v4507 = vpop.xlane.xlu0 %4506
        %v4508 = vsel %vm779, %v4494, 0.0
        %4509 = vadd.xlane.f32.xlu0 %v4508
        %v4510 = vpop.xlane.xlu0 %4509
        %v4511 = vsel %vm779, %v4495, 0.0
        %4512 = vadd.xlane.f32.xlu0 %v4511
        %v4513 = vpop.xlane.xlu0 %4512
        %v4514 = vsel %vm779, %v4496, 0.0
        %4515 = vadd.xlane.f32.xlu0 %v4514
        %v4516 = vpop.xlane.xlu0 %4515
        %v4517 = vsel %vm779, %v4497, 0.0
        %4518 = vadd.xlane.f32.xlu0 %v4517
        %v4519 = vpop.xlane.xlu0 %4518
        %v4520 = vsel %vm779, %v4498, 0.0
        %4521 = vadd.xlane.f32.xlu0 %v4520
        %v4522 = vpop.xlane.xlu0 %4521
        %v4523 = vsel %vm779, %v4499, 0.0
        %4524 = vadd.xlane.f32.xlu0 %v4523
        %v4525 = vpop.xlane.xlu0 %4524
        %v4526 = vsel %vm779, %v4500, 0.0
        %4527 = vadd.xlane.f32.xlu0 %v4526
        %v4528 = vpop.xlane.xlu0 %4527
        %v4529 = vmul.f32 %v4507, %v1860
        %v4530 = vmul.f32 %v4510, %v1860
        %v4531 = vmul.f32 %v4513, %v1860
        %v4532 = vmul.f32 %v4516, %v1860
        %v4533 = vmul.f32 %v4519, %v1860
        %v4534 = vmul.f32 %v4522, %v1860
        %v4535 = vmul.f32 %v4525, %v1860
        %v4536 = vmul.f32 %v4528, %v1860
        %v4537 = vsub.f32 %v4493, %v4529
        %v4538 = vsub.f32 %v4494, %v4530
        %v4539 = vsub.f32 %v4495, %v4531
        %v4540 = vsub.f32 %v4496, %v4532
        %v4541 = vsub.f32 %v4497, %v4533
        %v4542 = vsub.f32 %v4498, %v4534
        %v4543 = vsub.f32 %v4499, %v4535
        %v4544 = vsub.f32 %v4500, %v4536
        %v4545 = vmul.f32 %v4537, %v4537
        %v4546 = vmul.f32 %v4538, %v4538
        %v4547 = vmul.f32 %v4539, %v4539
        %v4548 = vmul.f32 %v4540, %v4540
        %v4549 = vmul.f32 %v4541, %v4541
        %v4550 = vmul.f32 %v4542, %v4542
        %v4551 = vmul.f32 %v4543, %v4543
        %v4552 = vmul.f32 %v4544, %v4544
        %v4553 = vsel %vm779, %v4545, 0.0
        %4554 = vadd.xlane.f32.xlu0 %v4553
        %v4555 = vpop.xlane.xlu0 %4554
        %v4556 = vsel %vm779, %v4546, 0.0
        %4557 = vadd.xlane.f32.xlu0 %v4556
        %v4558 = vpop.xlane.xlu0 %4557
        %v4559 = vsel %vm779, %v4547, 0.0
        %4560 = vadd.xlane.f32.xlu0 %v4559
        %v4561 = vpop.xlane.xlu0 %4560
        %v4562 = vsel %vm779, %v4548, 0.0
        %4563 = vadd.xlane.f32.xlu0 %v4562
        %v4564 = vpop.xlane.xlu0 %4563
        %v4565 = vsel %vm779, %v4549, 0.0
        %4566 = vadd.xlane.f32.xlu0 %v4565
        %v4567 = vpop.xlane.xlu0 %4566
        %v4568 = vsel %vm779, %v4550, 0.0
        %4569 = vadd.xlane.f32.xlu0 %v4568
        %v4570 = vpop.xlane.xlu0 %4569
        %v4571 = vsel %vm779, %v4551, 0.0
        %4572 = vadd.xlane.f32.xlu0 %v4571
        %v4573 = vpop.xlane.xlu0 %4572
        %v4574 = vsel %vm779, %v4552, 0.0
        %4575 = vadd.xlane.f32.xlu0 %v4574
        %v4576 = vpop.xlane.xlu0 %4575
        %v4577 = vmul.f32 %v4555, %v1860
        %v4578 = vmul.f32 %v4558, %v1860
        %v4579 = vmul.f32 %v4561, %v1860
        %v4580 = vmul.f32 %v4564, %v1860
        %v4581 = vmul.f32 %v4567, %v1860
        %v4582 = vmul.f32 %v4570, %v1860
        %v4583 = vmul.f32 %v4573, %v1860
        %v4584 = vmul.f32 %v4576, %v1860
        %v4585 = vadd.f32 %v4577, 1e-05
        %v4586 = vadd.f32 %v4578, 1e-05
        %v4587 = vadd.f32 %v4579, 1e-05
        %v4588 = vadd.f32 %v4580, 1e-05
        %v4589 = vadd.f32 %v4581, 1e-05
        %v4590 = vadd.f32 %v4582, 1e-05
        %v4591 = vadd.f32 %v4583, 1e-05
        %v4592 = vadd.f32 %v4584, 1e-05
        %v4593 = vrsqrt.pop %v4585
        %v4594 = vmul.f32 %v4593, %v4585
        %v4595 = vmul.f32 %v4594, %v4593
        %v4596 = vmul.f32 0.5, %v4595
        %v4597 = vsub.f32 1.5, %v4596
        %v4598 = vmul.f32 %v4593, %v4597
        %vm4599 = vweird.f32 %v4585
        %vm4600 = vweird.f32 %v4593
        %vm4601 = vmor %vm4599, %vm4600
        %v4602 = vsel %vm4601, %v4593, %v4598
        %v4603 = vrsqrt.pop %v4586
        %v4604 = vmul.f32 %v4603, %v4586
        %v4605 = vmul.f32 %v4604, %v4603
        %v4606 = vmul.f32 0.5, %v4605
        %v4607 = vsub.f32 1.5, %v4606
        %v4608 = vmul.f32 %v4603, %v4607
        %vm4609 = vweird.f32 %v4586
        %vm4610 = vweird.f32 %v4603
        %vm4611 = vmor %vm4609, %vm4610
        %v4612 = vsel %vm4611, %v4603, %v4608
        %v4613 = vrsqrt.pop %v4587
        %v4614 = vmul.f32 %v4613, %v4587
        %v4615 = vmul.f32 %v4614, %v4613
        %v4616 = vmul.f32 0.5, %v4615
        %v4617 = vsub.f32 1.5, %v4616
        %v4618 = vmul.f32 %v4613, %v4617
        %vm4619 = vweird.f32 %v4587
        %vm4620 = vweird.f32 %v4613
        %vm4621 = vmor %vm4619, %vm4620
        %v4622 = vsel %vm4621, %v4613, %v4618
        %v4623 = vrsqrt.pop %v4588
        %v4624 = vmul.f32 %v4623, %v4588
        %v4625 = vmul.f32 %v4624, %v4623
        %v4626 = vmul.f32 0.5, %v4625
        %v4627 = vsub.f32 1.5, %v4626
        %v4628 = vmul.f32 %v4623, %v4627
        %vm4629 = vweird.f32 %v4588
        %vm4630 = vweird.f32 %v4623
        %vm4631 = vmor %vm4629, %vm4630
        %v4632 = vsel %vm4631, %v4623, %v4628
        %v4633 = vrsqrt.pop %v4589
        %v4634 = vmul.f32 %v4633, %v4589
        %v4635 = vmul.f32 %v4634, %v4633
        %v4636 = vmul.f32 0.5, %v4635
        %v4637 = vsub.f32 1.5, %v4636
        %v4638 = vmul.f32 %v4633, %v4637
        %vm4639 = vweird.f32 %v4589
        %vm4640 = vweird.f32 %v4633
        %vm4641 = vmor %vm4639, %vm4640
        %v4642 = vsel %vm4641, %v4633, %v4638
        %v4643 = vrsqrt.pop %v4590
        %v4644 = vmul.f32 %v4643, %v4590
        %v4645 = vmul.f32 %v4644, %v4643
        %v4646 = vmul.f32 0.5, %v4645
        %v4647 = vsub.f32 1.5, %v4646
        %v4648 = vmul.f32 %v4643, %v4647
        %vm4649 = vweird.f32 %v4590
        %vm4650 = vweird.f32 %v4643
        %vm4651 = vmor %vm4649, %vm4650
        %v4652 = vsel %vm4651, %v4643, %v4648
        %v4653 = vrsqrt.pop %v4591
        %v4654 = vmul.f32 %v4653, %v4591
        %v4655 = vmul.f32 %v4654, %v4653
        %v4656 = vmul.f32 0.5, %v4655
        %v4657 = vsub.f32 1.5, %v4656
        %v4658 = vmul.f32 %v4653, %v4657
        %vm4659 = vweird.f32 %v4591
        %vm4660 = vweird.f32 %v4653
        %vm4661 = vmor %vm4659, %vm4660
        %v4662 = vsel %vm4661, %v4653, %v4658
        %v4663 = vrsqrt.pop %v4592
        %v4664 = vmul.f32 %v4663, %v4592
        %v4665 = vmul.f32 %v4664, %v4663
        %v4666 = vmul.f32 0.5, %v4665
        %v4667 = vsub.f32 1.5, %v4666
        %v4668 = vmul.f32 %v4663, %v4667
        %vm4669 = vweird.f32 %v4592
        %vm4670 = vweird.f32 %v4663
        %vm4671 = vmor %vm4669, %vm4670
        %v4672 = vsel %vm4671, %v4663, %v4668
        %v4673 = vmul.f32 %v4537, %v4602
        %v4674 = vmul.f32 %v4538, %v4612
        %v4675 = vmul.f32 %v4539, %v4622
        %v4676 = vmul.f32 %v4540, %v4632
        %v4677 = vmul.f32 %v4541, %v4642
        %v4678 = vmul.f32 %v4542, %v4652
        %v4679 = vmul.f32 %v4543, %v4662
        %v4680 = vmul.f32 %v4544, %v4672
        %v4682 = vperm.slane %v4502, 0
        %v4684 = vmul.f32 %v4673, %v4682
        %v4685 = vmul.f32 %v4674, %v4682
        %v4686 = vmul.f32 %v4675, %v4682
        %v4687 = vmul.f32 %v4676, %v4682
        %v4688 = vmul.f32 %v4677, %v4682
        %v4689 = vmul.f32 %v4678, %v4682
        %v4690 = vmul.f32 %v4679, %v4682
        %v4691 = vmul.f32 %v4680, %v4682
        %v4693 = vperm.slane %v4504, 0
        %v4695 = vadd.f32 %v4684, %v4693
        %v4696 = vadd.f32 %v4685, %v4693
        %v4697 = vadd.f32 %v4686, %v4693
        %v4698 = vadd.f32 %v4687, %v4693
        %v4699 = vadd.f32 %v4688, %v4693
        %v4700 = vadd.f32 %v4689, %v4693
        %v4701 = vadd.f32 %v4690, %v4693
        %v4702 = vadd.f32 %v4691, %v4693
        %v4703 = vmul.f32 %v4695, %v657
        %v4704 = vmul.f32 %v4696, %v662
        %v4705 = vmul.f32 %v4697, %v667
        %v4706 = vmul.f32 %v4698, %v672
        %v4707 = vmul.f32 %v4699, %v677
        %v4708 = vmul.f32 %v4700, %v682
        %v4709 = vmul.f32 %v4701, %v687
        %v4710 = vmul.f32 %v4702, %v692
        %v4711 = vld [vmem:[%s17] sm:$0x1]
        %v4712 = vpack.c.bf16 %v4704, %v4703
        %v4713 = vpack.c.bf16 %v4706, %v4705
        %v4714 = vpack.c.bf16 %v4708, %v4707
        %v4715 = vpack.c.bf16 %v4710, %v4709
        %v4716 = vld [vmem:[#allocation2] sm:$0x1]
        %4718 = vset.pattern.permute.xlu0 0
        %4719 = vperm.xlu0 %4718, %v4716
        %v4720 = vpop.permute.xlu0 %4719
        %v4722 = vperm.slane %v4720, 0
        %v4724 = vsel %vm779, %v4711, 0
        %v4727 = vsel %vm779, %v4712, 0
        %v4730 = vsel %vm779, %v4713, 0
        %v4733 = vsel %vm779, %v4714, 0
        %v4736 = vsel %vm779, %v4715, 0
        %4738 = vmatpush.bf16.xpose.msra.mxu0 0
        %4739 = vmatpush.bf16.xpose.msra.mxu0 0
        %4740 = vmatpush.bf16.xpose.msra.mxu0 0
        %4741 = vmatpush.bf16.xpose.msra.mxu0 0
        %4742 = vmatpush.bf16.xpose.msra.mxu0 %v4736
        %4743 = vmatpush.bf16.xpose.msra.mxu0 %v4733
        %4744 = vmatpush.bf16.xpose.msra.mxu0 %v4730
        %4745 = vmatpush.bf16.xpose.msra.mxu0 %v4727
        %4746 = vmatmul.bf16.gmra.mxu0 %v4724
        %v4747 = vpop.f32.mrf.mxu0
        %v4748 = vadd.f32 %v4722, %v4747
        %v4749 = vpop.f32.mrf.mxu0
        %4750 = vdwg.mxu0
        %v4751 = vmul.f32 %v4748, %v653
        %vm4752 = vcmask 516096
        %4753 = vst.msk [vmem:[%s622] sm:$0x1] %vm4752, %v4751
        %s4754 = sand.u32 %s457, 1
        %s4755 = scalar_lea.sflag [#allocation4], %s4754
        %s4756 = sand.u32 %s457, 1
        %s4757 = scalar_lea.vmem [#allocation3], %s4756
        // Predicated region
        $region97: #{tpu_custom_call.1} parent=95 // pred_check
          %p4758 = pneg %p467
        $region98: #{tpu_custom_call.1} parent=95 // pred_check_branch
          %4760 = sbr.rel (%p4758) target = $region100
        $region99: #{tpu_custom_call.1} parent=95 // pred_region
          %4762 = vsyncadd %s4755, 0
          %s4763 = scalar_lea.hbm %s19, %s35
          %s4765 = sshll.u32 %s4757, 4
          %s4766 = int_to_ptr.vmem [resolvable:$true] %s4765
          %s4767 = sshll.u32 %s4763, 4
          %s4768 = int_to_ptr.hbm [resolvable:$true] %s4767
          %4770 = dma.vmem_to_hbm [thread:$0]  %s4766, 16, %s4768, %s4755
        $region100: #{tpu_custom_call.1} parent=95 // pred_fallthru
          _
      $region96: #{tpu_custom_call.1} parent=5 // pred_fallthru
        _
      %p4771 = scmp.le.s32.totalorder 2, %s30
      // Predicated region
      $region101: #{tpu_custom_call.1} parent=5 // pred_check
        %p4772 = pneg %p4771
      $region102: #{tpu_custom_call.1} parent=5 // pred_check_branch
        %4774 = sbr.rel (%p4772) target = $region104
      $region103: #{tpu_custom_call.1} parent=5 // pred_region
        %s4775 = ssub.s32 %s30, 2
        // Predicated region
        $region105: #{tpu_custom_call.1} parent=103 // pred_check
          %p4776 = pneg %p473
        $region106: #{tpu_custom_call.1} parent=103 // pred_check_branch
          %4778 = sbr.rel (%p4776) target = $region108
        $region107: #{tpu_custom_call.1} parent=103 // pred_region
          %s4779 = sand.u32 %s458, 1
          %s4780 = scalar_lea.sflag [#allocation4], %s4779
          %s4781 = sand.u32 %s458, 1
          %s4782 = scalar_lea.vmem [#allocation3], %s4781
          %4784 = dma.done %s4780, 16
        $region108: #{tpu_custom_call.1} parent=103 // pred_fallthru
          _
      $region104: #{tpu_custom_call.1} parent=5 // pred_fallthru
        _
    $region6: #{tpu_custom_call.1} parent=1 // loop_footer
      %s34 = sadd.s32 1, %s30
    $region7: #{tpu_custom_call.1} parent=1 // loop_footer_branch
      %29 = sbr.rel target = $region3
    $region8: #{tpu_custom_call.1} parent=1 // loop_exit
      _
    %4785 = vsyncpa [#allocation4], 1
    %s4786 = scalar_lea.sflag [#allocation4], 1
    %4787 = vsyncpa %s4786, 1

</llo_original>
